<compile_context>
chip_gen: v7x
topology: tpu7x:2x2x1
jax: 0.10.0
libtpu: 0.0.40
codegen_flags: <defaults>
</compile_context>

<pallas_src>
import functools
import math

import jax
import jax.numpy as jnp
from jax.experimental import pallas as pl
from jax.experimental.pallas import tpu as pltpu


# Matmul operand dtype for the MXU (accumulation is always f32).
MATMUL_DTYPE = jnp.bfloat16


# --------------------------------------------------------------------------
# Fused per-layer kernel: pre_transform + encoder layer + post block.
# One grid step == one batch element (full sequence, all heads).
# --------------------------------------------------------------------------
def _dense_layer_kernel(
    x_ref, mask_ref,
    pre_w_ref, pre_b_ref,
    ln1_g_ref, ln1_b_ref,
    wqkv_ref, bqkv_ref, wo_ref, bo_ref,
    ln2_g_ref, ln2_b_ref,
    w1_ref, b1_ref, w2_ref, b2_ref,
    pw_ref, pb_ref, ln3_g_ref, ln3_b_ref,
    o_ref,
    ctx_ref,                                    # VMEM scratch [S, D] (mm_dtype)
    *, heads, pad_lanes, mm_dtype):

    def mm(a_mm, w_mm):
        # MXU matmul: bf16 operands, f32 accumulation.
        return jnp.dot(a_mm, w_mm, preferred_element_type=jnp.float32)

    def ln(t, g_ref, b_ref):
        # LayerNorm over last dim, biased variance, eps=1e-6 (f32 statistics).
        mu = jnp.mean(t, axis=-1, keepdims=True)
        var = jnp.mean((t - mu) ** 2, axis=-1, keepdims=True)
        return (t - mu) * jax.lax.rsqrt(var + 1e-6) * g_ref[...] + b_ref[...]

    x_in = x_ref[0]                                                   # [S, Din] f32

    # ---- pre_transform ----------------------------------------------------
    x = mm(x_in.astype(mm_dtype), pre_w_ref[...]) + pre_b_ref[...]    # [S, D] f32
    S, D = x.shape
    Dh = D // heads

    # ---- self-attention (pre-LN) -------------------------------------------
    xn = ln(x, ln1_g_ref, ln1_b_ref)
    # Fused QKV projection; 1/sqrt(Dh) already folded into the Q columns.
    qkv = mm(xn.astype(mm_dtype), wqkv_ref[...]) + bqkv_ref[...]      # [S, 3D] f32
    qkv_b = qkv.astype(mm_dtype)                  # single bf16 cast, re-sliced below

    # Additive key-padding bias, computed once per sequence (not per head).
    # OpenNMT masked_fill(-1e18) ~ adding -1e18: masked keys underflow to 0.
    mask_bias = jnp.where(mask_ref[0] != 0, -1e18, 0.0).astype(jnp.float32)  # [1, S]

    # TODO(synk): at production sizes (Dh a multiple of 128) replace this static
    #             per-head unroll + lane slicing with one batched
    #             einsum('hqd,hkd->hqk') over a [heads, S, Dh] layout.
    for h in range(heads):
        q_h = qkv_b[:, h * Dh:(h + 1) * Dh]
        k_h = qkv_b[:, D + h * Dh:D + (h + 1) * Dh]
        v_h = qkv_b[:, 2 * D + h * Dh:2 * D + (h + 1) * Dh]
        # scores = q_h @ k_h^T (contract last dims directly, no transpose op)
        s = jax.lax.dot_general(q_h, k_h, (((1,), (1,)), ((), ())),
                                preferred_element_type=jnp.float32)   # [S, S]
        s = s + mask_bias
        p = jnp.exp(s - jnp.max(s, axis=-1, keepdims=True))
        l = jnp.sum(p, axis=-1, keepdims=True)                        # [S, 1]
        ctx_h = mm(p.astype(mm_dtype), v_h)                           # [S, Dh] f32
        # Deferred softmax normalization: scale [S,Dh] context, not [S,S] probs.
        ctx_h = ctx_h * pl.reciprocal(l, approx=True)
        ctx_ref[:, h * Dh:(h + 1) * Dh] = ctx_h.astype(mm_dtype)

    # Single K=D output projection on the assembled context (full MXU depth).
    attn = mm(ctx_ref[...], wo_ref[...]) + bo_ref[...]                # [S, D] f32
    out = attn + x                                   # residual (dropout = no-op)

    # ---- position-wise FFN (pre-LN, residual) --------------------------------
    h1 = ln(out, ln2_g_ref, ln2_b_ref)
    h1 = jnp.maximum(mm(h1.astype(mm_dtype), w1_ref[...]) + b1_ref[...], 0.0)
    out = mm(h1.astype(mm_dtype), w2_ref[...]) + b2_ref[...] + out

    # ---- post_transform + post_ln + relu -------------------------------------
    y = mm(out.astype(mm_dtype), pw_ref[...]) + pb_ref[...]           # [S, G]
    y = jnp.maximum(ln(y, ln3_g_ref, ln3_b_ref), 0.0)

    # Lane-dense output block: one unmasked full-width store to the 128-lane
    # padded block, then drop the G real lanes in (trimmed in the wrapper).
    G = y.shape[1]
    if pad_lanes:
        o_ref[0] = jnp.zeros((S, G + pad_lanes), jnp.float32)
        o_ref[0, :, :G] = y
    else:
        o_ref[0] = y


# --------------------------------------------------------------------------
# Wrapper: one fused pallas_call per dense layer.
# --------------------------------------------------------------------------
def dense_layer_fwd(x_in, mask, lp, heads, mm_dtype=MATMUL_DTYPE):
    B, S, Din = x_in.shape
    D = lp["pre_w"].shape[1]
    G = lp["post"]["w"].shape[1]
    assert D % heads == 0
    Dh = D // heads
    scale = 1.0 / math.sqrt(Dh)

    # Lane-dense padded output width (>= next multiple of 128).
    GP = ((G + 127) // 128) * 128
    pad_lanes = GP - G

    enc, ffn, post = lp["enc"], lp["enc"]["ffn"], lp["post"]

    def w(a):                      # MXU operands (bf16 halves weight DMA)
        return a.astype(mm_dtype)

    def vec(a):                    # biases / LN params stay f32, as [1, n]
        return a.reshape(1, -1).astype(jnp.float32)

    # Fused QKV weight [D, 3D]; query scale folded into the Q columns
    # (exact: (x@wq + bq) * s == x@(wq*s) + bq*s). One-time weight prep.
    wqkv = jnp.concatenate([enc["wq"] * scale, enc["wk"], enc["wv"]], axis=1)
    bqkv = jnp.concatenate([enc["bq"] * scale, enc["bk"], enc["bv"]])

    args = (
        x_in.astype(jnp.float32), mask.astype(jnp.int32),
        w(lp["pre_w"]), vec(lp["pre_b"]),
        vec(enc["ln_g"]), vec(enc["ln_b"]),
        w(wqkv), vec(bqkv), w(enc["wo"]), vec(enc["bo"]),
        vec(ffn["ln_g"]), vec(ffn["ln_b"]),
        w(ffn["w1"]), vec(ffn["b1"]), w(ffn["w2"]), vec(ffn["b2"]),
        w(post["w"]), vec(post["b"]), vec(post["ln_g"]), vec(post["ln_b"]),
    )

    def const_spec(shape):
        # Resident weights: constant index_map (fetched once per grid sweep).
        # TODO(synk): pl.Buffered(1) would drop the double-buffer for these.
        n = len(shape)
        return pl.BlockSpec(shape, lambda b, _n=n: (0,) * _n)

    in_specs = [
        pl.BlockSpec((1, S, Din), lambda b: (b, 0, 0)),   # activations: per batch
        pl.BlockSpec((1, 1, S), lambda b: (b, 0, 0)),     # padding mask: per batch
    ] + [const_spec(a.shape) for a in args[2:]]           # weights: resident

    kern = functools.partial(_dense_layer_kernel, heads=heads,
                             pad_lanes=pad_lanes, mm_dtype=mm_dtype)
    y_pad = pl.pallas_call(
        kern,
        out_shape=jax.ShapeDtypeStruct((B, S, GP), jnp.float32),
        grid=(B,),
        in_specs=in_specs,
        out_specs=pl.BlockSpec((1, S, GP), lambda b: (b, 0, 0)),
        scratch_shapes=[pltpu.VMEM((S, D), mm_dtype)],
        compiler_params=pltpu.CompilerParams(
            dimension_semantics=("parallel",),
            vmem_limit_bytes=48 * 1024 * 1024),
    )(*args)
    return y_pad[:, :, :G] if pad_lanes else y_pad


# --------------------------------------------------------------------------
# TransformerDenseBlock forward: preallocated concat slab, one kernel / layer.
# --------------------------------------------------------------------------
def transformer_dense_block_fwd(inputs, mask, params, heads):
    B, S, d_model = inputs.shape
    layers = params["layers"]
    G = layers[0]["post"]["w"].shape[1]
    d_total = d_model + G * len(layers)

    # TODO(synk): at production sizes keep the slab in bf16 and alias it into
    #             the kernel (input_output_aliases) to halve O(L^2) HBM traffic.
    slab = jnp.zeros((B, S, d_total), jnp.float32)
    slab = slab.at[:, :, :d_model].set(inputs.astype(jnp.float32))

    off = d_model
    for lp in layers:
        x_in = jax.lax.slice_in_dim(slab, 0, off, axis=2)   # concat so far
        y = dense_layer_fwd(x_in, mask, lp, heads)          # [B, S, G]
        slab = jax.lax.dynamic_update_slice(slab, y, (0, 0, off))
        off += G
    return slab                                             # == cat(concat_layers)


# --------------------------------------------------------------------------
# Deterministic parameter init (matches the PyTorch module's structure)
# --------------------------------------------------------------------------
def init_params(key, d_model, d_base, growth_rate, num_layers, d_ff):
    def lin(key, din, dout):
        kw, kb = jax.random.split(key)
        w = jax.random.normal(kw, (din, dout), jnp.float32) * 0.05
        b = jax.random.normal(kb, (dout,), jnp.float32) * 0.01
        return w, b

    layers = []
    for i in range(num_layers):
        key, *ks = jax.random.split(key, 9)
        pre_w, pre_b = lin(ks[0], d_model + growth_rate * i, d_base)
        wq, bq = lin(ks[1], d_base, d_base)
        wk, bk = lin(ks[2], d_base, d_base)
        wv, bv = lin(ks[3], d_base, d_base)
        wo, bo = lin(ks[4], d_base, d_base)
        w1, b1 = lin(ks[5], d_base, d_ff)
        w2, b2 = lin(ks[6], d_ff, d_base)
        post_w, post_b = lin(ks[7], d_base, growth_rate)
        layers.append({
            "pre_w": pre_w, "pre_b": pre_b,
            "enc": {
                "ln_g": jnp.ones((d_base,), jnp.float32),
                "ln_b": jnp.zeros((d_base,), jnp.float32),
                "wq": wq, "bq": bq, "wk": wk, "bk": bk,
                "wv": wv, "bv": bv, "wo": wo, "bo": bo,
                "ffn": {
                    "ln_g": jnp.ones((d_base,), jnp.float32),
                    "ln_b": jnp.zeros((d_base,), jnp.float32),
                    "w1": w1, "b1": b1, "w2": w2, "b2": b2,
                },
            },
            "post": {
                "w": post_w, "b": post_b,
                "ln_g": jnp.ones((growth_rate,), jnp.float32),
                "ln_b": jnp.zeros((growth_rate,), jnp.float32),
            },
        })
    return {"layers": layers}


# --------------------------------------------------------------------------
if __name__ == "__main__":
    d_model, d_base, growth_rate, num_layers = 32, 32, 16, 2
    heads, d_ff = 4, 64
    batch, seq = 2, 8

    key = jax.random.PRNGKey(0)
    kx, kp = jax.random.split(key)
    inputs = jax.random.normal(kx, (batch, seq, d_model), jnp.float32)
    # mask: (batch, 1, src_len); 1 == padded position. Mask the last position
    # of the second sequence to exercise the masking path.
    mask = jnp.zeros((batch, 1, seq), jnp.int32).at[1, 0, seq - 1].set(1)

    params = init_params(kp, d_model, d_base, growth_rate, num_layers, d_ff)

    fwd = jax.jit(functools.partial(transformer_dense_block_fwd, heads=heads))
    out = jax.block_until_ready(fwd(inputs, mask, params))

    expected = (batch, seq, d_model + growth_rate * num_layers)
    assert out.shape == expected, (out.shape, expected)
    assert bool(jnp.all(jnp.isfinite(out)))
    print("KERNEL_OK")
</pallas_src>

<mosaic_0001>
module attributes {stable_mosaic.version = 11 : i64} {
  func.func @_dense_layer_kernel(%arg0: i32, %arg1: memref<1x8x32xf32, #tpu.memory_space<vmem>>, %arg2: memref<1x1x8xi32, #tpu.memory_space<vmem>>, %arg3: memref<32x32xbf16, #tpu.memory_space<vmem>>, %arg4: memref<1x32xf32, #tpu.memory_space<vmem>>, %arg5: memref<1x32xf32, #tpu.memory_space<vmem>>, %arg6: memref<1x32xf32, #tpu.memory_space<vmem>>, %arg7: memref<32x96xbf16, #tpu.memory_space<vmem>>, %arg8: memref<1x96xf32, #tpu.memory_space<vmem>>, %arg9: memref<32x32xbf16, #tpu.memory_space<vmem>>, %arg10: memref<1x32xf32, #tpu.memory_space<vmem>>, %arg11: memref<1x32xf32, #tpu.memory_space<vmem>>, %arg12: memref<1x32xf32, #tpu.memory_space<vmem>>, %arg13: memref<32x64xbf16, #tpu.memory_space<vmem>>, %arg14: memref<1x64xf32, #tpu.memory_space<vmem>>, %arg15: memref<64x32xbf16, #tpu.memory_space<vmem>>, %arg16: memref<1x32xf32, #tpu.memory_space<vmem>>, %arg17: memref<32x16xbf16, #tpu.memory_space<vmem>>, %arg18: memref<1x16xf32, #tpu.memory_space<vmem>>, %arg19: memref<1x16xf32, #tpu.memory_space<vmem>>, %arg20: memref<1x16xf32, #tpu.memory_space<vmem>>, %arg21: memref<1x8x128xf32, #tpu.memory_space<vmem>>, %arg22: memref<8x32xbf16, #tpu.memory_space<vmem>>) attributes {dimension_semantics = [#tpu.dimension_semantics<parallel>], iteration_bounds = array<i64: 2>, scalar_prefetch = 0 : i64, scratch_operands = 1 : i64, tpu.core_type = #tpu.core_type<tc>, window_params = [{transform_indices = @transform_0, window_bounds = array<i64: 1, 8, 32>}, {transform_indices = @transform_1, window_bounds = array<i64: 1, 1, 8>}, {pipeline_mode = #tpu.pipeline_mode<synchronous>, transform_indices = @transform_2, window_bounds = array<i64: 32, 32>}, {pipeline_mode = #tpu.pipeline_mode<synchronous>, transform_indices = @transform_3, window_bounds = array<i64: 1, 32>}, {pipeline_mode = #tpu.pipeline_mode<synchronous>, transform_indices = @transform_4, window_bounds = array<i64: 1, 32>}, {pipeline_mode = #tpu.pipeline_mode<synchronous>, transform_indices = @transform_5, window_bounds = array<i64: 1, 32>}, {pipeline_mode = #tpu.pipeline_mode<synchronous>, transform_indices = @transform_6, window_bounds = array<i64: 32, 96>}, {pipeline_mode = #tpu.pipeline_mode<synchronous>, transform_indices = @transform_7, window_bounds = array<i64: 1, 96>}, {pipeline_mode = #tpu.pipeline_mode<synchronous>, transform_indices = @transform_8, window_bounds = array<i64: 32, 32>}, {pipeline_mode = #tpu.pipeline_mode<synchronous>, transform_indices = @transform_9, window_bounds = array<i64: 1, 32>}, {pipeline_mode = #tpu.pipeline_mode<synchronous>, transform_indices = @transform_10, window_bounds = array<i64: 1, 32>}, {pipeline_mode = #tpu.pipeline_mode<synchronous>, transform_indices = @transform_11, window_bounds = array<i64: 1, 32>}, {pipeline_mode = #tpu.pipeline_mode<synchronous>, transform_indices = @transform_12, window_bounds = array<i64: 32, 64>}, {pipeline_mode = #tpu.pipeline_mode<synchronous>, transform_indices = @transform_13, window_bounds = array<i64: 1, 64>}, {pipeline_mode = #tpu.pipeline_mode<synchronous>, transform_indices = @transform_14, window_bounds = array<i64: 64, 32>}, {pipeline_mode = #tpu.pipeline_mode<synchronous>, transform_indices = @transform_15, window_bounds = array<i64: 1, 32>}, {pipeline_mode = #tpu.pipeline_mode<synchronous>, transform_indices = @transform_16, window_bounds = array<i64: 32, 16>}, {pipeline_mode = #tpu.pipeline_mode<synchronous>, transform_indices = @transform_17, window_bounds = array<i64: 1, 16>}, {pipeline_mode = #tpu.pipeline_mode<synchronous>, transform_indices = @transform_18, window_bounds = array<i64: 1, 16>}, {pipeline_mode = #tpu.pipeline_mode<synchronous>, transform_indices = @transform_19, window_bounds = array<i64: 1, 16>}, {transform_indices = @transform_20, window_bounds = array<i64: 1, 8, 128>}]} {
    %c0 = arith.constant 0 : index
    %c0_0 = arith.constant 0 : index
    %c0_1 = arith.constant 0 : index
    %0 = vector.load %arg1[%c0, %c0_0, %c0_1] : memref<1x8x32xf32, #tpu.memory_space<vmem>>, vector<1x8x32xf32>
    %1 = vector.shape_cast %0 : vector<1x8x32xf32> to vector<8x32xf32>
    %2 = arith.truncf %1 : vector<8x32xf32> to vector<8x32xbf16>
    %c0_2 = arith.constant 0 : index
    %c0_3 = arith.constant 0 : index
    %3 = vector.load %arg3[%c0_2, %c0_3] : memref<32x32xbf16, #tpu.memory_space<vmem>>, vector<32x32xbf16>
    %cst = arith.constant dense<0.000000e+00> : vector<8x32xf32>
    %4 = tpu.matmul %2, %3, %cst {dimension_numbers = #tpu.dot_dimension_numbers<[1], [0], [0], [1], [0, 0, 1, 1], [], []>} : vector<8x32xbf16>, vector<32x32xbf16>, vector<8x32xf32> -> vector<8x32xf32>
    %c0_4 = arith.constant 0 : index
    %c0_5 = arith.constant 0 : index
    %5 = vector.load %arg4[%c0_4, %c0_5] : memref<1x32xf32, #tpu.memory_space<vmem>>, vector<1x32xf32>
    %6 = vector.broadcast %5 : vector<1x32xf32> to vector<8x32xf32>
    %7 = arith.addf %4, %6 : vector<8x32xf32>
    %cst_6 = arith.constant dense<0.000000e+00> : vector<8xf32>
    %8 = vector.multi_reduction <add>, %7, %cst_6 [1] : vector<8x32xf32> to vector<8xf32>
    %9 = vector.shape_cast %8 : vector<8xf32> to vector<8x1xf32>
    %cst_7 = arith.constant 3.200000e+01 : f32
    %10 = vector.broadcast %cst_7 : f32 to vector<8x1xf32>
    %11 = arith.divf %9, %10 : vector<8x1xf32>
    %12 = vector.broadcast %11 : vector<8x1xf32> to vector<8x32xf32>
    %13 = arith.subf %7, %12 : vector<8x32xf32>
    %14 = arith.mulf %13, %13 : vector<8x32xf32>
    %cst_8 = arith.constant dense<0.000000e+00> : vector<8xf32>
    %15 = vector.multi_reduction <add>, %14, %cst_8 [1] : vector<8x32xf32> to vector<8xf32>
    %16 = vector.shape_cast %15 : vector<8xf32> to vector<8x1xf32>
    %cst_9 = arith.constant 3.200000e+01 : f32
    %17 = vector.broadcast %cst_9 : f32 to vector<8x1xf32>
    %18 = arith.divf %16, %17 : vector<8x1xf32>
    %19 = vector.broadcast %11 : vector<8x1xf32> to vector<8x32xf32>
    %20 = arith.subf %7, %19 : vector<8x32xf32>
    %cst_10 = arith.constant 9.99999997E-7 : f32
    %21 = vector.broadcast %cst_10 : f32 to vector<8x1xf32>
    %22 = arith.addf %18, %21 : vector<8x1xf32>
    %23 = math.rsqrt %22 : vector<8x1xf32>
    %24 = vector.broadcast %23 : vector<8x1xf32> to vector<8x32xf32>
    %25 = arith.mulf %20, %24 : vector<8x32xf32>
    %c0_11 = arith.constant 0 : index
    %c0_12 = arith.constant 0 : index
    %26 = vector.load %arg5[%c0_11, %c0_12] : memref<1x32xf32, #tpu.memory_space<vmem>>, vector<1x32xf32>
    %27 = vector.broadcast %26 : vector<1x32xf32> to vector<8x32xf32>
    %28 = arith.mulf %25, %27 : vector<8x32xf32>
    %c0_13 = arith.constant 0 : index
    %c0_14 = arith.constant 0 : index
    %29 = vector.load %arg6[%c0_13, %c0_14] : memref<1x32xf32, #tpu.memory_space<vmem>>, vector<1x32xf32>
    %30 = vector.broadcast %29 : vector<1x32xf32> to vector<8x32xf32>
    %31 = arith.addf %28, %30 : vector<8x32xf32>
    %32 = arith.truncf %31 : vector<8x32xf32> to vector<8x32xbf16>
    %c0_15 = arith.constant 0 : index
    %c0_16 = arith.constant 0 : index
    %33 = vector.load %arg7[%c0_15, %c0_16] : memref<32x96xbf16, #tpu.memory_space<vmem>>, vector<32x96xbf16>
    %cst_17 = arith.constant dense<0.000000e+00> : vector<8x96xf32>
    %34 = tpu.matmul %32, %33, %cst_17 {dimension_numbers = #tpu.dot_dimension_numbers<[1], [0], [0], [1], [0, 0, 1, 1], [], []>} : vector<8x32xbf16>, vector<32x96xbf16>, vector<8x96xf32> -> vector<8x96xf32>
    %c0_18 = arith.constant 0 : index
    %c0_19 = arith.constant 0 : index
    %35 = vector.load %arg8[%c0_18, %c0_19] : memref<1x96xf32, #tpu.memory_space<vmem>>, vector<1x96xf32>
    %36 = vector.broadcast %35 : vector<1x96xf32> to vector<8x96xf32>
    %37 = arith.addf %34, %36 : vector<8x96xf32>
    %38 = arith.truncf %37 : vector<8x96xf32> to vector<8x96xbf16>
    %c0_20 = arith.constant 0 : index
    %c0_21 = arith.constant 0 : index
    %c0_22 = arith.constant 0 : index
    %39 = vector.load %arg2[%c0_20, %c0_21, %c0_22] : memref<1x1x8xi32, #tpu.memory_space<vmem>>, vector<1x1x8xi32>
    %40 = vector.shape_cast %39 : vector<1x1x8xi32> to vector<1x8xi32>
    %c0_i32 = arith.constant 0 : i32
    %41 = vector.broadcast %c0_i32 : i32 to vector<1x8xi32>
    %42 = arith.cmpi ne, %40, %41 : vector<1x8xi32>
    %cst_23 = arith.constant -9.99999984E+17 : f32
    %cst_24 = arith.constant 0.000000e+00 : f32
    %43 = vector.broadcast %cst_23 : f32 to vector<1x8xf32>
    %44 = vector.broadcast %cst_24 : f32 to vector<1x8xf32>
    %45 = arith.select %42, %43, %44 : vector<1x8xi1>, vector<1x8xf32>
    %46 = vector.extract_strided_slice %38 {offsets = [0, 0], sizes = [8, 8], strides = [1, 1]} : vector<8x96xbf16> to vector<8x8xbf16>
    %47 = vector.extract_strided_slice %38 {offsets = [0, 32], sizes = [8, 8], strides = [1, 1]} : vector<8x96xbf16> to vector<8x8xbf16>
    %48 = vector.extract_strided_slice %38 {offsets = [0, 64], sizes = [8, 8], strides = [1, 1]} : vector<8x96xbf16> to vector<8x8xbf16>
    %cst_25 = arith.constant dense<0.000000e+00> : vector<8x8xf32>
    %49 = tpu.matmul %46, %47, %cst_25 {dimension_numbers = #tpu.dot_dimension_numbers<[1], [1], [0], [0], [0, 0, 1, 0], [], []>} : vector<8x8xbf16>, vector<8x8xbf16>, vector<8x8xf32> -> vector<8x8xf32>
    %50 = vector.broadcast %45 : vector<1x8xf32> to vector<8x8xf32>
    %51 = arith.addf %49, %50 : vector<8x8xf32>
    %cst_26 = arith.constant dense<0xFF800000> : vector<8xf32>
    %52 = vector.multi_reduction <maximumf>, %51, %cst_26 [1] : vector<8x8xf32> to vector<8xf32>
    %53 = vector.shape_cast %52 : vector<8xf32> to vector<8x1xf32>
    %54 = vector.broadcast %53 : vector<8x1xf32> to vector<8x8xf32>
    %55 = arith.subf %51, %54 : vector<8x8xf32>
    %56 = math.exp %55 : vector<8x8xf32>
    %cst_27 = arith.constant dense<0.000000e+00> : vector<8xf32>
    %57 = vector.multi_reduction <add>, %56, %cst_27 [1] : vector<8x8xf32> to vector<8xf32>
    %58 = vector.shape_cast %57 : vector<8xf32> to vector<8x1xf32>
    %59 = arith.truncf %56 : vector<8x8xf32> to vector<8x8xbf16>
    %cst_28 = arith.constant dense<0.000000e+00> : vector<8x8xf32>
    %60 = tpu.matmul %59, %48, %cst_28 {dimension_numbers = #tpu.dot_dimension_numbers<[1], [0], [0], [1], [0, 0, 1, 1], [], []>} : vector<8x8xbf16>, vector<8x8xbf16>, vector<8x8xf32> -> vector<8x8xf32>
    %61 = tpu.reciprocal %58 {approx = true} : vector<8x1xf32> -> vector<8x1xf32>
    %62 = vector.broadcast %61 : vector<8x1xf32> to vector<8x8xf32>
    %63 = arith.mulf %60, %62 : vector<8x8xf32>
    %64 = arith.truncf %63 : vector<8x8xf32> to vector<8x8xbf16>
    %c0_29 = arith.constant 0 : index
    %c0_30 = arith.constant 0 : index
    %65 = vector.load %arg22[%c0_29, %c0_30] : memref<8x32xbf16, #tpu.memory_space<vmem>>, vector<8x8xbf16>
    tpu.vector_store %arg22[%c0_29, %c0_30], %64 {strides = array<i32>} : memref<8x32xbf16, #tpu.memory_space<vmem>>, vector<8x8xbf16>,
    %66 = vector.extract_strided_slice %38 {offsets = [0, 8], sizes = [8, 8], strides = [1, 1]} : vector<8x96xbf16> to vector<8x8xbf16>
    %67 = vector.extract_strided_slice %38 {offsets = [0, 40], sizes = [8, 8], strides = [1, 1]} : vector<8x96xbf16> to vector<8x8xbf16>
    %68 = vector.extract_strided_slice %38 {offsets = [0, 72], sizes = [8, 8], strides = [1, 1]} : vector<8x96xbf16> to vector<8x8xbf16>
    %cst_31 = arith.constant dense<0.000000e+00> : vector<8x8xf32>
    %69 = tpu.matmul %66, %67, %cst_31 {dimension_numbers = #tpu.dot_dimension_numbers<[1], [1], [0], [0], [0, 0, 1, 0], [], []>} : vector<8x8xbf16>, vector<8x8xbf16>, vector<8x8xf32> -> vector<8x8xf32>
    %70 = vector.broadcast %45 : vector<1x8xf32> to vector<8x8xf32>
    %71 = arith.addf %69, %70 : vector<8x8xf32>
    %cst_32 = arith.constant dense<0xFF800000> : vector<8xf32>
    %72 = vector.multi_reduction <maximumf>, %71, %cst_32 [1] : vector<8x8xf32> to vector<8xf32>
    %73 = vector.shape_cast %72 : vector<8xf32> to vector<8x1xf32>
    %74 = vector.broadcast %73 : vector<8x1xf32> to vector<8x8xf32>
    %75 = arith.subf %71, %74 : vector<8x8xf32>
    %76 = math.exp %75 : vector<8x8xf32>
    %cst_33 = arith.constant dense<0.000000e+00> : vector<8xf32>
    %77 = vector.multi_reduction <add>, %76, %cst_33 [1] : vector<8x8xf32> to vector<8xf32>
    %78 = vector.shape_cast %77 : vector<8xf32> to vector<8x1xf32>
    %79 = arith.truncf %76 : vector<8x8xf32> to vector<8x8xbf16>
    %cst_34 = arith.constant dense<0.000000e+00> : vector<8x8xf32>
    %80 = tpu.matmul %79, %68, %cst_34 {dimension_numbers = #tpu.dot_dimension_numbers<[1], [0], [0], [1], [0, 0, 1, 1], [], []>} : vector<8x8xbf16>, vector<8x8xbf16>, vector<8x8xf32> -> vector<8x8xf32>
    %81 = tpu.reciprocal %78 {approx = true} : vector<8x1xf32> -> vector<8x1xf32>
    %82 = vector.broadcast %81 : vector<8x1xf32> to vector<8x8xf32>
    %83 = arith.mulf %80, %82 : vector<8x8xf32>
    %84 = arith.truncf %83 : vector<8x8xf32> to vector<8x8xbf16>
    %c0_35 = arith.constant 0 : index
    %c8 = arith.constant 8 : index
    %85 = vector.load %arg22[%c0_35, %c8] : memref<8x32xbf16, #tpu.memory_space<vmem>>, vector<8x8xbf16>
    tpu.vector_store %arg22[%c0_35, %c8], %84 {strides = array<i32>} : memref<8x32xbf16, #tpu.memory_space<vmem>>, vector<8x8xbf16>,
    %86 = vector.extract_strided_slice %38 {offsets = [0, 16], sizes = [8, 8], strides = [1, 1]} : vector<8x96xbf16> to vector<8x8xbf16>
    %87 = vector.extract_strided_slice %38 {offsets = [0, 48], sizes = [8, 8], strides = [1, 1]} : vector<8x96xbf16> to vector<8x8xbf16>
    %88 = vector.extract_strided_slice %38 {offsets = [0, 80], sizes = [8, 8], strides = [1, 1]} : vector<8x96xbf16> to vector<8x8xbf16>
    %cst_36 = arith.constant dense<0.000000e+00> : vector<8x8xf32>
    %89 = tpu.matmul %86, %87, %cst_36 {dimension_numbers = #tpu.dot_dimension_numbers<[1], [1], [0], [0], [0, 0, 1, 0], [], []>} : vector<8x8xbf16>, vector<8x8xbf16>, vector<8x8xf32> -> vector<8x8xf32>
    %90 = vector.broadcast %45 : vector<1x8xf32> to vector<8x8xf32>
    %91 = arith.addf %89, %90 : vector<8x8xf32>
    %cst_37 = arith.constant dense<0xFF800000> : vector<8xf32>
    %92 = vector.multi_reduction <maximumf>, %91, %cst_37 [1] : vector<8x8xf32> to vector<8xf32>
    %93 = vector.shape_cast %92 : vector<8xf32> to vector<8x1xf32>
    %94 = vector.broadcast %93 : vector<8x1xf32> to vector<8x8xf32>
    %95 = arith.subf %91, %94 : vector<8x8xf32>
    %96 = math.exp %95 : vector<8x8xf32>
    %cst_38 = arith.constant dense<0.000000e+00> : vector<8xf32>
    %97 = vector.multi_reduction <add>, %96, %cst_38 [1] : vector<8x8xf32> to vector<8xf32>
    %98 = vector.shape_cast %97 : vector<8xf32> to vector<8x1xf32>
    %99 = arith.truncf %96 : vector<8x8xf32> to vector<8x8xbf16>
    %cst_39 = arith.constant dense<0.000000e+00> : vector<8x8xf32>
    %100 = tpu.matmul %99, %88, %cst_39 {dimension_numbers = #tpu.dot_dimension_numbers<[1], [0], [0], [1], [0, 0, 1, 1], [], []>} : vector<8x8xbf16>, vector<8x8xbf16>, vector<8x8xf32> -> vector<8x8xf32>
    %101 = tpu.reciprocal %98 {approx = true} : vector<8x1xf32> -> vector<8x1xf32>
    %102 = vector.broadcast %101 : vector<8x1xf32> to vector<8x8xf32>
    %103 = arith.mulf %100, %102 : vector<8x8xf32>
    %104 = arith.truncf %103 : vector<8x8xf32> to vector<8x8xbf16>
    %c0_40 = arith.constant 0 : index
    %c16 = arith.constant 16 : index
    %105 = vector.load %arg22[%c0_40, %c16] : memref<8x32xbf16, #tpu.memory_space<vmem>>, vector<8x8xbf16>
    tpu.vector_store %arg22[%c0_40, %c16], %104 {strides = array<i32>} : memref<8x32xbf16, #tpu.memory_space<vmem>>, vector<8x8xbf16>,
    %106 = vector.extract_strided_slice %38 {offsets = [0, 24], sizes = [8, 8], strides = [1, 1]} : vector<8x96xbf16> to vector<8x8xbf16>
    %107 = vector.extract_strided_slice %38 {offsets = [0, 56], sizes = [8, 8], strides = [1, 1]} : vector<8x96xbf16> to vector<8x8xbf16>
    %108 = vector.extract_strided_slice %38 {offsets = [0, 88], sizes = [8, 8], strides = [1, 1]} : vector<8x96xbf16> to vector<8x8xbf16>
    %cst_41 = arith.constant dense<0.000000e+00> : vector<8x8xf32>
    %109 = tpu.matmul %106, %107, %cst_41 {dimension_numbers = #tpu.dot_dimension_numbers<[1], [1], [0], [0], [0, 0, 1, 0], [], []>} : vector<8x8xbf16>, vector<8x8xbf16>, vector<8x8xf32> -> vector<8x8xf32>
    %110 = vector.broadcast %45 : vector<1x8xf32> to vector<8x8xf32>
    %111 = arith.addf %109, %110 : vector<8x8xf32>
    %cst_42 = arith.constant dense<0xFF800000> : vector<8xf32>
    %112 = vector.multi_reduction <maximumf>, %111, %cst_42 [1] : vector<8x8xf32> to vector<8xf32>
    %113 = vector.shape_cast %112 : vector<8xf32> to vector<8x1xf32>
    %114 = vector.broadcast %113 : vector<8x1xf32> to vector<8x8xf32>
    %115 = arith.subf %111, %114 : vector<8x8xf32>
    %116 = math.exp %115 : vector<8x8xf32>
    %cst_43 = arith.constant dense<0.000000e+00> : vector<8xf32>
    %117 = vector.multi_reduction <add>, %116, %cst_43 [1] : vector<8x8xf32> to vector<8xf32>
    %118 = vector.shape_cast %117 : vector<8xf32> to vector<8x1xf32>
    %119 = arith.truncf %116 : vector<8x8xf32> to vector<8x8xbf16>
    %cst_44 = arith.constant dense<0.000000e+00> : vector<8x8xf32>
    %120 = tpu.matmul %119, %108, %cst_44 {dimension_numbers = #tpu.dot_dimension_numbers<[1], [0], [0], [1], [0, 0, 1, 1], [], []>} : vector<8x8xbf16>, vector<8x8xbf16>, vector<8x8xf32> -> vector<8x8xf32>
    %121 = tpu.reciprocal %118 {approx = true} : vector<8x1xf32> -> vector<8x1xf32>
    %122 = vector.broadcast %121 : vector<8x1xf32> to vector<8x8xf32>
    %123 = arith.mulf %120, %122 : vector<8x8xf32>
    %124 = arith.truncf %123 : vector<8x8xf32> to vector<8x8xbf16>
    %c0_45 = arith.constant 0 : index
    %c24 = arith.constant 24 : index
    %125 = vector.load %arg22[%c0_45, %c24] : memref<8x32xbf16, #tpu.memory_space<vmem>>, vector<8x8xbf16>
    tpu.vector_store %arg22[%c0_45, %c24], %124 {strides = array<i32>} : memref<8x32xbf16, #tpu.memory_space<vmem>>, vector<8x8xbf16>,
    %c0_46 = arith.constant 0 : index
    %c0_47 = arith.constant 0 : index
    %126 = vector.load %arg22[%c0_46, %c0_47] : memref<8x32xbf16, #tpu.memory_space<vmem>>, vector<8x32xbf16>
    %c0_48 = arith.constant 0 : index
    %c0_49 = arith.constant 0 : index
    %127 = vector.load %arg9[%c0_48, %c0_49] : memref<32x32xbf16, #tpu.memory_space<vmem>>, vector<32x32xbf16>
    %cst_50 = arith.constant dense<0.000000e+00> : vector<8x32xf32>
    %128 = tpu.matmul %126, %127, %cst_50 {dimension_numbers = #tpu.dot_dimension_numbers<[1], [0], [0], [1], [0, 0, 1, 1], [], []>} : vector<8x32xbf16>, vector<32x32xbf16>, vector<8x32xf32> -> vector<8x32xf32>
    %c0_51 = arith.constant 0 : index
    %c0_52 = arith.constant 0 : index
    %129 = vector.load %arg10[%c0_51, %c0_52] : memref<1x32xf32, #tpu.memory_space<vmem>>, vector<1x32xf32>
    %130 = vector.broadcast %129 : vector<1x32xf32> to vector<8x32xf32>
    %131 = arith.addf %128, %130 : vector<8x32xf32>
    %132 = arith.addf %131, %7 : vector<8x32xf32>
    %cst_53 = arith.constant dense<0.000000e+00> : vector<8xf32>
    %133 = vector.multi_reduction <add>, %132, %cst_53 [1] : vector<8x32xf32> to vector<8xf32>
    %134 = vector.shape_cast %133 : vector<8xf32> to vector<8x1xf32>
    %cst_54 = arith.constant 3.200000e+01 : f32
    %135 = vector.broadcast %cst_54 : f32 to vector<8x1xf32>
    %136 = arith.divf %134, %135 : vector<8x1xf32>
    %137 = vector.broadcast %136 : vector<8x1xf32> to vector<8x32xf32>
    %138 = arith.subf %132, %137 : vector<8x32xf32>
    %139 = arith.mulf %138, %138 : vector<8x32xf32>
    %cst_55 = arith.constant dense<0.000000e+00> : vector<8xf32>
    %140 = vector.multi_reduction <add>, %139, %cst_55 [1] : vector<8x32xf32> to vector<8xf32>
    %141 = vector.shape_cast %140 : vector<8xf32> to vector<8x1xf32>
    %cst_56 = arith.constant 3.200000e+01 : f32
    %142 = vector.broadcast %cst_56 : f32 to vector<8x1xf32>
    %143 = arith.divf %141, %142 : vector<8x1xf32>
    %144 = vector.broadcast %136 : vector<8x1xf32> to vector<8x32xf32>
    %145 = arith.subf %132, %144 : vector<8x32xf32>
    %cst_57 = arith.constant 9.99999997E-7 : f32
    %146 = vector.broadcast %cst_57 : f32 to vector<8x1xf32>
    %147 = arith.addf %143, %146 : vector<8x1xf32>
    %148 = math.rsqrt %147 : vector<8x1xf32>
    %149 = vector.broadcast %148 : vector<8x1xf32> to vector<8x32xf32>
    %150 = arith.mulf %145, %149 : vector<8x32xf32>
    %c0_58 = arith.constant 0 : index
    %c0_59 = arith.constant 0 : index
    %151 = vector.load %arg11[%c0_58, %c0_59] : memref<1x32xf32, #tpu.memory_space<vmem>>, vector<1x32xf32>
    %152 = vector.broadcast %151 : vector<1x32xf32> to vector<8x32xf32>
    %153 = arith.mulf %150, %152 : vector<8x32xf32>
    %c0_60 = arith.constant 0 : index
    %c0_61 = arith.constant 0 : index
    %154 = vector.load %arg12[%c0_60, %c0_61] : memref<1x32xf32, #tpu.memory_space<vmem>>, vector<1x32xf32>
    %155 = vector.broadcast %154 : vector<1x32xf32> to vector<8x32xf32>
    %156 = arith.addf %153, %155 : vector<8x32xf32>
    %157 = arith.truncf %156 : vector<8x32xf32> to vector<8x32xbf16>
    %c0_62 = arith.constant 0 : index
    %c0_63 = arith.constant 0 : index
    %158 = vector.load %arg13[%c0_62, %c0_63] : memref<32x64xbf16, #tpu.memory_space<vmem>>, vector<32x64xbf16>
    %cst_64 = arith.constant dense<0.000000e+00> : vector<8x64xf32>
    %159 = tpu.matmul %157, %158, %cst_64 {dimension_numbers = #tpu.dot_dimension_numbers<[1], [0], [0], [1], [0, 0, 1, 1], [], []>} : vector<8x32xbf16>, vector<32x64xbf16>, vector<8x64xf32> -> vector<8x64xf32>
    %c0_65 = arith.constant 0 : index
    %c0_66 = arith.constant 0 : index
    %160 = vector.load %arg14[%c0_65, %c0_66] : memref<1x64xf32, #tpu.memory_space<vmem>>, vector<1x64xf32>
    %161 = vector.broadcast %160 : vector<1x64xf32> to vector<8x64xf32>
    %162 = arith.addf %159, %161 : vector<8x64xf32>
    %cst_67 = arith.constant 0.000000e+00 : f32
    %163 = vector.broadcast %cst_67 : f32 to vector<8x64xf32>
    %164 = arith.maximumf %162, %163 : vector<8x64xf32>
    %165 = arith.truncf %164 : vector<8x64xf32> to vector<8x64xbf16>
    %c0_68 = arith.constant 0 : index
    %c0_69 = arith.constant 0 : index
    %166 = vector.load %arg15[%c0_68, %c0_69] : memref<64x32xbf16, #tpu.memory_space<vmem>>, vector<64x32xbf16>
    %cst_70 = arith.constant dense<0.000000e+00> : vector<8x32xf32>
    %167 = tpu.matmul %165, %166, %cst_70 {dimension_numbers = #tpu.dot_dimension_numbers<[1], [0], [0], [1], [0, 0, 1, 1], [], []>} : vector<8x64xbf16>, vector<64x32xbf16>, vector<8x32xf32> -> vector<8x32xf32>
    %c0_71 = arith.constant 0 : index
    %c0_72 = arith.constant 0 : index
    %168 = vector.load %arg16[%c0_71, %c0_72] : memref<1x32xf32, #tpu.memory_space<vmem>>, vector<1x32xf32>
    %169 = vector.broadcast %168 : vector<1x32xf32> to vector<8x32xf32>
    %170 = arith.addf %167, %169 : vector<8x32xf32>
    %171 = arith.addf %170, %132 : vector<8x32xf32>
    %172 = arith.truncf %171 : vector<8x32xf32> to vector<8x32xbf16>
    %c0_73 = arith.constant 0 : index
    %c0_74 = arith.constant 0 : index
    %173 = vector.load %arg17[%c0_73, %c0_74] : memref<32x16xbf16, #tpu.memory_space<vmem>>, vector<32x16xbf16>
    %cst_75 = arith.constant dense<0.000000e+00> : vector<8x16xf32>
    %174 = tpu.matmul %172, %173, %cst_75 {dimension_numbers = #tpu.dot_dimension_numbers<[1], [0], [0], [1], [0, 0, 1, 1], [], []>} : vector<8x32xbf16>, vector<32x16xbf16>, vector<8x16xf32> -> vector<8x16xf32>
    %c0_76 = arith.constant 0 : index
    %c0_77 = arith.constant 0 : index
    %175 = vector.load %arg18[%c0_76, %c0_77] : memref<1x16xf32, #tpu.memory_space<vmem>>, vector<1x16xf32>
    %176 = vector.broadcast %175 : vector<1x16xf32> to vector<8x16xf32>
    %177 = arith.addf %174, %176 : vector<8x16xf32>
    %cst_78 = arith.constant dense<0.000000e+00> : vector<8xf32>
    %178 = vector.multi_reduction <add>, %177, %cst_78 [1] : vector<8x16xf32> to vector<8xf32>
    %179 = vector.shape_cast %178 : vector<8xf32> to vector<8x1xf32>
    %cst_79 = arith.constant 1.600000e+01 : f32
    %180 = vector.broadcast %cst_79 : f32 to vector<8x1xf32>
    %181 = arith.divf %179, %180 : vector<8x1xf32>
    %182 = vector.broadcast %181 : vector<8x1xf32> to vector<8x16xf32>
    %183 = arith.subf %177, %182 : vector<8x16xf32>
    %184 = arith.mulf %183, %183 : vector<8x16xf32>
    %cst_80 = arith.constant dense<0.000000e+00> : vector<8xf32>
    %185 = vector.multi_reduction <add>, %184, %cst_80 [1] : vector<8x16xf32> to vector<8xf32>
    %186 = vector.shape_cast %185 : vector<8xf32> to vector<8x1xf32>
    %cst_81 = arith.constant 1.600000e+01 : f32
    %187 = vector.broadcast %cst_81 : f32 to vector<8x1xf32>
    %188 = arith.divf %186, %187 : vector<8x1xf32>
    %189 = vector.broadcast %181 : vector<8x1xf32> to vector<8x16xf32>
    %190 = arith.subf %177, %189 : vector<8x16xf32>
    %cst_82 = arith.constant 9.99999997E-7 : f32
    %191 = vector.broadcast %cst_82 : f32 to vector<8x1xf32>
    %192 = arith.addf %188, %191 : vector<8x1xf32>
    %193 = math.rsqrt %192 : vector<8x1xf32>
    %194 = vector.broadcast %193 : vector<8x1xf32> to vector<8x16xf32>
    %195 = arith.mulf %190, %194 : vector<8x16xf32>
    %c0_83 = arith.constant 0 : index
    %c0_84 = arith.constant 0 : index
    %196 = vector.load %arg19[%c0_83, %c0_84] : memref<1x16xf32, #tpu.memory_space<vmem>>, vector<1x16xf32>
    %197 = vector.broadcast %196 : vector<1x16xf32> to vector<8x16xf32>
    %198 = arith.mulf %195, %197 : vector<8x16xf32>
    %c0_85 = arith.constant 0 : index
    %c0_86 = arith.constant 0 : index
    %199 = vector.load %arg20[%c0_85, %c0_86] : memref<1x16xf32, #tpu.memory_space<vmem>>, vector<1x16xf32>
    %200 = vector.broadcast %199 : vector<1x16xf32> to vector<8x16xf32>
    %201 = arith.addf %198, %200 : vector<8x16xf32>
    %cst_87 = arith.constant 0.000000e+00 : f32
    %202 = vector.broadcast %cst_87 : f32 to vector<8x16xf32>
    %203 = arith.maximumf %201, %202 : vector<8x16xf32>
    %cst_88 = arith.constant 0.000000e+00 : f32
    %204 = vector.broadcast %cst_88 : f32 to vector<8x128xf32>
    %c0_89 = arith.constant 0 : index
    %c0_90 = arith.constant 0 : index
    %c0_91 = arith.constant 0 : index
    %205 = vector.load %arg21[%c0_89, %c0_90, %c0_91] : memref<1x8x128xf32, #tpu.memory_space<vmem>>, vector<1x8x128xf32>
    %206 = vector.shape_cast %205 : vector<1x8x128xf32> to vector<8x128xf32>
    %207 = vector.shape_cast %204 : vector<8x128xf32> to vector<1x8x128xf32>
    tpu.vector_store %arg21[%c0_89, %c0_90, %c0_91], %207 {strides = array<i32>} : memref<1x8x128xf32, #tpu.memory_space<vmem>>, vector<1x8x128xf32>,
    %c0_92 = arith.constant 0 : index
    %c0_93 = arith.constant 0 : index
    %c0_94 = arith.constant 0 : index
    %208 = vector.load %arg21[%c0_92, %c0_93, %c0_94] : memref<1x8x128xf32, #tpu.memory_space<vmem>>, vector<1x8x16xf32>
    %209 = vector.shape_cast %208 : vector<1x8x16xf32> to vector<8x16xf32>
    %210 = vector.shape_cast %203 : vector<8x16xf32> to vector<1x8x16xf32>
    tpu.vector_store %arg21[%c0_92, %c0_93, %c0_94], %210 {strides = array<i32>} : memref<1x8x128xf32, #tpu.memory_space<vmem>>, vector<1x8x16xf32>,
    return
  }
  func.func @transform_0(%arg0: i32) -> (i32, i32, i32) {
    %c0_i32 = arith.constant 0 : i32
    %c0_i32_0 = arith.constant 0 : i32
    %c0_i32_1 = arith.constant 0 : i32
    return %arg0, %c0_i32, %c0_i32_0 : i32, i32, i32
  }
  func.func @transform_1(%arg0: i32) -> (i32, i32, i32) {
    %c0_i32 = arith.constant 0 : i32
    %c0_i32_0 = arith.constant 0 : i32
    %c0_i32_1 = arith.constant 0 : i32
    return %arg0, %c0_i32, %c0_i32_0 : i32, i32, i32
  }
  func.func @transform_2(%arg0: i32) -> (i32, i32) {
    %c0_i32 = arith.constant 0 : i32
    %c0_i32_0 = arith.constant 0 : i32
    %c0_i32_1 = arith.constant 0 : i32
    return %c0_i32, %c0_i32_0 : i32, i32
  }
  func.func @transform_3(%arg0: i32) -> (i32, i32) {
    %c0_i32 = arith.constant 0 : i32
    %c0_i32_0 = arith.constant 0 : i32
    %c0_i32_1 = arith.constant 0 : i32
    return %c0_i32, %c0_i32_0 : i32, i32
  }
  func.func @transform_4(%arg0: i32) -> (i32, i32) {
    %c0_i32 = arith.constant 0 : i32
    %c0_i32_0 = arith.constant 0 : i32
    %c0_i32_1 = arith.constant 0 : i32
    return %c0_i32, %c0_i32_0 : i32, i32
  }
  func.func @transform_5(%arg0: i32) -> (i32, i32) {
    %c0_i32 = arith.constant 0 : i32
    %c0_i32_0 = arith.constant 0 : i32
    %c0_i32_1 = arith.constant 0 : i32
    return %c0_i32, %c0_i32_0 : i32, i32
  }
  func.func @transform_6(%arg0: i32) -> (i32, i32) {
    %c0_i32 = arith.constant 0 : i32
    %c0_i32_0 = arith.constant 0 : i32
    %c0_i32_1 = arith.constant 0 : i32
    return %c0_i32, %c0_i32_0 : i32, i32
  }
  func.func @transform_7(%arg0: i32) -> (i32, i32) {
    %c0_i32 = arith.constant 0 : i32
    %c0_i32_0 = arith.constant 0 : i32
    %c0_i32_1 = arith.constant 0 : i32
    return %c0_i32, %c0_i32_0 : i32, i32
  }
  func.func @transform_8(%arg0: i32) -> (i32, i32) {
    %c0_i32 = arith.constant 0 : i32
    %c0_i32_0 = arith.constant 0 : i32
    %c0_i32_1 = arith.constant 0 : i32
    return %c0_i32, %c0_i32_0 : i32, i32
  }
  func.func @transform_9(%arg0: i32) -> (i32, i32) {
    %c0_i32 = arith.constant 0 : i32
    %c0_i32_0 = arith.constant 0 : i32
    %c0_i32_1 = arith.constant 0 : i32
    return %c0_i32, %c0_i32_0 : i32, i32
  }
  func.func @transform_10(%arg0: i32) -> (i32, i32) {
    %c0_i32 = arith.constant 0 : i32
    %c0_i32_0 = arith.constant 0 : i32
    %c0_i32_1 = arith.constant 0 : i32
    return %c0_i32, %c0_i32_0 : i32, i32
  }
  func.func @transform_11(%arg0: i32) -> (i32, i32) {
    %c0_i32 = arith.constant 0 : i32
    %c0_i32_0 = arith.constant 0 : i32
    %c0_i32_1 = arith.constant 0 : i32
    return %c0_i32, %c0_i32_0 : i32, i32
  }
  func.func @transform_12(%arg0: i32) -> (i32, i32) {
    %c0_i32 = arith.constant 0 : i32
    %c0_i32_0 = arith.constant 0 : i32
    %c0_i32_1 = arith.constant 0 : i32
    return %c0_i32, %c0_i32_0 : i32, i32
  }
  func.func @transform_13(%arg0: i32) -> (i32, i32) {
    %c0_i32 = arith.constant 0 : i32
    %c0_i32_0 = arith.constant 0 : i32
    %c0_i32_1 = arith.constant 0 : i32
    return %c0_i32, %c0_i32_0 : i32, i32
  }
  func.func @transform_14(%arg0: i32) -> (i32, i32) {
    %c0_i32 = arith.constant 0 : i32
    %c0_i32_0 = arith.constant 0 : i32
    %c0_i32_1 = arith.constant 0 : i32
    return %c0_i32, %c0_i32_0 : i32, i32
  }
  func.func @transform_15(%arg0: i32) -> (i32, i32) {
    %c0_i32 = arith.constant 0 : i32
    %c0_i32_0 = arith.constant 0 : i32
    %c0_i32_1 = arith.constant 0 : i32
    return %c0_i32, %c0_i32_0 : i32, i32
  }
  func.func @transform_16(%arg0: i32) -> (i32, i32) {
    %c0_i32 = arith.constant 0 : i32
    %c0_i32_0 = arith.constant 0 : i32
    %c0_i32_1 = arith.constant 0 : i32
    return %c0_i32, %c0_i32_0 : i32, i32
  }
  func.func @transform_17(%arg0: i32) -> (i32, i32) {
    %c0_i32 = arith.constant 0 : i32
    %c0_i32_0 = arith.constant 0 : i32
    %c0_i32_1 = arith.constant 0 : i32
    return %c0_i32, %c0_i32_0 : i32, i32
  }
  func.func @transform_18(%arg0: i32) -> (i32, i32) {
    %c0_i32 = arith.constant 0 : i32
    %c0_i32_0 = arith.constant 0 : i32
    %c0_i32_1 = arith.constant 0 : i32
    return %c0_i32, %c0_i32_0 : i32, i32
  }
  func.func @transform_19(%arg0: i32) -> (i32, i32) {
    %c0_i32 = arith.constant 0 : i32
    %c0_i32_0 = arith.constant 0 : i32
    %c0_i32_1 = arith.constant 0 : i32
    return %c0_i32, %c0_i32_0 : i32, i32
  }
  func.func @transform_20(%arg0: i32) -> (i32, i32, i32) {
    %c0_i32 = arith.constant 0 : i32
    %c0_i32_0 = arith.constant 0 : i32
    %c0_i32_1 = arith.constant 0 : i32
    return %arg0, %c0_i32, %c0_i32_0 : i32, i32, i32
  }
}

module attributes {stable_mosaic.version = 11 : i64} {
  func.func @_dense_layer_kernel(%arg0: i32, %arg1: memref<1x8x48xf32, #tpu.memory_space<vmem>>, %arg2: memref<1x1x8xi32, #tpu.memory_space<vmem>>, %arg3: memref<48x32xbf16, #tpu.memory_space<vmem>>, %arg4: memref<1x32xf32, #tpu.memory_space<vmem>>, %arg5: memref<1x32xf32, #tpu.memory_space<vmem>>, %arg6: memref<1x32xf32, #tpu.memory_space<vmem>>, %arg7: memref<32x96xbf16, #tpu.memory_space<vmem>>, %arg8: memref<1x96xf32, #tpu.memory_space<vmem>>, %arg9: memref<32x32xbf16, #tpu.memory_space<vmem>>, %arg10: memref<1x32xf32, #tpu.memory_space<vmem>>, %arg11: memref<1x32xf32, #tpu.memory_space<vmem>>, %arg12: memref<1x32xf32, #tpu.memory_space<vmem>>, %arg13: memref<32x64xbf16, #tpu.memory_space<vmem>>, %arg14: memref<1x64xf32, #tpu.memory_space<vmem>>, %arg15: memref<64x32xbf16, #tpu.memory_space<vmem>>, %arg16: memref<1x32xf32, #tpu.memory_space<vmem>>, %arg17: memref<32x16xbf16, #tpu.memory_space<vmem>>, %arg18: memref<1x16xf32, #tpu.memory_space<vmem>>, %arg19: memref<1x16xf32, #tpu.memory_space<vmem>>, %arg20: memref<1x16xf32, #tpu.memory_space<vmem>>, %arg21: memref<1x8x128xf32, #tpu.memory_space<vmem>>, %arg22: memref<8x32xbf16, #tpu.memory_space<vmem>>) attributes {dimension_semantics = [#tpu.dimension_semantics<parallel>], iteration_bounds = array<i64: 2>, scalar_prefetch = 0 : i64, scratch_operands = 1 : i64, tpu.core_type = #tpu.core_type<tc>, window_params = [{transform_indices = @transform_0, window_bounds = array<i64: 1, 8, 48>}, {transform_indices = @transform_1, window_bounds = array<i64: 1, 1, 8>}, {pipeline_mode = #tpu.pipeline_mode<synchronous>, transform_indices = @transform_2, window_bounds = array<i64: 48, 32>}, {pipeline_mode = #tpu.pipeline_mode<synchronous>, transform_indices = @transform_3, window_bounds = array<i64: 1, 32>}, {pipeline_mode = #tpu.pipeline_mode<synchronous>, transform_indices = @transform_4, window_bounds = array<i64: 1, 32>}, {pipeline_mode = #tpu.pipeline_mode<synchronous>, transform_indices = @transform_5, window_bounds = array<i64: 1, 32>}, {pipeline_mode = #tpu.pipeline_mode<synchronous>, transform_indices = @transform_6, window_bounds = array<i64: 32, 96>}, {pipeline_mode = #tpu.pipeline_mode<synchronous>, transform_indices = @transform_7, window_bounds = array<i64: 1, 96>}, {pipeline_mode = #tpu.pipeline_mode<synchronous>, transform_indices = @transform_8, window_bounds = array<i64: 32, 32>}, {pipeline_mode = #tpu.pipeline_mode<synchronous>, transform_indices = @transform_9, window_bounds = array<i64: 1, 32>}, {pipeline_mode = #tpu.pipeline_mode<synchronous>, transform_indices = @transform_10, window_bounds = array<i64: 1, 32>}, {pipeline_mode = #tpu.pipeline_mode<synchronous>, transform_indices = @transform_11, window_bounds = array<i64: 1, 32>}, {pipeline_mode = #tpu.pipeline_mode<synchronous>, transform_indices = @transform_12, window_bounds = array<i64: 32, 64>}, {pipeline_mode = #tpu.pipeline_mode<synchronous>, transform_indices = @transform_13, window_bounds = array<i64: 1, 64>}, {pipeline_mode = #tpu.pipeline_mode<synchronous>, transform_indices = @transform_14, window_bounds = array<i64: 64, 32>}, {pipeline_mode = #tpu.pipeline_mode<synchronous>, transform_indices = @transform_15, window_bounds = array<i64: 1, 32>}, {pipeline_mode = #tpu.pipeline_mode<synchronous>, transform_indices = @transform_16, window_bounds = array<i64: 32, 16>}, {pipeline_mode = #tpu.pipeline_mode<synchronous>, transform_indices = @transform_17, window_bounds = array<i64: 1, 16>}, {pipeline_mode = #tpu.pipeline_mode<synchronous>, transform_indices = @transform_18, window_bounds = array<i64: 1, 16>}, {pipeline_mode = #tpu.pipeline_mode<synchronous>, transform_indices = @transform_19, window_bounds = array<i64: 1, 16>}, {transform_indices = @transform_20, window_bounds = array<i64: 1, 8, 128>}]} {
    %c0 = arith.constant 0 : index
    %c0_0 = arith.constant 0 : index
    %c0_1 = arith.constant 0 : index
    %0 = vector.load %arg1[%c0, %c0_0, %c0_1] : memref<1x8x48xf32, #tpu.memory_space<vmem>>, vector<1x8x48xf32>
    %1 = vector.shape_cast %0 : vector<1x8x48xf32> to vector<8x48xf32>
    %2 = arith.truncf %1 : vector<8x48xf32> to vector<8x48xbf16>
    %c0_2 = arith.constant 0 : index
    %c0_3 = arith.constant 0 : index
    %3 = vector.load %arg3[%c0_2, %c0_3] : memref<48x32xbf16, #tpu.memory_space<vmem>>, vector<48x32xbf16>
    %cst = arith.constant dense<0.000000e+00> : vector<8x32xf32>
    %4 = tpu.matmul %2, %3, %cst {dimension_numbers = #tpu.dot_dimension_numbers<[1], [0], [0], [1], [0, 0, 1, 1], [], []>} : vector<8x48xbf16>, vector<48x32xbf16>, vector<8x32xf32> -> vector<8x32xf32>
    %c0_4 = arith.constant 0 : index
    %c0_5 = arith.constant 0 : index
    %5 = vector.load %arg4[%c0_4, %c0_5] : memref<1x32xf32, #tpu.memory_space<vmem>>, vector<1x32xf32>
    %6 = vector.broadcast %5 : vector<1x32xf32> to vector<8x32xf32>
    %7 = arith.addf %4, %6 : vector<8x32xf32>
    %cst_6 = arith.constant dense<0.000000e+00> : vector<8xf32>
    %8 = vector.multi_reduction <add>, %7, %cst_6 [1] : vector<8x32xf32> to vector<8xf32>
    %9 = vector.shape_cast %8 : vector<8xf32> to vector<8x1xf32>
    %cst_7 = arith.constant 3.200000e+01 : f32
    %10 = vector.broadcast %cst_7 : f32 to vector<8x1xf32>
    %11 = arith.divf %9, %10 : vector<8x1xf32>
    %12 = vector.broadcast %11 : vector<8x1xf32> to vector<8x32xf32>
    %13 = arith.subf %7, %12 : vector<8x32xf32>
    %14 = arith.mulf %13, %13 : vector<8x32xf32>
    %cst_8 = arith.constant dense<0.000000e+00> : vector<8xf32>
    %15 = vector.multi_reduction <add>, %14, %cst_8 [1] : vector<8x32xf32> to vector<8xf32>
    %16 = vector.shape_cast %15 : vector<8xf32> to vector<8x1xf32>
    %cst_9 = arith.constant 3.200000e+01 : f32
    %17 = vector.broadcast %cst_9 : f32 to vector<8x1xf32>
    %18 = arith.divf %16, %17 : vector<8x1xf32>
    %19 = vector.broadcast %11 : vector<8x1xf32> to vector<8x32xf32>
    %20 = arith.subf %7, %19 : vector<8x32xf32>
    %cst_10 = arith.constant 9.99999997E-7 : f32
    %21 = vector.broadcast %cst_10 : f32 to vector<8x1xf32>
    %22 = arith.addf %18, %21 : vector<8x1xf32>
    %23 = math.rsqrt %22 : vector<8x1xf32>
    %24 = vector.broadcast %23 : vector<8x1xf32> to vector<8x32xf32>
    %25 = arith.mulf %20, %24 : vector<8x32xf32>
    %c0_11 = arith.constant 0 : index
    %c0_12 = arith.constant 0 : index
    %26 = vector.load %arg5[%c0_11, %c0_12] : memref<1x32xf32, #tpu.memory_space<vmem>>, vector<1x32xf32>
    %27 = vector.broadcast %26 : vector<1x32xf32> to vector<8x32xf32>
    %28 = arith.mulf %25, %27 : vector<8x32xf32>
    %c0_13 = arith.constant 0 : index
    %c0_14 = arith.constant 0 : index
    %29 = vector.load %arg6[%c0_13, %c0_14] : memref<1x32xf32, #tpu.memory_space<vmem>>, vector<1x32xf32>
    %30 = vector.broadcast %29 : vector<1x32xf32> to vector<8x32xf32>
    %31 = arith.addf %28, %30 : vector<8x32xf32>
    %32 = arith.truncf %31 : vector<8x32xf32> to vector<8x32xbf16>
    %c0_15 = arith.constant 0 : index
    %c0_16 = arith.constant 0 : index
    %33 = vector.load %arg7[%c0_15, %c0_16] : memref<32x96xbf16, #tpu.memory_space<vmem>>, vector<32x96xbf16>
    %cst_17 = arith.constant dense<0.000000e+00> : vector<8x96xf32>
    %34 = tpu.matmul %32, %33, %cst_17 {dimension_numbers = #tpu.dot_dimension_numbers<[1], [0], [0], [1], [0, 0, 1, 1], [], []>} : vector<8x32xbf16>, vector<32x96xbf16>, vector<8x96xf32> -> vector<8x96xf32>
    %c0_18 = arith.constant 0 : index
    %c0_19 = arith.constant 0 : index
    %35 = vector.load %arg8[%c0_18, %c0_19] : memref<1x96xf32, #tpu.memory_space<vmem>>, vector<1x96xf32>
    %36 = vector.broadcast %35 : vector<1x96xf32> to vector<8x96xf32>
    %37 = arith.addf %34, %36 : vector<8x96xf32>
    %38 = arith.truncf %37 : vector<8x96xf32> to vector<8x96xbf16>
    %c0_20 = arith.constant 0 : index
    %c0_21 = arith.constant 0 : index
    %c0_22 = arith.constant 0 : index
    %39 = vector.load %arg2[%c0_20, %c0_21, %c0_22] : memref<1x1x8xi32, #tpu.memory_space<vmem>>, vector<1x1x8xi32>
    %40 = vector.shape_cast %39 : vector<1x1x8xi32> to vector<1x8xi32>
    %c0_i32 = arith.constant 0 : i32
    %41 = vector.broadcast %c0_i32 : i32 to vector<1x8xi32>
    %42 = arith.cmpi ne, %40, %41 : vector<1x8xi32>
    %cst_23 = arith.constant -9.99999984E+17 : f32
    %cst_24 = arith.constant 0.000000e+00 : f32
    %43 = vector.broadcast %cst_23 : f32 to vector<1x8xf32>
    %44 = vector.broadcast %cst_24 : f32 to vector<1x8xf32>
    %45 = arith.select %42, %43, %44 : vector<1x8xi1>, vector<1x8xf32>
    %46 = vector.extract_strided_slice %38 {offsets = [0, 0], sizes = [8, 8], strides = [1, 1]} : vector<8x96xbf16> to vector<8x8xbf16>
    %47 = vector.extract_strided_slice %38 {offsets = [0, 32], sizes = [8, 8], strides = [1, 1]} : vector<8x96xbf16> to vector<8x8xbf16>
    %48 = vector.extract_strided_slice %38 {offsets = [0, 64], sizes = [8, 8], strides = [1, 1]} : vector<8x96xbf16> to vector<8x8xbf16>
    %cst_25 = arith.constant dense<0.000000e+00> : vector<8x8xf32>
    %49 = tpu.matmul %46, %47, %cst_25 {dimension_numbers = #tpu.dot_dimension_numbers<[1], [1], [0], [0], [0, 0, 1, 0], [], []>} : vector<8x8xbf16>, vector<8x8xbf16>, vector<8x8xf32> -> vector<8x8xf32>
    %50 = vector.broadcast %45 : vector<1x8xf32> to vector<8x8xf32>
    %51 = arith.addf %49, %50 : vector<8x8xf32>
    %cst_26 = arith.constant dense<0xFF800000> : vector<8xf32>
    %52 = vector.multi_reduction <maximumf>, %51, %cst_26 [1] : vector<8x8xf32> to vector<8xf32>
    %53 = vector.shape_cast %52 : vector<8xf32> to vector<8x1xf32>
    %54 = vector.broadcast %53 : vector<8x1xf32> to vector<8x8xf32>
    %55 = arith.subf %51, %54 : vector<8x8xf32>
    %56 = math.exp %55 : vector<8x8xf32>
    %cst_27 = arith.constant dense<0.000000e+00> : vector<8xf32>
    %57 = vector.multi_reduction <add>, %56, %cst_27 [1] : vector<8x8xf32> to vector<8xf32>
    %58 = vector.shape_cast %57 : vector<8xf32> to vector<8x1xf32>
    %59 = arith.truncf %56 : vector<8x8xf32> to vector<8x8xbf16>
    %cst_28 = arith.constant dense<0.000000e+00> : vector<8x8xf32>
    %60 = tpu.matmul %59, %48, %cst_28 {dimension_numbers = #tpu.dot_dimension_numbers<[1], [0], [0], [1], [0, 0, 1, 1], [], []>} : vector<8x8xbf16>, vector<8x8xbf16>, vector<8x8xf32> -> vector<8x8xf32>
    %61 = tpu.reciprocal %58 {approx = true} : vector<8x1xf32> -> vector<8x1xf32>
    %62 = vector.broadcast %61 : vector<8x1xf32> to vector<8x8xf32>
    %63 = arith.mulf %60, %62 : vector<8x8xf32>
    %64 = arith.truncf %63 : vector<8x8xf32> to vector<8x8xbf16>
    %c0_29 = arith.constant 0 : index
    %c0_30 = arith.constant 0 : index
    %65 = vector.load %arg22[%c0_29, %c0_30] : memref<8x32xbf16, #tpu.memory_space<vmem>>, vector<8x8xbf16>
    tpu.vector_store %arg22[%c0_29, %c0_30], %64 {strides = array<i32>} : memref<8x32xbf16, #tpu.memory_space<vmem>>, vector<8x8xbf16>,
    %66 = vector.extract_strided_slice %38 {offsets = [0, 8], sizes = [8, 8], strides = [1, 1]} : vector<8x96xbf16> to vector<8x8xbf16>
    %67 = vector.extract_strided_slice %38 {offsets = [0, 40], sizes = [8, 8], strides = [1, 1]} : vector<8x96xbf16> to vector<8x8xbf16>
    %68 = vector.extract_strided_slice %38 {offsets = [0, 72], sizes = [8, 8], strides = [1, 1]} : vector<8x96xbf16> to vector<8x8xbf16>
    %cst_31 = arith.constant dense<0.000000e+00> : vector<8x8xf32>
    %69 = tpu.matmul %66, %67, %cst_31 {dimension_numbers = #tpu.dot_dimension_numbers<[1], [1], [0], [0], [0, 0, 1, 0], [], []>} : vector<8x8xbf16>, vector<8x8xbf16>, vector<8x8xf32> -> vector<8x8xf32>
    %70 = vector.broadcast %45 : vector<1x8xf32> to vector<8x8xf32>
    %71 = arith.addf %69, %70 : vector<8x8xf32>
    %cst_32 = arith.constant dense<0xFF800000> : vector<8xf32>
    %72 = vector.multi_reduction <maximumf>, %71, %cst_32 [1] : vector<8x8xf32> to vector<8xf32>
    %73 = vector.shape_cast %72 : vector<8xf32> to vector<8x1xf32>
    %74 = vector.broadcast %73 : vector<8x1xf32> to vector<8x8xf32>
    %75 = arith.subf %71, %74 : vector<8x8xf32>
    %76 = math.exp %75 : vector<8x8xf32>
    %cst_33 = arith.constant dense<0.000000e+00> : vector<8xf32>
    %77 = vector.multi_reduction <add>, %76, %cst_33 [1] : vector<8x8xf32> to vector<8xf32>
    %78 = vector.shape_cast %77 : vector<8xf32> to vector<8x1xf32>
    %79 = arith.truncf %76 : vector<8x8xf32> to vector<8x8xbf16>
    %cst_34 = arith.constant dense<0.000000e+00> : vector<8x8xf32>
    %80 = tpu.matmul %79, %68, %cst_34 {dimension_numbers = #tpu.dot_dimension_numbers<[1], [0], [0], [1], [0, 0, 1, 1], [], []>} : vector<8x8xbf16>, vector<8x8xbf16>, vector<8x8xf32> -> vector<8x8xf32>
    %81 = tpu.reciprocal %78 {approx = true} : vector<8x1xf32> -> vector<8x1xf32>
    %82 = vector.broadcast %81 : vector<8x1xf32> to vector<8x8xf32>
    %83 = arith.mulf %80, %82 : vector<8x8xf32>
    %84 = arith.truncf %83 : vector<8x8xf32> to vector<8x8xbf16>
    %c0_35 = arith.constant 0 : index
    %c8 = arith.constant 8 : index
    %85 = vector.load %arg22[%c0_35, %c8] : memref<8x32xbf16, #tpu.memory_space<vmem>>, vector<8x8xbf16>
    tpu.vector_store %arg22[%c0_35, %c8], %84 {strides = array<i32>} : memref<8x32xbf16, #tpu.memory_space<vmem>>, vector<8x8xbf16>,
    %86 = vector.extract_strided_slice %38 {offsets = [0, 16], sizes = [8, 8], strides = [1, 1]} : vector<8x96xbf16> to vector<8x8xbf16>
    %87 = vector.extract_strided_slice %38 {offsets = [0, 48], sizes = [8, 8], strides = [1, 1]} : vector<8x96xbf16> to vector<8x8xbf16>
    %88 = vector.extract_strided_slice %38 {offsets = [0, 80], sizes = [8, 8], strides = [1, 1]} : vector<8x96xbf16> to vector<8x8xbf16>
    %cst_36 = arith.constant dense<0.000000e+00> : vector<8x8xf32>
    %89 = tpu.matmul %86, %87, %cst_36 {dimension_numbers = #tpu.dot_dimension_numbers<[1], [1], [0], [0], [0, 0, 1, 0], [], []>} : vector<8x8xbf16>, vector<8x8xbf16>, vector<8x8xf32> -> vector<8x8xf32>
    %90 = vector.broadcast %45 : vector<1x8xf32> to vector<8x8xf32>
    %91 = arith.addf %89, %90 : vector<8x8xf32>
    %cst_37 = arith.constant dense<0xFF800000> : vector<8xf32>
    %92 = vector.multi_reduction <maximumf>, %91, %cst_37 [1] : vector<8x8xf32> to vector<8xf32>
    %93 = vector.shape_cast %92 : vector<8xf32> to vector<8x1xf32>
    %94 = vector.broadcast %93 : vector<8x1xf32> to vector<8x8xf32>
    %95 = arith.subf %91, %94 : vector<8x8xf32>
    %96 = math.exp %95 : vector<8x8xf32>
    %cst_38 = arith.constant dense<0.000000e+00> : vector<8xf32>
    %97 = vector.multi_reduction <add>, %96, %cst_38 [1] : vector<8x8xf32> to vector<8xf32>
    %98 = vector.shape_cast %97 : vector<8xf32> to vector<8x1xf32>
    %99 = arith.truncf %96 : vector<8x8xf32> to vector<8x8xbf16>
    %cst_39 = arith.constant dense<0.000000e+00> : vector<8x8xf32>
    %100 = tpu.matmul %99, %88, %cst_39 {dimension_numbers = #tpu.dot_dimension_numbers<[1], [0], [0], [1], [0, 0, 1, 1], [], []>} : vector<8x8xbf16>, vector<8x8xbf16>, vector<8x8xf32> -> vector<8x8xf32>
    %101 = tpu.reciprocal %98 {approx = true} : vector<8x1xf32> -> vector<8x1xf32>
    %102 = vector.broadcast %101 : vector<8x1xf32> to vector<8x8xf32>
    %103 = arith.mulf %100, %102 : vector<8x8xf32>
    %104 = arith.truncf %103 : vector<8x8xf32> to vector<8x8xbf16>
    %c0_40 = arith.constant 0 : index
    %c16 = arith.constant 16 : index
    %105 = vector.load %arg22[%c0_40, %c16] : memref<8x32xbf16, #tpu.memory_space<vmem>>, vector<8x8xbf16>
    tpu.vector_store %arg22[%c0_40, %c16], %104 {strides = array<i32>} : memref<8x32xbf16, #tpu.memory_space<vmem>>, vector<8x8xbf16>,
    %106 = vector.extract_strided_slice %38 {offsets = [0, 24], sizes = [8, 8], strides = [1, 1]} : vector<8x96xbf16> to vector<8x8xbf16>
    %107 = vector.extract_strided_slice %38 {offsets = [0, 56], sizes = [8, 8], strides = [1, 1]} : vector<8x96xbf16> to vector<8x8xbf16>
    %108 = vector.extract_strided_slice %38 {offsets = [0, 88], sizes = [8, 8], strides = [1, 1]} : vector<8x96xbf16> to vector<8x8xbf16>
    %cst_41 = arith.constant dense<0.000000e+00> : vector<8x8xf32>
    %109 = tpu.matmul %106, %107, %cst_41 {dimension_numbers = #tpu.dot_dimension_numbers<[1], [1], [0], [0], [0, 0, 1, 0], [], []>} : vector<8x8xbf16>, vector<8x8xbf16>, vector<8x8xf32> -> vector<8x8xf32>
    %110 = vector.broadcast %45 : vector<1x8xf32> to vector<8x8xf32>
    %111 = arith.addf %109, %110 : vector<8x8xf32>
    %cst_42 = arith.constant dense<0xFF800000> : vector<8xf32>
    %112 = vector.multi_reduction <maximumf>, %111, %cst_42 [1] : vector<8x8xf32> to vector<8xf32>
    %113 = vector.shape_cast %112 : vector<8xf32> to vector<8x1xf32>
    %114 = vector.broadcast %113 : vector<8x1xf32> to vector<8x8xf32>
    %115 = arith.subf %111, %114 : vector<8x8xf32>
    %116 = math.exp %115 : vector<8x8xf32>
    %cst_43 = arith.constant dense<0.000000e+00> : vector<8xf32>
    %117 = vector.multi_reduction <add>, %116, %cst_43 [1] : vector<8x8xf32> to vector<8xf32>
    %118 = vector.shape_cast %117 : vector<8xf32> to vector<8x1xf32>
    %119 = arith.truncf %116 : vector<8x8xf32> to vector<8x8xbf16>
    %cst_44 = arith.constant dense<0.000000e+00> : vector<8x8xf32>
    %120 = tpu.matmul %119, %108, %cst_44 {dimension_numbers = #tpu.dot_dimension_numbers<[1], [0], [0], [1], [0, 0, 1, 1], [], []>} : vector<8x8xbf16>, vector<8x8xbf16>, vector<8x8xf32> -> vector<8x8xf32>
    %121 = tpu.reciprocal %118 {approx = true} : vector<8x1xf32> -> vector<8x1xf32>
    %122 = vector.broadcast %121 : vector<8x1xf32> to vector<8x8xf32>
    %123 = arith.mulf %120, %122 : vector<8x8xf32>
    %124 = arith.truncf %123 : vector<8x8xf32> to vector<8x8xbf16>
    %c0_45 = arith.constant 0 : index
    %c24 = arith.constant 24 : index
    %125 = vector.load %arg22[%c0_45, %c24] : memref<8x32xbf16, #tpu.memory_space<vmem>>, vector<8x8xbf16>
    tpu.vector_store %arg22[%c0_45, %c24], %124 {strides = array<i32>} : memref<8x32xbf16, #tpu.memory_space<vmem>>, vector<8x8xbf16>,
    %c0_46 = arith.constant 0 : index
    %c0_47 = arith.constant 0 : index
    %126 = vector.load %arg22[%c0_46, %c0_47] : memref<8x32xbf16, #tpu.memory_space<vmem>>, vector<8x32xbf16>
    %c0_48 = arith.constant 0 : index
    %c0_49 = arith.constant 0 : index
    %127 = vector.load %arg9[%c0_48, %c0_49] : memref<32x32xbf16, #tpu.memory_space<vmem>>, vector<32x32xbf16>
    %cst_50 = arith.constant dense<0.000000e+00> : vector<8x32xf32>
    %128 = tpu.matmul %126, %127, %cst_50 {dimension_numbers = #tpu.dot_dimension_numbers<[1], [0], [0], [1], [0, 0, 1, 1], [], []>} : vector<8x32xbf16>, vector<32x32xbf16>, vector<8x32xf32> -> vector<8x32xf32>
    %c0_51 = arith.constant 0 : index
    %c0_52 = arith.constant 0 : index
    %129 = vector.load %arg10[%c0_51, %c0_52] : memref<1x32xf32, #tpu.memory_space<vmem>>, vector<1x32xf32>
    %130 = vector.broadcast %129 : vector<1x32xf32> to vector<8x32xf32>
    %131 = arith.addf %128, %130 : vector<8x32xf32>
    %132 = arith.addf %131, %7 : vector<8x32xf32>
    %cst_53 = arith.constant dense<0.000000e+00> : vector<8xf32>
    %133 = vector.multi_reduction <add>, %132, %cst_53 [1] : vector<8x32xf32> to vector<8xf32>
    %134 = vector.shape_cast %133 : vector<8xf32> to vector<8x1xf32>
    %cst_54 = arith.constant 3.200000e+01 : f32
    %135 = vector.broadcast %cst_54 : f32 to vector<8x1xf32>
    %136 = arith.divf %134, %135 : vector<8x1xf32>
    %137 = vector.broadcast %136 : vector<8x1xf32> to vector<8x32xf32>
    %138 = arith.subf %132, %137 : vector<8x32xf32>
    %139 = arith.mulf %138, %138 : vector<8x32xf32>
    %cst_55 = arith.constant dense<0.000000e+00> : vector<8xf32>
    %140 = vector.multi_reduction <add>, %139, %cst_55 [1] : vector<8x32xf32> to vector<8xf32>
    %141 = vector.shape_cast %140 : vector<8xf32> to vector<8x1xf32>
    %cst_56 = arith.constant 3.200000e+01 : f32
    %142 = vector.broadcast %cst_56 : f32 to vector<8x1xf32>
    %143 = arith.divf %141, %142 : vector<8x1xf32>
    %144 = vector.broadcast %136 : vector<8x1xf32> to vector<8x32xf32>
    %145 = arith.subf %132, %144 : vector<8x32xf32>
    %cst_57 = arith.constant 9.99999997E-7 : f32
    %146 = vector.broadcast %cst_57 : f32 to vector<8x1xf32>
    %147 = arith.addf %143, %146 : vector<8x1xf32>
    %148 = math.rsqrt %147 : vector<8x1xf32>
    %149 = vector.broadcast %148 : vector<8x1xf32> to vector<8x32xf32>
    %150 = arith.mulf %145, %149 : vector<8x32xf32>
    %c0_58 = arith.constant 0 : index
    %c0_59 = arith.constant 0 : index
    %151 = vector.load %arg11[%c0_58, %c0_59] : memref<1x32xf32, #tpu.memory_space<vmem>>, vector<1x32xf32>
    %152 = vector.broadcast %151 : vector<1x32xf32> to vector<8x32xf32>
    %153 = arith.mulf %150, %152 : vector<8x32xf32>
    %c0_60 = arith.constant 0 : index
    %c0_61 = arith.constant 0 : index
    %154 = vector.load %arg12[%c0_60, %c0_61] : memref<1x32xf32, #tpu.memory_space<vmem>>, vector<1x32xf32>
    %155 = vector.broadcast %154 : vector<1x32xf32> to vector<8x32xf32>
    %156 = arith.addf %153, %155 : vector<8x32xf32>
    %157 = arith.truncf %156 : vector<8x32xf32> to vector<8x32xbf16>
    %c0_62 = arith.constant 0 : index
    %c0_63 = arith.constant 0 : index
    %158 = vector.load %arg13[%c0_62, %c0_63] : memref<32x64xbf16, #tpu.memory_space<vmem>>, vector<32x64xbf16>
    %cst_64 = arith.constant dense<0.000000e+00> : vector<8x64xf32>
    %159 = tpu.matmul %157, %158, %cst_64 {dimension_numbers = #tpu.dot_dimension_numbers<[1], [0], [0], [1], [0, 0, 1, 1], [], []>} : vector<8x32xbf16>, vector<32x64xbf16>, vector<8x64xf32> -> vector<8x64xf32>
    %c0_65 = arith.constant 0 : index
    %c0_66 = arith.constant 0 : index
    %160 = vector.load %arg14[%c0_65, %c0_66] : memref<1x64xf32, #tpu.memory_space<vmem>>, vector<1x64xf32>
    %161 = vector.broadcast %160 : vector<1x64xf32> to vector<8x64xf32>
    %162 = arith.addf %159, %161 : vector<8x64xf32>
    %cst_67 = arith.constant 0.000000e+00 : f32
    %163 = vector.broadcast %cst_67 : f32 to vector<8x64xf32>
    %164 = arith.maximumf %162, %163 : vector<8x64xf32>
    %165 = arith.truncf %164 : vector<8x64xf32> to vector<8x64xbf16>
    %c0_68 = arith.constant 0 : index
    %c0_69 = arith.constant 0 : index
    %166 = vector.load %arg15[%c0_68, %c0_69] : memref<64x32xbf16, #tpu.memory_space<vmem>>, vector<64x32xbf16>
    %cst_70 = arith.constant dense<0.000000e+00> : vector<8x32xf32>
    %167 = tpu.matmul %165, %166, %cst_70 {dimension_numbers = #tpu.dot_dimension_numbers<[1], [0], [0], [1], [0, 0, 1, 1], [], []>} : vector<8x64xbf16>, vector<64x32xbf16>, vector<8x32xf32> -> vector<8x32xf32>
    %c0_71 = arith.constant 0 : index
    %c0_72 = arith.constant 0 : index
    %168 = vector.load %arg16[%c0_71, %c0_72] : memref<1x32xf32, #tpu.memory_space<vmem>>, vector<1x32xf32>
    %169 = vector.broadcast %168 : vector<1x32xf32> to vector<8x32xf32>
    %170 = arith.addf %167, %169 : vector<8x32xf32>
    %171 = arith.addf %170, %132 : vector<8x32xf32>
    %172 = arith.truncf %171 : vector<8x32xf32> to vector<8x32xbf16>
    %c0_73 = arith.constant 0 : index
    %c0_74 = arith.constant 0 : index
    %173 = vector.load %arg17[%c0_73, %c0_74] : memref<32x16xbf16, #tpu.memory_space<vmem>>, vector<32x16xbf16>
    %cst_75 = arith.constant dense<0.000000e+00> : vector<8x16xf32>
    %174 = tpu.matmul %172, %173, %cst_75 {dimension_numbers = #tpu.dot_dimension_numbers<[1], [0], [0], [1], [0, 0, 1, 1], [], []>} : vector<8x32xbf16>, vector<32x16xbf16>, vector<8x16xf32> -> vector<8x16xf32>
    %c0_76 = arith.constant 0 : index
    %c0_77 = arith.constant 0 : index
    %175 = vector.load %arg18[%c0_76, %c0_77] : memref<1x16xf32, #tpu.memory_space<vmem>>, vector<1x16xf32>
    %176 = vector.broadcast %175 : vector<1x16xf32> to vector<8x16xf32>
    %177 = arith.addf %174, %176 : vector<8x16xf32>
    %cst_78 = arith.constant dense<0.000000e+00> : vector<8xf32>
    %178 = vector.multi_reduction <add>, %177, %cst_78 [1] : vector<8x16xf32> to vector<8xf32>
    %179 = vector.shape_cast %178 : vector<8xf32> to vector<8x1xf32>
    %cst_79 = arith.constant 1.600000e+01 : f32
    %180 = vector.broadcast %cst_79 : f32 to vector<8x1xf32>
    %181 = arith.divf %179, %180 : vector<8x1xf32>
    %182 = vector.broadcast %181 : vector<8x1xf32> to vector<8x16xf32>
    %183 = arith.subf %177, %182 : vector<8x16xf32>
    %184 = arith.mulf %183, %183 : vector<8x16xf32>
    %cst_80 = arith.constant dense<0.000000e+00> : vector<8xf32>
    %185 = vector.multi_reduction <add>, %184, %cst_80 [1] : vector<8x16xf32> to vector<8xf32>
    %186 = vector.shape_cast %185 : vector<8xf32> to vector<8x1xf32>
    %cst_81 = arith.constant 1.600000e+01 : f32
    %187 = vector.broadcast %cst_81 : f32 to vector<8x1xf32>
    %188 = arith.divf %186, %187 : vector<8x1xf32>
    %189 = vector.broadcast %181 : vector<8x1xf32> to vector<8x16xf32>
    %190 = arith.subf %177, %189 : vector<8x16xf32>
    %cst_82 = arith.constant 9.99999997E-7 : f32
    %191 = vector.broadcast %cst_82 : f32 to vector<8x1xf32>
    %192 = arith.addf %188, %191 : vector<8x1xf32>
    %193 = math.rsqrt %192 : vector<8x1xf32>
    %194 = vector.broadcast %193 : vector<8x1xf32> to vector<8x16xf32>
    %195 = arith.mulf %190, %194 : vector<8x16xf32>
    %c0_83 = arith.constant 0 : index
    %c0_84 = arith.constant 0 : index
    %196 = vector.load %arg19[%c0_83, %c0_84] : memref<1x16xf32, #tpu.memory_space<vmem>>, vector<1x16xf32>
    %197 = vector.broadcast %196 : vector<1x16xf32> to vector<8x16xf32>
    %198 = arith.mulf %195, %197 : vector<8x16xf32>
    %c0_85 = arith.constant 0 : index
    %c0_86 = arith.constant 0 : index
    %199 = vector.load %arg20[%c0_85, %c0_86] : memref<1x16xf32, #tpu.memory_space<vmem>>, vector<1x16xf32>
    %200 = vector.broadcast %199 : vector<1x16xf32> to vector<8x16xf32>
    %201 = arith.addf %198, %200 : vector<8x16xf32>
    %cst_87 = arith.constant 0.000000e+00 : f32
    %202 = vector.broadcast %cst_87 : f32 to vector<8x16xf32>
    %203 = arith.maximumf %201, %202 : vector<8x16xf32>
    %cst_88 = arith.constant 0.000000e+00 : f32
    %204 = vector.broadcast %cst_88 : f32 to vector<8x128xf32>
    %c0_89 = arith.constant 0 : index
    %c0_90 = arith.constant 0 : index
    %c0_91 = arith.constant 0 : index
    %205 = vector.load %arg21[%c0_89, %c0_90, %c0_91] : memref<1x8x128xf32, #tpu.memory_space<vmem>>, vector<1x8x128xf32>
    %206 = vector.shape_cast %205 : vector<1x8x128xf32> to vector<8x128xf32>
    %207 = vector.shape_cast %204 : vector<8x128xf32> to vector<1x8x128xf32>
    tpu.vector_store %arg21[%c0_89, %c0_90, %c0_91], %207 {strides = array<i32>} : memref<1x8x128xf32, #tpu.memory_space<vmem>>, vector<1x8x128xf32>,
    %c0_92 = arith.constant 0 : index
    %c0_93 = arith.constant 0 : index
    %c0_94 = arith.constant 0 : index
    %208 = vector.load %arg21[%c0_92, %c0_93, %c0_94] : memref<1x8x128xf32, #tpu.memory_space<vmem>>, vector<1x8x16xf32>
    %209 = vector.shape_cast %208 : vector<1x8x16xf32> to vector<8x16xf32>
    %210 = vector.shape_cast %203 : vector<8x16xf32> to vector<1x8x16xf32>
    tpu.vector_store %arg21[%c0_92, %c0_93, %c0_94], %210 {strides = array<i32>} : memref<1x8x128xf32, #tpu.memory_space<vmem>>, vector<1x8x16xf32>,
    return
  }
  func.func @transform_0(%arg0: i32) -> (i32, i32, i32) {
    %c0_i32 = arith.constant 0 : i32
    %c0_i32_0 = arith.constant 0 : i32
    %c0_i32_1 = arith.constant 0 : i32
    return %arg0, %c0_i32, %c0_i32_0 : i32, i32, i32
  }
  func.func @transform_1(%arg0: i32) -> (i32, i32, i32) {
    %c0_i32 = arith.constant 0 : i32
    %c0_i32_0 = arith.constant 0 : i32
    %c0_i32_1 = arith.constant 0 : i32
    return %arg0, %c0_i32, %c0_i32_0 : i32, i32, i32
  }
  func.func @transform_2(%arg0: i32) -> (i32, i32) {
    %c0_i32 = arith.constant 0 : i32
    %c0_i32_0 = arith.constant 0 : i32
    %c0_i32_1 = arith.constant 0 : i32
    return %c0_i32, %c0_i32_0 : i32, i32
  }
  func.func @transform_3(%arg0: i32) -> (i32, i32) {
    %c0_i32 = arith.constant 0 : i32
    %c0_i32_0 = arith.constant 0 : i32
    %c0_i32_1 = arith.constant 0 : i32
    return %c0_i32, %c0_i32_0 : i32, i32
  }
  func.func @transform_4(%arg0: i32) -> (i32, i32) {
    %c0_i32 = arith.constant 0 : i32
    %c0_i32_0 = arith.constant 0 : i32
    %c0_i32_1 = arith.constant 0 : i32
    return %c0_i32, %c0_i32_0 : i32, i32
  }
  func.func @transform_5(%arg0: i32) -> (i32, i32) {
    %c0_i32 = arith.constant 0 : i32
    %c0_i32_0 = arith.constant 0 : i32
    %c0_i32_1 = arith.constant 0 : i32
    return %c0_i32, %c0_i32_0 : i32, i32
  }
  func.func @transform_6(%arg0: i32) -> (i32, i32) {
    %c0_i32 = arith.constant 0 : i32
    %c0_i32_0 = arith.constant 0 : i32
    %c0_i32_1 = arith.constant 0 : i32
    return %c0_i32, %c0_i32_0 : i32, i32
  }
  func.func @transform_7(%arg0: i32) -> (i32, i32) {
    %c0_i32 = arith.constant 0 : i32
    %c0_i32_0 = arith.constant 0 : i32
    %c0_i32_1 = arith.constant 0 : i32
    return %c0_i32, %c0_i32_0 : i32, i32
  }
  func.func @transform_8(%arg0: i32) -> (i32, i32) {
    %c0_i32 = arith.constant 0 : i32
    %c0_i32_0 = arith.constant 0 : i32
    %c0_i32_1 = arith.constant 0 : i32
    return %c0_i32, %c0_i32_0 : i32, i32
  }
  func.func @transform_9(%arg0: i32) -> (i32, i32) {
    %c0_i32 = arith.constant 0 : i32
    %c0_i32_0 = arith.constant 0 : i32
    %c0_i32_1 = arith.constant 0 : i32
    return %c0_i32, %c0_i32_0 : i32, i32
  }
  func.func @transform_10(%arg0: i32) -> (i32, i32) {
    %c0_i32 = arith.constant 0 : i32
    %c0_i32_0 = arith.constant 0 : i32
    %c0_i32_1 = arith.constant 0 : i32
    return %c0_i32, %c0_i32_0 : i32, i32
  }
  func.func @transform_11(%arg0: i32) -> (i32, i32) {
    %c0_i32 = arith.constant 0 : i32
    %c0_i32_0 = arith.constant 0 : i32
    %c0_i32_1 = arith.constant 0 : i32
    return %c0_i32, %c0_i32_0 : i32, i32
  }
  func.func @transform_12(%arg0: i32) -> (i32, i32) {
    %c0_i32 = arith.constant 0 : i32
    %c0_i32_0 = arith.constant 0 : i32
    %c0_i32_1 = arith.constant 0 : i32
    return %c0_i32, %c0_i32_0 : i32, i32
  }
  func.func @transform_13(%arg0: i32) -> (i32, i32) {
    %c0_i32 = arith.constant 0 : i32
    %c0_i32_0 = arith.constant 0 : i32
    %c0_i32_1 = arith.constant 0 : i32
    return %c0_i32, %c0_i32_0 : i32, i32
  }
  func.func @transform_14(%arg0: i32) -> (i32, i32) {
    %c0_i32 = arith.constant 0 : i32
    %c0_i32_0 = arith.constant 0 : i32
    %c0_i32_1 = arith.constant 0 : i32
    return %c0_i32, %c0_i32_0 : i32, i32
  }
  func.func @transform_15(%arg0: i32) -> (i32, i32) {
    %c0_i32 = arith.constant 0 : i32
    %c0_i32_0 = arith.constant 0 : i32
    %c0_i32_1 = arith.constant 0 : i32
    return %c0_i32, %c0_i32_0 : i32, i32
  }
  func.func @transform_16(%arg0: i32) -> (i32, i32) {
    %c0_i32 = arith.constant 0 : i32
    %c0_i32_0 = arith.constant 0 : i32
    %c0_i32_1 = arith.constant 0 : i32
    return %c0_i32, %c0_i32_0 : i32, i32
  }
  func.func @transform_17(%arg0: i32) -> (i32, i32) {
    %c0_i32 = arith.constant 0 : i32
    %c0_i32_0 = arith.constant 0 : i32
    %c0_i32_1 = arith.constant 0 : i32
    return %c0_i32, %c0_i32_0 : i32, i32
  }
  func.func @transform_18(%arg0: i32) -> (i32, i32) {
    %c0_i32 = arith.constant 0 : i32
    %c0_i32_0 = arith.constant 0 : i32
    %c0_i32_1 = arith.constant 0 : i32
    return %c0_i32, %c0_i32_0 : i32, i32
  }
  func.func @transform_19(%arg0: i32) -> (i32, i32) {
    %c0_i32 = arith.constant 0 : i32
    %c0_i32_0 = arith.constant 0 : i32
    %c0_i32_1 = arith.constant 0 : i32
    return %c0_i32, %c0_i32_0 : i32, i32
  }
  func.func @transform_20(%arg0: i32) -> (i32, i32, i32) {
    %c0_i32 = arith.constant 0 : i32
    %c0_i32_0 = arith.constant 0 : i32
    %c0_i32_1 = arith.constant 0 : i32
    return %arg0, %c0_i32, %c0_i32_0 : i32, i32, i32
  }
}

</mosaic_0001>

<llo_original>
// kernel: transformer_dense_block_fwd.3
$region0: #{transformer_dense_block_fwd.3}
  #allocation0 [shape = 'u32[]', space=smem, size = 0x4, offset = 0x4, fixed_abs, tag = 'smem constant byte address 0x4 - core index']
  #allocation1 [shape = 'u32[144,128]{1,0:T(1,128)}', space=vmem, size = 0x12000, scoped, tag = 'internal scratch']
  #allocation2 [shape = 'bf16[8,32]{1,0:T(8,128)(2,1)}', space=vmem, size = 0x800, scoped, tag = 'scratch operand']
  %s0 = inlined_call_operand.vmem [shape: f32[2,8,48], index: 0, kind: input, shape index: {}]
  %s1 = inlined_call_operand.vmem [shape: s32[2,1,8], index: 1, kind: input, shape index: {}]
  %s2 = inlined_call_operand.vmem [shape: bf16[48,32], index: 2, kind: input, shape index: {}]
  %s3 = inlined_call_operand.vmem [shape: f32[1,32], index: 3, kind: input, shape index: {}]
  %s4 = inlined_call_operand.vmem [shape: f32[1,32], index: 4, kind: input, shape index: {}]
  %s5 = inlined_call_operand.vmem [shape: f32[1,32], index: 5, kind: input, shape index: {}]
  %s6 = inlined_call_operand.vmem [shape: bf16[32,96], index: 6, kind: input, shape index: {}]
  %s7 = inlined_call_operand.vmem [shape: f32[1,96], index: 7, kind: input, shape index: {}]
  %s8 = inlined_call_operand.vmem [shape: bf16[32,32], index: 8, kind: input, shape index: {}]
  %s9 = inlined_call_operand.vmem [shape: f32[1,32], index: 9, kind: input, shape index: {}]
  %s10 = inlined_call_operand.vmem [shape: f32[1,32], index: 10, kind: input, shape index: {}]
  %s11 = inlined_call_operand.vmem [shape: f32[1,32], index: 11, kind: input, shape index: {}]
  %s12 = inlined_call_operand.vmem [shape: bf16[32,64], index: 12, kind: input, shape index: {}]
  %s13 = inlined_call_operand.vmem [shape: f32[1,64], index: 13, kind: input, shape index: {}]
  %s14 = inlined_call_operand.vmem [shape: bf16[64,32], index: 14, kind: input, shape index: {}]
  %s15 = inlined_call_operand.vmem [shape: f32[1,32], index: 15, kind: input, shape index: {}]
  %s16 = inlined_call_operand.vmem [shape: bf16[32,16], index: 16, kind: input, shape index: {}]
  %s17 = inlined_call_operand.vmem [shape: f32[1,16], index: 17, kind: input, shape index: {}]
  %s18 = inlined_call_operand.vmem [shape: f32[1,16], index: 18, kind: input, shape index: {}]
  %s19 = inlined_call_operand.vmem [shape: f32[1,16], index: 19, kind: input, shape index: {}]
  %s20 = inlined_call_operand.vmem [shape: f32[2,8,128], index: 20, kind: output, shape index: {}]
  %s21 = sld [smem:[#allocation0]]
  $region113: #{transformer_dense_block_fwd.3} parent=0
    _
  %s23 = ssub.s32 1, %s21
  %s24 = scalar_select 0, %s23, %s21
  loop: start=0, step=1, limit=4
  $region2: #{transformer_dense_block_fwd.3} parent=0 // loop_pre_header
    _
  $region3: #{transformer_dense_block_fwd.3} parent=0 // loop_header
    %s26 = sphi 0, %s30
    %p27 = scmp.ge.s32.totalorder %s26, 4
    %s36 = sphi 0, %s38
    %s39 = sphi 0, %s36
    %s40 = sphi 0, %s39
    %s56 = sphi 0, %s40
    %s62 = sphi 0, %s64
    %s65 = sphi 0, %s62
    %s66 = sphi 0, %s65
    %s82 = sphi 0, %s66
    %s86 = sphi 0, %s86
    %s88 = sphi 0, %s86
    %s89 = sphi 0, %s88
    %s103 = sphi 0, %s89
    %s107 = sphi 0, %s107
    %s109 = sphi 0, %s107
    %s110 = sphi 0, %s109
    %s124 = sphi 0, %s110
    %s128 = sphi 0, %s128
    %s130 = sphi 0, %s128
    %s131 = sphi 0, %s130
    %s145 = sphi 0, %s131
    %s149 = sphi 0, %s149
    %s151 = sphi 0, %s149
    %s152 = sphi 0, %s151
    %s166 = sphi 0, %s152
    %s170 = sphi 0, %s170
    %s172 = sphi 0, %s170
    %s173 = sphi 0, %s172
    %s187 = sphi 0, %s173
    %s191 = sphi 0, %s191
    %s193 = sphi 0, %s191
    %s194 = sphi 0, %s193
    %s208 = sphi 0, %s194
    %s212 = sphi 0, %s212
    %s214 = sphi 0, %s212
    %s215 = sphi 0, %s214
    %s229 = sphi 0, %s215
    %s233 = sphi 0, %s233
    %s235 = sphi 0, %s233
    %s236 = sphi 0, %s235
    %s250 = sphi 0, %s236
    %s254 = sphi 0, %s254
    %s256 = sphi 0, %s254
    %s257 = sphi 0, %s256
    %s271 = sphi 0, %s257
    %s275 = sphi 0, %s275
    %s277 = sphi 0, %s275
    %s278 = sphi 0, %s277
    %s292 = sphi 0, %s278
    %s296 = sphi 0, %s296
    %s298 = sphi 0, %s296
    %s299 = sphi 0, %s298
    %s313 = sphi 0, %s299
    %s317 = sphi 0, %s317
    %s319 = sphi 0, %s317
    %s320 = sphi 0, %s319
    %s334 = sphi 0, %s320
    %s338 = sphi 0, %s338
    %s340 = sphi 0, %s338
    %s341 = sphi 0, %s340
    %s355 = sphi 0, %s341
    %s359 = sphi 0, %s359
    %s361 = sphi 0, %s359
    %s362 = sphi 0, %s361
    %s376 = sphi 0, %s362
    %s380 = sphi 0, %s380
    %s382 = sphi 0, %s380
    %s383 = sphi 0, %s382
    %s397 = sphi 0, %s383
    %s401 = sphi 0, %s401
    %s403 = sphi 0, %s401
    %s404 = sphi 0, %s403
    %s418 = sphi 0, %s404
    %s422 = sphi 0, %s422
    %s424 = sphi 0, %s422
    %s425 = sphi 0, %s424
    %s439 = sphi 0, %s425
    %s443 = sphi 0, %s443
    %s445 = sphi 0, %s443
    %s446 = sphi 0, %s445
    %s460 = sphi 0, %s446
    %s466 = sphi 0, %s468
    %s469 = sphi 0, %s466
    %s470 = sphi 0, %s469
    %s486 = sphi 0, %s470
  $region4: #{transformer_dense_block_fwd.3} parent=0 // loop_header_branch
    %29 = sbr.rel (%p27) target = $region8
  $region5: #{transformer_dense_block_fwd.3} parent=0 // loop_body
    %s31 = ssub.s32 %s26, 1
    %s32 = ssub.s32 %s26, 2
    %s33 = sadd.s32 %s26, 1
    %s34 = ssub.s32 %s26, %s33
    %p35 = scmp.eq.s32.totalorder %s34, 0
    %s37 = sadd.s32 %s36, 1
    %s38 = scalar_select %p35, %s36, %s37
    %p41 = pneg %p35
    %p42 = scmp.eq.s32.totalorder %s26, 1
    %p43 = por %p41, %p42
    %p44 = scmp.ne.s32.totalorder %s36, %s39
    %p45 = scmp.eq.s32.totalorder %s26, 0
    %p46 = por %p44, %p45
    %p47 = scmp.ne.s32.totalorder %s36, %s39
    %p48 = scmp.eq.s32.totalorder %s31, 1
    %p49 = por %p47, %p48
    %p50 = scmp.ne.s32.totalorder %s39, %s40
    %p51 = scmp.eq.s32.totalorder %s31, 0
    %p52 = por %p50, %p51
    %p53 = scmp.ne.s32.totalorder %s39, %s40
    %p54 = scmp.eq.s32.totalorder %s32, 1
    %p55 = por %p53, %p54
    %p57 = scmp.ne.s32.totalorder %s40, %s56
    %p58 = scmp.eq.s32.totalorder %s32, 0
    %p59 = por %p57, %p58
    %s60 = ssub.s32 %s26, %s33
    %p61 = scmp.eq.s32.totalorder %s60, 0
    %s63 = sadd.s32 %s62, 1
    %s64 = scalar_select %p61, %s62, %s63
    %p67 = pneg %p61
    %p68 = scmp.eq.s32.totalorder %s26, 1
    %p69 = por %p67, %p68
    %p70 = scmp.ne.s32.totalorder %s62, %s65
    %p71 = scmp.eq.s32.totalorder %s26, 0
    %p72 = por %p70, %p71
    %p73 = scmp.ne.s32.totalorder %s62, %s65
    %p74 = scmp.eq.s32.totalorder %s31, 1
    %p75 = por %p73, %p74
    %p76 = scmp.ne.s32.totalorder %s65, %s66
    %p77 = scmp.eq.s32.totalorder %s31, 0
    %p78 = por %p76, %p77
    %p79 = scmp.ne.s32.totalorder %s65, %s66
    %p80 = scmp.eq.s32.totalorder %s32, 1
    %p81 = por %p79, %p80
    %p83 = scmp.ne.s32.totalorder %s66, %s82
    %p84 = scmp.eq.s32.totalorder %s32, 0
    %p85 = por %p83, %p84
    %s87 = sadd.s32 %s86, 1
    %p90 = scmp.eq.s32.totalorder %s26, 1
    %p91 = scmp.ne.s32.totalorder %s86, %s88
    %p92 = scmp.eq.s32.totalorder %s26, 0
    %p93 = por %p91, %p92
    %p94 = scmp.ne.s32.totalorder %s86, %s88
    %p95 = scmp.eq.s32.totalorder %s31, 1
    %p96 = por %p94, %p95
    %p97 = scmp.ne.s32.totalorder %s88, %s89
    %p98 = scmp.eq.s32.totalorder %s31, 0
    %p99 = por %p97, %p98
    %p100 = scmp.ne.s32.totalorder %s88, %s89
    %p101 = scmp.eq.s32.totalorder %s32, 1
    %p102 = por %p100, %p101
    %p104 = scmp.ne.s32.totalorder %s89, %s103
    %p105 = scmp.eq.s32.totalorder %s32, 0
    %p106 = por %p104, %p105
    %s108 = sadd.s32 %s107, 1
    %p111 = scmp.eq.s32.totalorder %s26, 1
    %p112 = scmp.ne.s32.totalorder %s107, %s109
    %p113 = scmp.eq.s32.totalorder %s26, 0
    %p114 = por %p112, %p113
    %p115 = scmp.ne.s32.totalorder %s107, %s109
    %p116 = scmp.eq.s32.totalorder %s31, 1
    %p117 = por %p115, %p116
    %p118 = scmp.ne.s32.totalorder %s109, %s110
    %p119 = scmp.eq.s32.totalorder %s31, 0
    %p120 = por %p118, %p119
    %p121 = scmp.ne.s32.totalorder %s109, %s110
    %p122 = scmp.eq.s32.totalorder %s32, 1
    %p123 = por %p121, %p122
    %p125 = scmp.ne.s32.totalorder %s110, %s124
    %p126 = scmp.eq.s32.totalorder %s32, 0
    %p127 = por %p125, %p126
    %s129 = sadd.s32 %s128, 1
    %p132 = scmp.eq.s32.totalorder %s26, 1
    %p133 = scmp.ne.s32.totalorder %s128, %s130
    %p134 = scmp.eq.s32.totalorder %s26, 0
    %p135 = por %p133, %p134
    %p136 = scmp.ne.s32.totalorder %s128, %s130
    %p137 = scmp.eq.s32.totalorder %s31, 1
    %p138 = por %p136, %p137
    %p139 = scmp.ne.s32.totalorder %s130, %s131
    %p140 = scmp.eq.s32.totalorder %s31, 0
    %p141 = por %p139, %p140
    %p142 = scmp.ne.s32.totalorder %s130, %s131
    %p143 = scmp.eq.s32.totalorder %s32, 1
    %p144 = por %p142, %p143
    %p146 = scmp.ne.s32.totalorder %s131, %s145
    %p147 = scmp.eq.s32.totalorder %s32, 0
    %p148 = por %p146, %p147
    %s150 = sadd.s32 %s149, 1
    %p153 = scmp.eq.s32.totalorder %s26, 1
    %p154 = scmp.ne.s32.totalorder %s149, %s151
    %p155 = scmp.eq.s32.totalorder %s26, 0
    %p156 = por %p154, %p155
    %p157 = scmp.ne.s32.totalorder %s149, %s151
    %p158 = scmp.eq.s32.totalorder %s31, 1
    %p159 = por %p157, %p158
    %p160 = scmp.ne.s32.totalorder %s151, %s152
    %p161 = scmp.eq.s32.totalorder %s31, 0
    %p162 = por %p160, %p161
    %p163 = scmp.ne.s32.totalorder %s151, %s152
    %p164 = scmp.eq.s32.totalorder %s32, 1
    %p165 = por %p163, %p164
    %p167 = scmp.ne.s32.totalorder %s152, %s166
    %p168 = scmp.eq.s32.totalorder %s32, 0
    %p169 = por %p167, %p168
    %s171 = sadd.s32 %s170, 1
    %p174 = scmp.eq.s32.totalorder %s26, 1
    %p175 = scmp.ne.s32.totalorder %s170, %s172
    %p176 = scmp.eq.s32.totalorder %s26, 0
    %p177 = por %p175, %p176
    %p178 = scmp.ne.s32.totalorder %s170, %s172
    %p179 = scmp.eq.s32.totalorder %s31, 1
    %p180 = por %p178, %p179
    %p181 = scmp.ne.s32.totalorder %s172, %s173
    %p182 = scmp.eq.s32.totalorder %s31, 0
    %p183 = por %p181, %p182
    %p184 = scmp.ne.s32.totalorder %s172, %s173
    %p185 = scmp.eq.s32.totalorder %s32, 1
    %p186 = por %p184, %p185
    %p188 = scmp.ne.s32.totalorder %s173, %s187
    %p189 = scmp.eq.s32.totalorder %s32, 0
    %p190 = por %p188, %p189
    %s192 = sadd.s32 %s191, 1
    %p195 = scmp.eq.s32.totalorder %s26, 1
    %p196 = scmp.ne.s32.totalorder %s191, %s193
    %p197 = scmp.eq.s32.totalorder %s26, 0
    %p198 = por %p196, %p197
    %p199 = scmp.ne.s32.totalorder %s191, %s193
    %p200 = scmp.eq.s32.totalorder %s31, 1
    %p201 = por %p199, %p200
    %p202 = scmp.ne.s32.totalorder %s193, %s194
    %p203 = scmp.eq.s32.totalorder %s31, 0
    %p204 = por %p202, %p203
    %p205 = scmp.ne.s32.totalorder %s193, %s194
    %p206 = scmp.eq.s32.totalorder %s32, 1
    %p207 = por %p205, %p206
    %p209 = scmp.ne.s32.totalorder %s194, %s208
    %p210 = scmp.eq.s32.totalorder %s32, 0
    %p211 = por %p209, %p210
    %s213 = sadd.s32 %s212, 1
    %p216 = scmp.eq.s32.totalorder %s26, 1
    %p217 = scmp.ne.s32.totalorder %s212, %s214
    %p218 = scmp.eq.s32.totalorder %s26, 0
    %p219 = por %p217, %p218
    %p220 = scmp.ne.s32.totalorder %s212, %s214
    %p221 = scmp.eq.s32.totalorder %s31, 1
    %p222 = por %p220, %p221
    %p223 = scmp.ne.s32.totalorder %s214, %s215
    %p224 = scmp.eq.s32.totalorder %s31, 0
    %p225 = por %p223, %p224
    %p226 = scmp.ne.s32.totalorder %s214, %s215
    %p227 = scmp.eq.s32.totalorder %s32, 1
    %p228 = por %p226, %p227
    %p230 = scmp.ne.s32.totalorder %s215, %s229
    %p231 = scmp.eq.s32.totalorder %s32, 0
    %p232 = por %p230, %p231
    %s234 = sadd.s32 %s233, 1
    %p237 = scmp.eq.s32.totalorder %s26, 1
    %p238 = scmp.ne.s32.totalorder %s233, %s235
    %p239 = scmp.eq.s32.totalorder %s26, 0
    %p240 = por %p238, %p239
    %p241 = scmp.ne.s32.totalorder %s233, %s235
    %p242 = scmp.eq.s32.totalorder %s31, 1
    %p243 = por %p241, %p242
    %p244 = scmp.ne.s32.totalorder %s235, %s236
    %p245 = scmp.eq.s32.totalorder %s31, 0
    %p246 = por %p244, %p245
    %p247 = scmp.ne.s32.totalorder %s235, %s236
    %p248 = scmp.eq.s32.totalorder %s32, 1
    %p249 = por %p247, %p248
    %p251 = scmp.ne.s32.totalorder %s236, %s250
    %p252 = scmp.eq.s32.totalorder %s32, 0
    %p253 = por %p251, %p252
    %s255 = sadd.s32 %s254, 1
    %p258 = scmp.eq.s32.totalorder %s26, 1
    %p259 = scmp.ne.s32.totalorder %s254, %s256
    %p260 = scmp.eq.s32.totalorder %s26, 0
    %p261 = por %p259, %p260
    %p262 = scmp.ne.s32.totalorder %s254, %s256
    %p263 = scmp.eq.s32.totalorder %s31, 1
    %p264 = por %p262, %p263
    %p265 = scmp.ne.s32.totalorder %s256, %s257
    %p266 = scmp.eq.s32.totalorder %s31, 0
    %p267 = por %p265, %p266
    %p268 = scmp.ne.s32.totalorder %s256, %s257
    %p269 = scmp.eq.s32.totalorder %s32, 1
    %p270 = por %p268, %p269
    %p272 = scmp.ne.s32.totalorder %s257, %s271
    %p273 = scmp.eq.s32.totalorder %s32, 0
    %p274 = por %p272, %p273
    %s276 = sadd.s32 %s275, 1
    %p279 = scmp.eq.s32.totalorder %s26, 1
    %p280 = scmp.ne.s32.totalorder %s275, %s277
    %p281 = scmp.eq.s32.totalorder %s26, 0
    %p282 = por %p280, %p281
    %p283 = scmp.ne.s32.totalorder %s275, %s277
    %p284 = scmp.eq.s32.totalorder %s31, 1
    %p285 = por %p283, %p284
    %p286 = scmp.ne.s32.totalorder %s277, %s278
    %p287 = scmp.eq.s32.totalorder %s31, 0
    %p288 = por %p286, %p287
    %p289 = scmp.ne.s32.totalorder %s277, %s278
    %p290 = scmp.eq.s32.totalorder %s32, 1
    %p291 = por %p289, %p290
    %p293 = scmp.ne.s32.totalorder %s278, %s292
    %p294 = scmp.eq.s32.totalorder %s32, 0
    %p295 = por %p293, %p294
    %s297 = sadd.s32 %s296, 1
    %p300 = scmp.eq.s32.totalorder %s26, 1
    %p301 = scmp.ne.s32.totalorder %s296, %s298
    %p302 = scmp.eq.s32.totalorder %s26, 0
    %p303 = por %p301, %p302
    %p304 = scmp.ne.s32.totalorder %s296, %s298
    %p305 = scmp.eq.s32.totalorder %s31, 1
    %p306 = por %p304, %p305
    %p307 = scmp.ne.s32.totalorder %s298, %s299
    %p308 = scmp.eq.s32.totalorder %s31, 0
    %p309 = por %p307, %p308
    %p310 = scmp.ne.s32.totalorder %s298, %s299
    %p311 = scmp.eq.s32.totalorder %s32, 1
    %p312 = por %p310, %p311
    %p314 = scmp.ne.s32.totalorder %s299, %s313
    %p315 = scmp.eq.s32.totalorder %s32, 0
    %p316 = por %p314, %p315
    %s318 = sadd.s32 %s317, 1
    %p321 = scmp.eq.s32.totalorder %s26, 1
    %p322 = scmp.ne.s32.totalorder %s317, %s319
    %p323 = scmp.eq.s32.totalorder %s26, 0
    %p324 = por %p322, %p323
    %p325 = scmp.ne.s32.totalorder %s317, %s319
    %p326 = scmp.eq.s32.totalorder %s31, 1
    %p327 = por %p325, %p326
    %p328 = scmp.ne.s32.totalorder %s319, %s320
    %p329 = scmp.eq.s32.totalorder %s31, 0
    %p330 = por %p328, %p329
    %p331 = scmp.ne.s32.totalorder %s319, %s320
    %p332 = scmp.eq.s32.totalorder %s32, 1
    %p333 = por %p331, %p332
    %p335 = scmp.ne.s32.totalorder %s320, %s334
    %p336 = scmp.eq.s32.totalorder %s32, 0
    %p337 = por %p335, %p336
    %s339 = sadd.s32 %s338, 1
    %p342 = scmp.eq.s32.totalorder %s26, 1
    %p343 = scmp.ne.s32.totalorder %s338, %s340
    %p344 = scmp.eq.s32.totalorder %s26, 0
    %p345 = por %p343, %p344
    %p346 = scmp.ne.s32.totalorder %s338, %s340
    %p347 = scmp.eq.s32.totalorder %s31, 1
    %p348 = por %p346, %p347
    %p349 = scmp.ne.s32.totalorder %s340, %s341
    %p350 = scmp.eq.s32.totalorder %s31, 0
    %p351 = por %p349, %p350
    %p352 = scmp.ne.s32.totalorder %s340, %s341
    %p353 = scmp.eq.s32.totalorder %s32, 1
    %p354 = por %p352, %p353
    %p356 = scmp.ne.s32.totalorder %s341, %s355
    %p357 = scmp.eq.s32.totalorder %s32, 0
    %p358 = por %p356, %p357
    %s360 = sadd.s32 %s359, 1
    %p363 = scmp.eq.s32.totalorder %s26, 1
    %p364 = scmp.ne.s32.totalorder %s359, %s361
    %p365 = scmp.eq.s32.totalorder %s26, 0
    %p366 = por %p364, %p365
    %p367 = scmp.ne.s32.totalorder %s359, %s361
    %p368 = scmp.eq.s32.totalorder %s31, 1
    %p369 = por %p367, %p368
    %p370 = scmp.ne.s32.totalorder %s361, %s362
    %p371 = scmp.eq.s32.totalorder %s31, 0
    %p372 = por %p370, %p371
    %p373 = scmp.ne.s32.totalorder %s361, %s362
    %p374 = scmp.eq.s32.totalorder %s32, 1
    %p375 = por %p373, %p374
    %p377 = scmp.ne.s32.totalorder %s362, %s376
    %p378 = scmp.eq.s32.totalorder %s32, 0
    %p379 = por %p377, %p378
    %s381 = sadd.s32 %s380, 1
    %p384 = scmp.eq.s32.totalorder %s26, 1
    %p385 = scmp.ne.s32.totalorder %s380, %s382
    %p386 = scmp.eq.s32.totalorder %s26, 0
    %p387 = por %p385, %p386
    %p388 = scmp.ne.s32.totalorder %s380, %s382
    %p389 = scmp.eq.s32.totalorder %s31, 1
    %p390 = por %p388, %p389
    %p391 = scmp.ne.s32.totalorder %s382, %s383
    %p392 = scmp.eq.s32.totalorder %s31, 0
    %p393 = por %p391, %p392
    %p394 = scmp.ne.s32.totalorder %s382, %s383
    %p395 = scmp.eq.s32.totalorder %s32, 1
    %p396 = por %p394, %p395
    %p398 = scmp.ne.s32.totalorder %s383, %s397
    %p399 = scmp.eq.s32.totalorder %s32, 0
    %p400 = por %p398, %p399
    %s402 = sadd.s32 %s401, 1
    %p405 = scmp.eq.s32.totalorder %s26, 1
    %p406 = scmp.ne.s32.totalorder %s401, %s403
    %p407 = scmp.eq.s32.totalorder %s26, 0
    %p408 = por %p406, %p407
    %p409 = scmp.ne.s32.totalorder %s401, %s403
    %p410 = scmp.eq.s32.totalorder %s31, 1
    %p411 = por %p409, %p410
    %p412 = scmp.ne.s32.totalorder %s403, %s404
    %p413 = scmp.eq.s32.totalorder %s31, 0
    %p414 = por %p412, %p413
    %p415 = scmp.ne.s32.totalorder %s403, %s404
    %p416 = scmp.eq.s32.totalorder %s32, 1
    %p417 = por %p415, %p416
    %p419 = scmp.ne.s32.totalorder %s404, %s418
    %p420 = scmp.eq.s32.totalorder %s32, 0
    %p421 = por %p419, %p420
    %s423 = sadd.s32 %s422, 1
    %p426 = scmp.eq.s32.totalorder %s26, 1
    %p427 = scmp.ne.s32.totalorder %s422, %s424
    %p428 = scmp.eq.s32.totalorder %s26, 0
    %p429 = por %p427, %p428
    %p430 = scmp.ne.s32.totalorder %s422, %s424
    %p431 = scmp.eq.s32.totalorder %s31, 1
    %p432 = por %p430, %p431
    %p433 = scmp.ne.s32.totalorder %s424, %s425
    %p434 = scmp.eq.s32.totalorder %s31, 0
    %p435 = por %p433, %p434
    %p436 = scmp.ne.s32.totalorder %s424, %s425
    %p437 = scmp.eq.s32.totalorder %s32, 1
    %p438 = por %p436, %p437
    %p440 = scmp.ne.s32.totalorder %s425, %s439
    %p441 = scmp.eq.s32.totalorder %s32, 0
    %p442 = por %p440, %p441
    %s444 = sadd.s32 %s443, 1
    %p447 = scmp.eq.s32.totalorder %s26, 1
    %p448 = scmp.ne.s32.totalorder %s443, %s445
    %p449 = scmp.eq.s32.totalorder %s26, 0
    %p450 = por %p448, %p449
    %p451 = scmp.ne.s32.totalorder %s443, %s445
    %p452 = scmp.eq.s32.totalorder %s31, 1
    %p453 = por %p451, %p452
    %p454 = scmp.ne.s32.totalorder %s445, %s446
    %p455 = scmp.eq.s32.totalorder %s31, 0
    %p456 = por %p454, %p455
    %p457 = scmp.ne.s32.totalorder %s445, %s446
    %p458 = scmp.eq.s32.totalorder %s32, 1
    %p459 = por %p457, %p458
    %p461 = scmp.ne.s32.totalorder %s446, %s460
    %p462 = scmp.eq.s32.totalorder %s32, 0
    %p463 = por %p461, %p462
    %s464 = ssub.s32 %s26, %s33
    %p465 = scmp.eq.s32.totalorder %s464, 0
    %s467 = sadd.s32 %s466, 1
    %s468 = scalar_select %p465, %s466, %s467
    %p471 = pneg %p465
    %p472 = scmp.eq.s32.totalorder %s26, 1
    %p473 = por %p471, %p472
    %p474 = scmp.ne.s32.totalorder %s466, %s469
    %p475 = scmp.eq.s32.totalorder %s26, 0
    %p476 = por %p474, %p475
    %p477 = scmp.ne.s32.totalorder %s466, %s469
    %p478 = scmp.eq.s32.totalorder %s31, 1
    %p479 = por %p477, %p478
    %p480 = scmp.ne.s32.totalorder %s469, %s470
    %p481 = scmp.eq.s32.totalorder %s31, 0
    %p482 = por %p480, %p481
    %p483 = scmp.ne.s32.totalorder %s469, %s470
    %p484 = scmp.eq.s32.totalorder %s32, 1
    %p485 = por %p483, %p484
    %p487 = scmp.ne.s32.totalorder %s470, %s486
    %p488 = scmp.eq.s32.totalorder %s32, 0
    %p489 = por %p487, %p488
    %p490 = scmp.le.s32.totalorder 1, %s26
    %p491 = scmp.lt.s32.totalorder %s26, 3
    %p492 = pnand %p490, %p491
    %p493 = pneg %p492
    // Predicated region
    $region9: #{transformer_dense_block_fwd.3} parent=5 // pred_check
      _
    $region10: #{transformer_dense_block_fwd.3} parent=5 // pred_check_branch
      %495 = sbr.rel (%p492) target = $region12
    $region11: #{transformer_dense_block_fwd.3} parent=5 // pred_region
      %s496 = ssub.s32 %s26, 1
      // Predicated region
      $region13: #{transformer_dense_block_fwd.3} parent=11 // pred_check
        %p497 = pneg %p99
      $region14: #{transformer_dense_block_fwd.3} parent=11 // pred_check_branch
        %499 = sbr.rel (%p497) target = $region16
      $region15: #{transformer_dense_block_fwd.3} parent=11 // pred_region
        _
      $region16: #{transformer_dense_block_fwd.3} parent=11 // pred_fallthru
        _
      // Predicated region
      $region17: #{transformer_dense_block_fwd.3} parent=11 // pred_check
        %p500 = pneg %p120
      $region18: #{transformer_dense_block_fwd.3} parent=11 // pred_check_branch
        %502 = sbr.rel (%p500) target = $region20
      $region19: #{transformer_dense_block_fwd.3} parent=11 // pred_region
        _
      $region20: #{transformer_dense_block_fwd.3} parent=11 // pred_fallthru
        _
      // Predicated region
      $region21: #{transformer_dense_block_fwd.3} parent=11 // pred_check
        %p503 = pneg %p141
      $region22: #{transformer_dense_block_fwd.3} parent=11 // pred_check_branch
        %505 = sbr.rel (%p503) target = $region24
      $region23: #{transformer_dense_block_fwd.3} parent=11 // pred_region
        _
      $region24: #{transformer_dense_block_fwd.3} parent=11 // pred_fallthru
        _
      // Predicated region
      $region25: #{transformer_dense_block_fwd.3} parent=11 // pred_check
        %p506 = pneg %p162
      $region26: #{transformer_dense_block_fwd.3} parent=11 // pred_check_branch
        %508 = sbr.rel (%p506) target = $region28
      $region27: #{transformer_dense_block_fwd.3} parent=11 // pred_region
        _
      $region28: #{transformer_dense_block_fwd.3} parent=11 // pred_fallthru
        _
      // Predicated region
      $region29: #{transformer_dense_block_fwd.3} parent=11 // pred_check
        %p509 = pneg %p183
      $region30: #{transformer_dense_block_fwd.3} parent=11 // pred_check_branch
        %511 = sbr.rel (%p509) target = $region32
      $region31: #{transformer_dense_block_fwd.3} parent=11 // pred_region
        _
      $region32: #{transformer_dense_block_fwd.3} parent=11 // pred_fallthru
        _
      // Predicated region
      $region33: #{transformer_dense_block_fwd.3} parent=11 // pred_check
        %p512 = pneg %p204
      $region34: #{transformer_dense_block_fwd.3} parent=11 // pred_check_branch
        %514 = sbr.rel (%p512) target = $region36
      $region35: #{transformer_dense_block_fwd.3} parent=11 // pred_region
        _
      $region36: #{transformer_dense_block_fwd.3} parent=11 // pred_fallthru
        _
      // Predicated region
      $region37: #{transformer_dense_block_fwd.3} parent=11 // pred_check
        %p515 = pneg %p225
      $region38: #{transformer_dense_block_fwd.3} parent=11 // pred_check_branch
        %517 = sbr.rel (%p515) target = $region40
      $region39: #{transformer_dense_block_fwd.3} parent=11 // pred_region
        _
      $region40: #{transformer_dense_block_fwd.3} parent=11 // pred_fallthru
        _
      // Predicated region
      $region41: #{transformer_dense_block_fwd.3} parent=11 // pred_check
        %p518 = pneg %p246
      $region42: #{transformer_dense_block_fwd.3} parent=11 // pred_check_branch
        %520 = sbr.rel (%p518) target = $region44
      $region43: #{transformer_dense_block_fwd.3} parent=11 // pred_region
        _
      $region44: #{transformer_dense_block_fwd.3} parent=11 // pred_fallthru
        _
      // Predicated region
      $region45: #{transformer_dense_block_fwd.3} parent=11 // pred_check
        %p521 = pneg %p267
      $region46: #{transformer_dense_block_fwd.3} parent=11 // pred_check_branch
        %523 = sbr.rel (%p521) target = $region48
      $region47: #{transformer_dense_block_fwd.3} parent=11 // pred_region
        _
      $region48: #{transformer_dense_block_fwd.3} parent=11 // pred_fallthru
        _
      // Predicated region
      $region49: #{transformer_dense_block_fwd.3} parent=11 // pred_check
        %p524 = pneg %p288
      $region50: #{transformer_dense_block_fwd.3} parent=11 // pred_check_branch
        %526 = sbr.rel (%p524) target = $region52
      $region51: #{transformer_dense_block_fwd.3} parent=11 // pred_region
        _
      $region52: #{transformer_dense_block_fwd.3} parent=11 // pred_fallthru
        _
      // Predicated region
      $region53: #{transformer_dense_block_fwd.3} parent=11 // pred_check
        %p527 = pneg %p309
      $region54: #{transformer_dense_block_fwd.3} parent=11 // pred_check_branch
        %529 = sbr.rel (%p527) target = $region56
      $region55: #{transformer_dense_block_fwd.3} parent=11 // pred_region
        _
      $region56: #{transformer_dense_block_fwd.3} parent=11 // pred_fallthru
        _
      // Predicated region
      $region57: #{transformer_dense_block_fwd.3} parent=11 // pred_check
        %p530 = pneg %p330
      $region58: #{transformer_dense_block_fwd.3} parent=11 // pred_check_branch
        %532 = sbr.rel (%p530) target = $region60
      $region59: #{transformer_dense_block_fwd.3} parent=11 // pred_region
        _
      $region60: #{transformer_dense_block_fwd.3} parent=11 // pred_fallthru
        _
      // Predicated region
      $region61: #{transformer_dense_block_fwd.3} parent=11 // pred_check
        %p533 = pneg %p351
      $region62: #{transformer_dense_block_fwd.3} parent=11 // pred_check_branch
        %535 = sbr.rel (%p533) target = $region64
      $region63: #{transformer_dense_block_fwd.3} parent=11 // pred_region
        _
      $region64: #{transformer_dense_block_fwd.3} parent=11 // pred_fallthru
        _
      // Predicated region
      $region65: #{transformer_dense_block_fwd.3} parent=11 // pred_check
        %p536 = pneg %p372
      $region66: #{transformer_dense_block_fwd.3} parent=11 // pred_check_branch
        %538 = sbr.rel (%p536) target = $region68
      $region67: #{transformer_dense_block_fwd.3} parent=11 // pred_region
        _
      $region68: #{transformer_dense_block_fwd.3} parent=11 // pred_fallthru
        _
      // Predicated region
      $region69: #{transformer_dense_block_fwd.3} parent=11 // pred_check
        %p539 = pneg %p393
      $region70: #{transformer_dense_block_fwd.3} parent=11 // pred_check_branch
        %541 = sbr.rel (%p539) target = $region72
      $region71: #{transformer_dense_block_fwd.3} parent=11 // pred_region
        _
      $region72: #{transformer_dense_block_fwd.3} parent=11 // pred_fallthru
        _
      // Predicated region
      $region73: #{transformer_dense_block_fwd.3} parent=11 // pred_check
        %p542 = pneg %p414
      $region74: #{transformer_dense_block_fwd.3} parent=11 // pred_check_branch
        %544 = sbr.rel (%p542) target = $region76
      $region75: #{transformer_dense_block_fwd.3} parent=11 // pred_region
        _
      $region76: #{transformer_dense_block_fwd.3} parent=11 // pred_fallthru
        _
      // Predicated region
      $region77: #{transformer_dense_block_fwd.3} parent=11 // pred_check
        %p545 = pneg %p435
      $region78: #{transformer_dense_block_fwd.3} parent=11 // pred_check_branch
        %547 = sbr.rel (%p545) target = $region80
      $region79: #{transformer_dense_block_fwd.3} parent=11 // pred_region
        _
      $region80: #{transformer_dense_block_fwd.3} parent=11 // pred_fallthru
        _
      // Predicated region
      $region81: #{transformer_dense_block_fwd.3} parent=11 // pred_check
        %p548 = pneg %p456
      $region82: #{transformer_dense_block_fwd.3} parent=11 // pred_check_branch
        %550 = sbr.rel (%p548) target = $region84
      $region83: #{transformer_dense_block_fwd.3} parent=11 // pred_region
        _
      $region84: #{transformer_dense_block_fwd.3} parent=11 // pred_fallthru
        _
    $region12: #{transformer_dense_block_fwd.3} parent=5 // pred_fallthru
      _
    %p551 = scmp.lt.s32.totalorder %s26, 2
    // Predicated region
    $region85: #{transformer_dense_block_fwd.3} parent=5 // pred_check
      %p552 = pneg %p551
    $region86: #{transformer_dense_block_fwd.3} parent=5 // pred_check_branch
      %554 = sbr.rel (%p552) target = $region88
    $region87: #{transformer_dense_block_fwd.3} parent=5 // pred_region
      // Predicated region
      $region89: #{transformer_dense_block_fwd.3} parent=87 // pred_check
        %p555 = pneg %p46
      $region90: #{transformer_dense_block_fwd.3} parent=87 // pred_check_branch
        %557 = sbr.rel (%p555) target = $region92
      $region91: #{transformer_dense_block_fwd.3} parent=87 // pred_region
        %p558 = scmp.lt.s32.totalorder %s26, 1
        %s559 = scalar_select %p558, %s26, 1
        %s560 = smul.addr %s559, 8
        %s561 = scalar_lea.vmem %s0, %s560
      $region92: #{transformer_dense_block_fwd.3} parent=87 // pred_fallthru
        _
      // Predicated region
      $region93: #{transformer_dense_block_fwd.3} parent=87 // pred_check
        %p562 = pneg %p72
      $region94: #{transformer_dense_block_fwd.3} parent=87 // pred_check_branch
        %564 = sbr.rel (%p562) target = $region96
      $region95: #{transformer_dense_block_fwd.3} parent=87 // pred_region
        %p565 = scmp.lt.s32.totalorder %s26, 1
        %s566 = scalar_select %p565, %s26, 1
        %s567 = scalar_lea.vmem %s1, %s566
      $region96: #{transformer_dense_block_fwd.3} parent=87 // pred_fallthru
        _
    $region88: #{transformer_dense_block_fwd.3} parent=5 // pred_fallthru
      _
    %p568 = scmp.le.s32.totalorder 1, %s26
    %p569 = scmp.lt.s32.totalorder %s26, 3
    %p570 = pnand %p568, %p569
    %p571 = pneg %p570
    // Predicated region
    $region97: #{transformer_dense_block_fwd.3} parent=5 // pred_check
      _
    $region98: #{transformer_dense_block_fwd.3} parent=5 // pred_check_branch
      %573 = sbr.rel (%p570) target = $region100
    $region99: #{transformer_dense_block_fwd.3} parent=5 // pred_region
      %s574 = ssub.s32 %s26, 1
      %p575 = scmp.lt.s32.totalorder %s31, 1
      %s576 = scalar_select %p575, %s31, 1
      %s577 = smul.addr %s576, 8
      %s578 = scalar_lea.vmem %s0, %s577
      %p579 = pneg %p52
      %p580 = pneg %p49
      %p581 = scmp.lt.s32.totalorder %s31, 1
      %s582 = scalar_select %p581, %s31, 1
      %s583 = scalar_lea.vmem %s1, %s582
      %p584 = pneg %p78
      %p585 = pneg %p75
      %p586 = pneg %p99
      %p587 = pneg %p96
      %p588 = pneg %p120
      %p589 = pneg %p117
      %p590 = pneg %p141
      %p591 = pneg %p138
      %p592 = pneg %p162
      %p593 = pneg %p159
      %p594 = pneg %p183
      %p595 = pneg %p180
      %p596 = pneg %p204
      %p597 = pneg %p201
      %p598 = pneg %p225
      %p599 = pneg %p222
      %p600 = pneg %p246
      %p601 = pneg %p243
      %p602 = pneg %p267
      %p603 = pneg %p264
      %p604 = pneg %p288
      %p605 = pneg %p285
      %p606 = pneg %p309
      %p607 = pneg %p306
      %p608 = pneg %p330
      %p609 = pneg %p327
      %p610 = pneg %p351
      %p611 = pneg %p348
      %p612 = pneg %p372
      %p613 = pneg %p369
      %p614 = pneg %p393
      %p615 = pneg %p390
      %p616 = pneg %p414
      %p617 = pneg %p411
      %p618 = pneg %p435
      %p619 = pneg %p432
      %p620 = pneg %p456
      %p621 = pneg %p453
      %p622 = pneg %p482
      %p623 = pneg %p479
      %p624 = scmp.lt.s32.totalorder %s31, 1
      %s625 = scalar_select %p624, %s31, 1
      %s626 = smul.addr %s625, 8
      %s627 = scalar_lea.vmem %s20, %s626
      %p628 = scmp.lt.s32.totalorder %s31, 1
      %s629 = scalar_select %p628, %s31, 1
      %s630 = smul.addr %s629, 8
      %s631 = scalar_lea.vmem %s0, %s630
      %p632 = scmp.lt.s32.totalorder %s31, 1
      %s633 = scalar_select %p632, %s31, 1
      %s634 = scalar_lea.vmem %s1, %s633
      %p635 = scmp.lt.s32.totalorder %s31, 1
      %s636 = scalar_select %p635, %s31, 1
      %s637 = smul.addr %s636, 8
      %s638 = scalar_lea.vmem %s20, %s637
      %v640 = vld [vmem:[%s631] sm:$0xff]
      %v641 = vpack.c.bf16 %v640, %v640
      %v642 = vld [vmem:[%s2] sm:$0xf]
      %v643 = vld [vmem:[%s2 + $0x4] sm:$0xf]
      %v644 = vld [vmem:[%s2 + $0x8] sm:$0xf]
      %v645 = vld [vmem:[%s2 + $0xc] sm:$0xf]
      %v646 = vld [vmem:[%s2 + $0x10] sm:$0xf]
      %v647 = vld [vmem:[%s2 + $0x14] sm:$0xf]
      %v648 = vld [vmem:[%s3] sm:$0x1]
      %v650 = vlaneseq
      %v651 = vshrl.u32 %v650, 7
      %v652 = vsub.s32 0, %v651
      %v653 = vrot.slane %v648, %v652
      %v661 = vunpack.c.l.b16 %v642
      %v662 = vunpack.c.l.b16 %v643
      %v663 = vunpack.c.l.b16 %v644
      %v664 = vunpack.c.l.b16 %v645
      %v665 = vunpack.c.l.b16 %v646
      %v666 = vunpack.c.l.b16 %v647
      %v667 = vpack.c.b16 %v662, %v661
      %v668 = vpack.c.b16 %v664, %v663
      %v669 = vpack.c.b16 %v666, %v665
      %vm673 = vcmask 392192
      %v675 = vsel %vm673, %v641, 0
      %677 = vmatprep.subr.bf16.mxu0 0
      %678 = vmatpush1.bf16.msra.mxu0 %v667
      %679 = vmatprep.subr.bf16.mxu0 0
      %680 = vmatpush1.bf16.msra.mxu0 %v668
      %681 = vmatprep.subr.bf16.mxu0 0
      %682 = vmatpush1.bf16.msra.mxu0 %v669
      %683 = vmatprep.subr.bf16.mxu0 0
      %684 = vmatpush1.bf16.msra.mxu0 0
      %685 = vmatprep.subr.bf16.mxu0 0
      %686 = vmatpush1.bf16.msra.mxu0 0
      %687 = vmatprep.subr.bf16.mxu0 0
      %688 = vmatpush1.bf16.msra.mxu0 0
      %689 = vmatprep.subr.bf16.mxu0 0
      %690 = vmatpush1.bf16.msra.mxu0 0
      %691 = vmatprep.subr.bf16.mxu0 0
      %692 = vmatpush1.bf16.msra.mxu0 0
      %693 = vmatprep.subr.bf16.mxu0 0
      %694 = vmatpush1.bf16.msra.mxu0 0
      %695 = vmatprep.subr.bf16.mxu0 0
      %696 = vmatpush1.bf16.msra.mxu0 0
      %697 = vmatprep.subr.bf16.mxu0 0
      %698 = vmatpush1.bf16.msra.mxu0 0
      %699 = vmatprep.subr.bf16.mxu0 0
      %700 = vmatpush1.bf16.msra.mxu0 0
      %701 = vmatprep.subr.bf16.mxu0 0
      %702 = vmatpush1.bf16.msra.mxu0 0
      %703 = vmatprep.subr.bf16.mxu0 0
      %704 = vmatpush1.bf16.msra.mxu0 0
      %705 = vmatprep.subr.bf16.mxu0 0
      %706 = vmatpush1.bf16.msra.mxu0 0
      %707 = vmatprep.subr.bf16.mxu0 0
      %708 = vmatpush1.bf16.msra.mxu0 0
      %709 = vmatprep.mubr.bf16.mxu0 0
      %710 = vmatmul.mubr.bf16.gmra.mrb[0].mxu0 %v675
      %v711 = vpop.f32.mrb[0].mxu0
      %v712 = vadd.f32 %v653, %v711
      %v713 = vpop.f32.mrb[0].mxu0
      %v714 = vpop.f32.mrb[0].mxu0
      %v715 = vpop.f32.mrb[0].mxu0
      %716 = vdwg.mxu0
      %vm717 = vcmask 261120
      %v718 = vsel %vm717, %v712, 0.0
      %719 = vadd.xlane.f32.xlu0 %v718
      %v720 = vpop.xlane.xlu0 %719
      %v721 = vrcp.pop 32.0
      %v722 = vmul.f32 %v720, %v721
      %v723 = vsub.f32 %v712, %v722
      %v724 = vmul.f32 %v723, %v723
      %v725 = vsel %vm717, %v724, 0.0
      %726 = vadd.xlane.f32.xlu0 %v725
      %v727 = vpop.xlane.xlu0 %726
      %v728 = vmul.f32 %v727, %v721
      %v729 = vadd.f32 %v728, 1e-06
      %v730 = vrsqrt.pop %v729
      %v731 = vmul.f32 %v723, %v730
      %v732 = vld [vmem:[%s4] sm:$0x1]
      %v734 = vlaneseq
      %v735 = vshrl.u32 %v734, 7
      %v736 = vsub.s32 0, %v735
      %v737 = vrot.slane %v732, %v736
      %v739 = vmul.f32 %v731, %v737
      %v740 = vld [vmem:[%s5] sm:$0x1]
      %v742 = vlaneseq
      %v743 = vshrl.u32 %v742, 7
      %v744 = vsub.s32 0, %v743
      %v745 = vrot.slane %v740, %v744
      %v747 = vadd.f32 %v739, %v745
      %v748 = vpack.c.bf16 %v747, %v747
      %v749 = vld [vmem:[%s6] sm:$0xf]
      %v750 = vld [vmem:[%s6 + $0x4] sm:$0xf]
      %v751 = vld [vmem:[%s6 + $0x8] sm:$0xf]
      %v752 = vld [vmem:[%s6 + $0xc] sm:$0xf]
      %v753 = vld [vmem:[%s7] sm:$0x1]
      %v755 = vlaneseq
      %v756 = vshrl.u32 %v755, 7
      %v757 = vsub.s32 0, %v756
      %v758 = vrot.slane %v753, %v757
      %v764 = vunpack.c.l.b16 %v749
      %v765 = vunpack.c.l.b16 %v750
      %v766 = vunpack.c.l.b16 %v751
      %v767 = vunpack.c.l.b16 %v752
      %v768 = vpack.c.b16 %v765, %v764
      %v769 = vpack.c.b16 %v767, %v766
      %v773 = vsel %vm717, %v748, 0
      %775 = vmatprep.subr.bf16.mxu0 0
      %776 = vmatpush1.bf16.msra.mxu0 %v768
      %777 = vmatprep.subr.bf16.mxu0 0
      %778 = vmatpush1.bf16.msra.mxu0 %v769
      %779 = vmatprep.subr.bf16.mxu0 0
      %780 = vmatpush1.bf16.msra.mxu0 0
      %781 = vmatprep.subr.bf16.mxu0 0
      %782 = vmatpush1.bf16.msra.mxu0 0
      %783 = vmatprep.subr.bf16.mxu0 0
      %784 = vmatpush1.bf16.msra.mxu0 0
      %785 = vmatprep.subr.bf16.mxu0 0
      %786 = vmatpush1.bf16.msra.mxu0 0
      %787 = vmatprep.subr.bf16.mxu0 0
      %788 = vmatpush1.bf16.msra.mxu0 0
      %789 = vmatprep.subr.bf16.mxu0 0
      %790 = vmatpush1.bf16.msra.mxu0 0
      %791 = vmatprep.subr.bf16.mxu0 0
      %792 = vmatpush1.bf16.msra.mxu0 0
      %793 = vmatprep.subr.bf16.mxu0 0
      %794 = vmatpush1.bf16.msra.mxu0 0
      %795 = vmatprep.subr.bf16.mxu0 0
      %796 = vmatpush1.bf16.msra.mxu0 0
      %797 = vmatprep.subr.bf16.mxu0 0
      %798 = vmatpush1.bf16.msra.mxu0 0
      %799 = vmatprep.subr.bf16.mxu0 0
      %800 = vmatpush1.bf16.msra.mxu0 0
      %801 = vmatprep.subr.bf16.mxu0 0
      %802 = vmatpush1.bf16.msra.mxu0 0
      %803 = vmatprep.subr.bf16.mxu0 0
      %804 = vmatpush1.bf16.msra.mxu0 0
      %805 = vmatprep.subr.bf16.mxu0 0
      %806 = vmatpush1.bf16.msra.mxu0 0
      %807 = vmatprep.mubr.bf16.mxu0 0
      %808 = vmatmul.mubr.bf16.gmra.mrb[0].mxu0 %v773
      %v809 = vpop.f32.mrb[0].mxu0
      %v810 = vadd.f32 %v758, %v809
      %v811 = vpop.f32.mrb[0].mxu0
      %v812 = vpop.f32.mrb[0].mxu0
      %v813 = vpop.f32.mrb[0].mxu0
      %814 = vdwg.mxu0
      %v815 = vpack.c.bf16 %v810, %v810
      %v816 = vld [vmem:[%s634] sm:$0x1]
      %vm817 = vcmp.ne.s32.totalorder %v816, 0
      %v818 = vsel %vm817, -1e+18, 0.0
      %v820 = vlaneseq
      %v821 = vshrl.u32 %v820, 7
      %v822 = vsub.s32 0, %v821
      %v823 = vrot.slane %v818, %v822
      %826 = vrot.lane.b32.xlu0 %v815, 96
      %v827 = vpop.permute.xlu0 %826
      %vm828 = vcmask 64512
      %v830 = vsel %vm828, %v815, 0
      %v833 = vsel %vm828, %v827, 0
      %835 = vmatprep.subr.bf16.mxu0 0
      %836 = vmatpush1.bf16.xpose.msra.mxu0 %v833
      %837 = vmatprep.subr.bf16.mxu0 0
      %838 = vmatpush1.bf16.xpose.msra.mxu0 0
      %839 = vmatprep.subr.bf16.mxu0 0
      %840 = vmatpush1.bf16.xpose.msra.mxu0 0
      %841 = vmatprep.subr.bf16.mxu0 0
      %842 = vmatpush1.bf16.xpose.msra.mxu0 0
      %843 = vmatprep.subr.bf16.mxu0 0
      %844 = vmatpush1.bf16.xpose.msra.mxu0 0
      %845 = vmatprep.subr.bf16.mxu0 0
      %846 = vmatpush1.bf16.xpose.msra.mxu0 0
      %847 = vmatprep.subr.bf16.mxu0 0
      %848 = vmatpush1.bf16.xpose.msra.mxu0 0
      %849 = vmatprep.subr.bf16.mxu0 0
      %850 = vmatpush1.bf16.xpose.msra.mxu0 0
      %851 = vmatprep.subr.bf16.mxu0 0
      %852 = vmatpush1.bf16.xpose.msra.mxu0 0
      %853 = vmatprep.subr.bf16.mxu0 0
      %854 = vmatpush1.bf16.xpose.msra.mxu0 0
      %855 = vmatprep.subr.bf16.mxu0 0
      %856 = vmatpush1.bf16.xpose.msra.mxu0 0
      %857 = vmatprep.subr.bf16.mxu0 0
      %858 = vmatpush1.bf16.xpose.msra.mxu0 0
      %859 = vmatprep.subr.bf16.mxu0 0
      %860 = vmatpush1.bf16.xpose.msra.mxu0 0
      %861 = vmatprep.subr.bf16.mxu0 0
      %862 = vmatpush1.bf16.xpose.msra.mxu0 0
      %863 = vmatprep.subr.bf16.mxu0 0
      %864 = vmatpush1.bf16.xpose.msra.mxu0 0
      %865 = vmatprep.subr.bf16.mxu0 0
      %866 = vmatpush1.bf16.xpose.msra.mxu0 0
      %867 = vmatprep.mubr.bf16.mxu0 0
      %868 = vmatmul.mubr.bf16.gmra.mrb[0].mxu0 %v830
      %v869 = vpop.f32.mrb[0].mxu0
      %v870 = vadd.f32 %v823, %v869
      %v871 = vpop.f32.mrb[0].mxu0
      %v872 = vpop.f32.mrb[0].mxu0
      %v873 = vpop.f32.mrb[0].mxu0
      %874 = vdwg.mxu0
      %v875 = vsel %vm828, %v870, -inf
      %876 = vmax.xlane.f32.xlu0 %v875
      %v877 = vpop.xlane.xlu0 %876
      %v878 = vsub.f32 %v870, %v877
      %v879 = vmul.f32 %v878, 1.442695
      %v880 = vpow.pop %v879
      %v881 = vsel %vm828, %v880, 0.0
      %882 = vadd.xlane.f32.xlu0 %v881
      %v883 = vpop.xlane.xlu0 %882
      %v884 = vpack.c.bf16 %v880, %v880
      %885 = vrot.lane.b32.xlu0 %v815, 64
      %v886 = vpop.permute.xlu0 %885
      %v888 = vsel %vm828, %v884, 0
      %vm890 = vcmask 1043456
      %v892 = vsel %vm890, %v886, 0
      %894 = vmatprep.subr.bf16.mxu0 0
      %895 = vmatpush1.bf16.msra.mxu0 %v892
      %896 = vmatprep.subr.bf16.mxu0 0
      %897 = vmatpush1.bf16.msra.mxu0 0
      %898 = vmatprep.subr.bf16.mxu0 0
      %899 = vmatpush1.bf16.msra.mxu0 0
      %900 = vmatprep.subr.bf16.mxu0 0
      %901 = vmatpush1.bf16.msra.mxu0 0
      %902 = vmatprep.subr.bf16.mxu0 0
      %903 = vmatpush1.bf16.msra.mxu0 0
      %904 = vmatprep.subr.bf16.mxu0 0
      %905 = vmatpush1.bf16.msra.mxu0 0
      %906 = vmatprep.subr.bf16.mxu0 0
      %907 = vmatpush1.bf16.msra.mxu0 0
      %908 = vmatprep.subr.bf16.mxu0 0
      %909 = vmatpush1.bf16.msra.mxu0 0
      %910 = vmatprep.subr.bf16.mxu0 0
      %911 = vmatpush1.bf16.msra.mxu0 0
      %912 = vmatprep.subr.bf16.mxu0 0
      %913 = vmatpush1.bf16.msra.mxu0 0
      %914 = vmatprep.subr.bf16.mxu0 0
      %915 = vmatpush1.bf16.msra.mxu0 0
      %916 = vmatprep.subr.bf16.mxu0 0
      %917 = vmatpush1.bf16.msra.mxu0 0
      %918 = vmatprep.subr.bf16.mxu0 0
      %919 = vmatpush1.bf16.msra.mxu0 0
      %920 = vmatprep.subr.bf16.mxu0 0
      %921 = vmatpush1.bf16.msra.mxu0 0
      %922 = vmatprep.subr.bf16.mxu0 0
      %923 = vmatpush1.bf16.msra.mxu0 0
      %924 = vmatprep.subr.bf16.mxu0 0
      %925 = vmatpush1.bf16.msra.mxu0 0
      %926 = vmatprep.mubr.bf16.mxu0 0
      %927 = vmatmul.mubr.bf16.gmra.mrb[0].mxu0 %v888
      %v928 = vpop.f32.mrb[0].mxu0
      %v929 = vadd.f32 0.0, %v928
      %v930 = vpop.f32.mrb[0].mxu0
      %v931 = vpop.f32.mrb[0].mxu0
      %v932 = vpop.f32.mrb[0].mxu0
      %933 = vdwg.mxu0
      %v934 = vrcp.pop %v883
      %v935 = vmul.f32 %v929, %v934
      %v936 = vpack.c.bf16 %v935, %v935
      %vm937 = vcmask 60416
      %938 = vst.msk [vmem:[#allocation2] sm:$0xf] %vm937, %v936
      %939 = vrot.lane.b32.xlu0 %v815, 120
      %v940 = vpop.permute.xlu0 %939
      %941 = vrot.lane.b32.xlu0 %v815, 88
      %v942 = vpop.permute.xlu0 %941
      %v944 = vsel %vm828, %v940, 0
      %v947 = vsel %vm828, %v942, 0
      %949 = vmatprep.subr.bf16.mxu0 0
      %950 = vmatpush1.bf16.xpose.msra.mxu0 %v947
      %951 = vmatprep.subr.bf16.mxu0 0
      %952 = vmatpush1.bf16.xpose.msra.mxu0 0
      %953 = vmatprep.subr.bf16.mxu0 0
      %954 = vmatpush1.bf16.xpose.msra.mxu0 0
      %955 = vmatprep.subr.bf16.mxu0 0
      %956 = vmatpush1.bf16.xpose.msra.mxu0 0
      %957 = vmatprep.subr.bf16.mxu0 0
      %958 = vmatpush1.bf16.xpose.msra.mxu0 0
      %959 = vmatprep.subr.bf16.mxu0 0
      %960 = vmatpush1.bf16.xpose.msra.mxu0 0
      %961 = vmatprep.subr.bf16.mxu0 0
      %962 = vmatpush1.bf16.xpose.msra.mxu0 0
      %963 = vmatprep.subr.bf16.mxu0 0
      %964 = vmatpush1.bf16.xpose.msra.mxu0 0
      %965 = vmatprep.subr.bf16.mxu0 0
      %966 = vmatpush1.bf16.xpose.msra.mxu0 0
      %967 = vmatprep.subr.bf16.mxu0 0
      %968 = vmatpush1.bf16.xpose.msra.mxu0 0
      %969 = vmatprep.subr.bf16.mxu0 0
      %970 = vmatpush1.bf16.xpose.msra.mxu0 0
      %971 = vmatprep.subr.bf16.mxu0 0
      %972 = vmatpush1.bf16.xpose.msra.mxu0 0
      %973 = vmatprep.subr.bf16.mxu0 0
      %974 = vmatpush1.bf16.xpose.msra.mxu0 0
      %975 = vmatprep.subr.bf16.mxu0 0
      %976 = vmatpush1.bf16.xpose.msra.mxu0 0
      %977 = vmatprep.subr.bf16.mxu0 0
      %978 = vmatpush1.bf16.xpose.msra.mxu0 0
      %979 = vmatprep.subr.bf16.mxu0 0
      %980 = vmatpush1.bf16.xpose.msra.mxu0 0
      %981 = vmatprep.mubr.bf16.mxu0 0
      %982 = vmatmul.mubr.bf16.gmra.mrb[0].mxu0 %v944
      %v983 = vpop.f32.mrb[0].mxu0
      %v984 = vadd.f32 %v823, %v983
      %v985 = vpop.f32.mrb[0].mxu0
      %v986 = vpop.f32.mrb[0].mxu0
      %v987 = vpop.f32.mrb[0].mxu0
      %988 = vdwg.mxu0
      %v989 = vsel %vm828, %v984, -inf
      %990 = vmax.xlane.f32.xlu0 %v989
      %v991 = vpop.xlane.xlu0 %990
      %v992 = vsub.f32 %v984, %v991
      %v993 = vmul.f32 %v992, 1.442695
      %v994 = vpow.pop %v993
      %v995 = vsel %vm828, %v994, 0.0
      %996 = vadd.xlane.f32.xlu0 %v995
      %v997 = vpop.xlane.xlu0 %996
      %v998 = vpack.c.bf16 %v994, %v994
      %999 = vrot.lane.b32.xlu0 %v815, 56
      %v1000 = vpop.permute.xlu0 %999
      %v1002 = vsel %vm828, %v998, 0
      %v1005 = vsel %vm890, %v1000, 0
      %1007 = vmatprep.subr.bf16.mxu0 0
      %1008 = vmatpush1.bf16.msra.mxu0 %v1005
      %1009 = vmatprep.subr.bf16.mxu0 0
      %1010 = vmatpush1.bf16.msra.mxu0 0
      %1011 = vmatprep.subr.bf16.mxu0 0
      %1012 = vmatpush1.bf16.msra.mxu0 0
      %1013 = vmatprep.subr.bf16.mxu0 0
      %1014 = vmatpush1.bf16.msra.mxu0 0
      %1015 = vmatprep.subr.bf16.mxu0 0
      %1016 = vmatpush1.bf16.msra.mxu0 0
      %1017 = vmatprep.subr.bf16.mxu0 0
      %1018 = vmatpush1.bf16.msra.mxu0 0
      %1019 = vmatprep.subr.bf16.mxu0 0
      %1020 = vmatpush1.bf16.msra.mxu0 0
      %1021 = vmatprep.subr.bf16.mxu0 0
      %1022 = vmatpush1.bf16.msra.mxu0 0
      %1023 = vmatprep.subr.bf16.mxu0 0
      %1024 = vmatpush1.bf16.msra.mxu0 0
      %1025 = vmatprep.subr.bf16.mxu0 0
      %1026 = vmatpush1.bf16.msra.mxu0 0
      %1027 = vmatprep.subr.bf16.mxu0 0
      %1028 = vmatpush1.bf16.msra.mxu0 0
      %1029 = vmatprep.subr.bf16.mxu0 0
      %1030 = vmatpush1.bf16.msra.mxu0 0
      %1031 = vmatprep.subr.bf16.mxu0 0
      %1032 = vmatpush1.bf16.msra.mxu0 0
      %1033 = vmatprep.subr.bf16.mxu0 0
      %1034 = vmatpush1.bf16.msra.mxu0 0
      %1035 = vmatprep.subr.bf16.mxu0 0
      %1036 = vmatpush1.bf16.msra.mxu0 0
      %1037 = vmatprep.subr.bf16.mxu0 0
      %1038 = vmatpush1.bf16.msra.mxu0 0
      %1039 = vmatprep.mubr.bf16.mxu0 0
      %1040 = vmatmul.mubr.bf16.gmra.mrb[0].mxu0 %v1002
      %v1041 = vpop.f32.mrb[0].mxu0
      %v1042 = vadd.f32 0.0, %v1041
      %v1043 = vpop.f32.mrb[0].mxu0
      %v1044 = vpop.f32.mrb[0].mxu0
      %v1045 = vpop.f32.mrb[0].mxu0
      %1046 = vdwg.mxu0
      %v1047 = vrcp.pop %v997
      %v1048 = vmul.f32 %v1042, %v1047
      %v1049 = vpack.c.bf16 %v1048, %v1048
      %v1051 = vunpack.c.l.b16 %v1049
      %v1052 = vpack.c.b16 %v1051, %v1051
      %1053 = vrot.lane.b32.xlu0 %v1052, 8
      %v1054 = vpop.permute.xlu0 %1053
      %vm1056 = vcmask 126016
      %1057 = vst.msk [vmem:[#allocation2] sm:$0xf] %vm1056, %v1054
      %1058 = vrot.lane.b32.xlu0 %v815, 112
      %v1059 = vpop.permute.xlu0 %1058
      %1060 = vrot.lane.b32.xlu0 %v815, 80
      %v1061 = vpop.permute.xlu0 %1060
      %v1063 = vsel %vm828, %v1059, 0
      %v1066 = vsel %vm828, %v1061, 0
      %1068 = vmatprep.subr.bf16.mxu0 0
      %1069 = vmatpush1.bf16.xpose.msra.mxu0 %v1066
      %1070 = vmatprep.subr.bf16.mxu0 0
      %1071 = vmatpush1.bf16.xpose.msra.mxu0 0
      %1072 = vmatprep.subr.bf16.mxu0 0
      %1073 = vmatpush1.bf16.xpose.msra.mxu0 0
      %1074 = vmatprep.subr.bf16.mxu0 0
      %1075 = vmatpush1.bf16.xpose.msra.mxu0 0
      %1076 = vmatprep.subr.bf16.mxu0 0
      %1077 = vmatpush1.bf16.xpose.msra.mxu0 0
      %1078 = vmatprep.subr.bf16.mxu0 0
      %1079 = vmatpush1.bf16.xpose.msra.mxu0 0
      %1080 = vmatprep.subr.bf16.mxu0 0
      %1081 = vmatpush1.bf16.xpose.msra.mxu0 0
      %1082 = vmatprep.subr.bf16.mxu0 0
      %1083 = vmatpush1.bf16.xpose.msra.mxu0 0
      %1084 = vmatprep.subr.bf16.mxu0 0
      %1085 = vmatpush1.bf16.xpose.msra.mxu0 0
      %1086 = vmatprep.subr.bf16.mxu0 0
      %1087 = vmatpush1.bf16.xpose.msra.mxu0 0
      %1088 = vmatprep.subr.bf16.mxu0 0
      %1089 = vmatpush1.bf16.xpose.msra.mxu0 0
      %1090 = vmatprep.subr.bf16.mxu0 0
      %1091 = vmatpush1.bf16.xpose.msra.mxu0 0
      %1092 = vmatprep.subr.bf16.mxu0 0
      %1093 = vmatpush1.bf16.xpose.msra.mxu0 0
      %1094 = vmatprep.subr.bf16.mxu0 0
      %1095 = vmatpush1.bf16.xpose.msra.mxu0 0
      %1096 = vmatprep.subr.bf16.mxu0 0
      %1097 = vmatpush1.bf16.xpose.msra.mxu0 0
      %1098 = vmatprep.subr.bf16.mxu0 0
      %1099 = vmatpush1.bf16.xpose.msra.mxu0 0
      %1100 = vmatprep.mubr.bf16.mxu0 0
      %1101 = vmatmul.mubr.bf16.gmra.mrb[0].mxu0 %v1063
      %v1102 = vpop.f32.mrb[0].mxu0
      %v1103 = vadd.f32 %v823, %v1102
      %v1104 = vpop.f32.mrb[0].mxu0
      %v1105 = vpop.f32.mrb[0].mxu0
      %v1106 = vpop.f32.mrb[0].mxu0
      %1107 = vdwg.mxu0
      %v1108 = vsel %vm828, %v1103, -inf
      %1109 = vmax.xlane.f32.xlu0 %v1108
      %v1110 = vpop.xlane.xlu0 %1109
      %v1111 = vsub.f32 %v1103, %v1110
      %v1112 = vmul.f32 %v1111, 1.442695
      %v1113 = vpow.pop %v1112
      %v1114 = vsel %vm828, %v1113, 0.0
      %1115 = vadd.xlane.f32.xlu0 %v1114
      %v1116 = vpop.xlane.xlu0 %1115
      %v1117 = vpack.c.bf16 %v1113, %v1113
      %1118 = vrot.lane.b32.xlu0 %v815, 48
      %v1119 = vpop.permute.xlu0 %1118
      %v1121 = vsel %vm828, %v1117, 0
      %v1124 = vsel %vm890, %v1119, 0
      %1126 = vmatprep.subr.bf16.mxu0 0
      %1127 = vmatpush1.bf16.msra.mxu0 %v1124
      %1128 = vmatprep.subr.bf16.mxu0 0
      %1129 = vmatpush1.bf16.msra.mxu0 0
      %1130 = vmatprep.subr.bf16.mxu0 0
      %1131 = vmatpush1.bf16.msra.mxu0 0
      %1132 = vmatprep.subr.bf16.mxu0 0
      %1133 = vmatpush1.bf16.msra.mxu0 0
      %1134 = vmatprep.subr.bf16.mxu0 0
      %1135 = vmatpush1.bf16.msra.mxu0 0
      %1136 = vmatprep.subr.bf16.mxu0 0
      %1137 = vmatpush1.bf16.msra.mxu0 0
      %1138 = vmatprep.subr.bf16.mxu0 0
      %1139 = vmatpush1.bf16.msra.mxu0 0
      %1140 = vmatprep.subr.bf16.mxu0 0
      %1141 = vmatpush1.bf16.msra.mxu0 0
      %1142 = vmatprep.subr.bf16.mxu0 0
      %1143 = vmatpush1.bf16.msra.mxu0 0
      %1144 = vmatprep.subr.bf16.mxu0 0
      %1145 = vmatpush1.bf16.msra.mxu0 0
      %1146 = vmatprep.subr.bf16.mxu0 0
      %1147 = vmatpush1.bf16.msra.mxu0 0
      %1148 = vmatprep.subr.bf16.mxu0 0
      %1149 = vmatpush1.bf16.msra.mxu0 0
      %1150 = vmatprep.subr.bf16.mxu0 0
      %1151 = vmatpush1.bf16.msra.mxu0 0
      %1152 = vmatprep.subr.bf16.mxu0 0
      %1153 = vmatpush1.bf16.msra.mxu0 0
      %1154 = vmatprep.subr.bf16.mxu0 0
      %1155 = vmatpush1.bf16.msra.mxu0 0
      %1156 = vmatprep.subr.bf16.mxu0 0
      %1157 = vmatpush1.bf16.msra.mxu0 0
      %1158 = vmatprep.mubr.bf16.mxu0 0
      %1159 = vmatmul.mubr.bf16.gmra.mrb[0].mxu0 %v1121
      %v1160 = vpop.f32.mrb[0].mxu0
      %v1161 = vadd.f32 0.0, %v1160
      %v1162 = vpop.f32.mrb[0].mxu0
      %v1163 = vpop.f32.mrb[0].mxu0
      %v1164 = vpop.f32.mrb[0].mxu0
      %1165 = vdwg.mxu0
      %v1166 = vrcp.pop %v1116
      %v1167 = vmul.f32 %v1161, %v1166
      %v1168 = vpack.c.bf16 %v1167, %v1167
      %v1170 = vunpack.c.l.b16 %v1168
      %v1171 = vpack.c.b16 %v1170, %v1170
      %1172 = vrot.lane.b32.xlu0 %v1171, 16
      %v1173 = vpop.permute.xlu0 %1172
      %vm1175 = vcmask 191616
      %1176 = vst.msk [vmem:[#allocation2] sm:$0xf] %vm1175, %v1173
      %1177 = vrot.lane.b32.xlu0 %v815, 104
      %v1178 = vpop.permute.xlu0 %1177
      %1179 = vrot.lane.b32.xlu0 %v815, 72
      %v1180 = vpop.permute.xlu0 %1179
      %v1182 = vsel %vm828, %v1178, 0
      %v1185 = vsel %vm828, %v1180, 0
      %1187 = vmatprep.subr.bf16.mxu0 0
      %1188 = vmatpush1.bf16.xpose.msra.mxu0 %v1185
      %1189 = vmatprep.subr.bf16.mxu0 0
      %1190 = vmatpush1.bf16.xpose.msra.mxu0 0
      %1191 = vmatprep.subr.bf16.mxu0 0
      %1192 = vmatpush1.bf16.xpose.msra.mxu0 0
      %1193 = vmatprep.subr.bf16.mxu0 0
      %1194 = vmatpush1.bf16.xpose.msra.mxu0 0
      %1195 = vmatprep.subr.bf16.mxu0 0
      %1196 = vmatpush1.bf16.xpose.msra.mxu0 0
      %1197 = vmatprep.subr.bf16.mxu0 0
      %1198 = vmatpush1.bf16.xpose.msra.mxu0 0
      %1199 = vmatprep.subr.bf16.mxu0 0
      %1200 = vmatpush1.bf16.xpose.msra.mxu0 0
      %1201 = vmatprep.subr.bf16.mxu0 0
      %1202 = vmatpush1.bf16.xpose.msra.mxu0 0
      %1203 = vmatprep.subr.bf16.mxu0 0
      %1204 = vmatpush1.bf16.xpose.msra.mxu0 0
      %1205 = vmatprep.subr.bf16.mxu0 0
      %1206 = vmatpush1.bf16.xpose.msra.mxu0 0
      %1207 = vmatprep.subr.bf16.mxu0 0
      %1208 = vmatpush1.bf16.xpose.msra.mxu0 0
      %1209 = vmatprep.subr.bf16.mxu0 0
      %1210 = vmatpush1.bf16.xpose.msra.mxu0 0
      %1211 = vmatprep.subr.bf16.mxu0 0
      %1212 = vmatpush1.bf16.xpose.msra.mxu0 0
      %1213 = vmatprep.subr.bf16.mxu0 0
      %1214 = vmatpush1.bf16.xpose.msra.mxu0 0
      %1215 = vmatprep.subr.bf16.mxu0 0
      %1216 = vmatpush1.bf16.xpose.msra.mxu0 0
      %1217 = vmatprep.subr.bf16.mxu0 0
      %1218 = vmatpush1.bf16.xpose.msra.mxu0 0
      %1219 = vmatprep.mubr.bf16.mxu0 0
      %1220 = vmatmul.mubr.bf16.gmra.mrb[0].mxu0 %v1182
      %v1221 = vpop.f32.mrb[0].mxu0
      %v1222 = vadd.f32 %v823, %v1221
      %v1223 = vpop.f32.mrb[0].mxu0
      %v1224 = vpop.f32.mrb[0].mxu0
      %v1225 = vpop.f32.mrb[0].mxu0
      %1226 = vdwg.mxu0
      %v1227 = vsel %vm828, %v1222, -inf
      %1228 = vmax.xlane.f32.xlu0 %v1227
      %v1229 = vpop.xlane.xlu0 %1228
      %v1230 = vsub.f32 %v1222, %v1229
      %v1231 = vmul.f32 %v1230, 1.442695
      %v1232 = vpow.pop %v1231
      %v1233 = vsel %vm828, %v1232, 0.0
      %1234 = vadd.xlane.f32.xlu0 %v1233
      %v1235 = vpop.xlane.xlu0 %1234
      %v1236 = vpack.c.bf16 %v1232, %v1232
      %1237 = vrot.lane.b32.xlu0 %v815, 40
      %v1238 = vpop.permute.xlu0 %1237
      %v1240 = vsel %vm828, %v1236, 0
      %v1243 = vsel %vm890, %v1238, 0
      %1245 = vmatprep.subr.bf16.mxu0 0
      %1246 = vmatpush1.bf16.msra.mxu0 %v1243
      %1247 = vmatprep.subr.bf16.mxu0 0
      %1248 = vmatpush1.bf16.msra.mxu0 0
      %1249 = vmatprep.subr.bf16.mxu0 0
      %1250 = vmatpush1.bf16.msra.mxu0 0
      %1251 = vmatprep.subr.bf16.mxu0 0
      %1252 = vmatpush1.bf16.msra.mxu0 0
      %1253 = vmatprep.subr.bf16.mxu0 0
      %1254 = vmatpush1.bf16.msra.mxu0 0
      %1255 = vmatprep.subr.bf16.mxu0 0
      %1256 = vmatpush1.bf16.msra.mxu0 0
      %1257 = vmatprep.subr.bf16.mxu0 0
      %1258 = vmatpush1.bf16.msra.mxu0 0
      %1259 = vmatprep.subr.bf16.mxu0 0
      %1260 = vmatpush1.bf16.msra.mxu0 0
      %1261 = vmatprep.subr.bf16.mxu0 0
      %1262 = vmatpush1.bf16.msra.mxu0 0
      %1263 = vmatprep.subr.bf16.mxu0 0
      %1264 = vmatpush1.bf16.msra.mxu0 0
      %1265 = vmatprep.subr.bf16.mxu0 0
      %1266 = vmatpush1.bf16.msra.mxu0 0
      %1267 = vmatprep.subr.bf16.mxu0 0
      %1268 = vmatpush1.bf16.msra.mxu0 0
      %1269 = vmatprep.subr.bf16.mxu0 0
      %1270 = vmatpush1.bf16.msra.mxu0 0
      %1271 = vmatprep.subr.bf16.mxu0 0
      %1272 = vmatpush1.bf16.msra.mxu0 0
      %1273 = vmatprep.subr.bf16.mxu0 0
      %1274 = vmatpush1.bf16.msra.mxu0 0
      %1275 = vmatprep.subr.bf16.mxu0 0
      %1276 = vmatpush1.bf16.msra.mxu0 0
      %1277 = vmatprep.mubr.bf16.mxu0 0
      %1278 = vmatmul.mubr.bf16.gmra.mrb[0].mxu0 %v1240
      %v1279 = vpop.f32.mrb[0].mxu0
      %v1280 = vadd.f32 0.0, %v1279
      %v1281 = vpop.f32.mrb[0].mxu0
      %v1282 = vpop.f32.mrb[0].mxu0
      %v1283 = vpop.f32.mrb[0].mxu0
      %1284 = vdwg.mxu0
      %v1285 = vrcp.pop %v1235
      %v1286 = vmul.f32 %v1280, %v1285
      %v1287 = vpack.c.bf16 %v1286, %v1286
      %v1289 = vunpack.c.l.b16 %v1287
      %v1290 = vpack.c.b16 %v1289, %v1289
      %1291 = vrot.lane.b32.xlu0 %v1290, 24
      %v1292 = vpop.permute.xlu0 %1291
      %vm1294 = vcmask 257216
      %1295 = vst.msk [vmem:[#allocation2] sm:$0xf] %vm1294, %v1292
      %v1296 = vld [vmem:[#allocation2] sm:$0xf]
      %v1297 = vld [vmem:[%s8] sm:$0xf]
      %v1298 = vld [vmem:[%s8 + $0x4] sm:$0xf]
      %v1299 = vld [vmem:[%s8 + $0x8] sm:$0xf]
      %v1300 = vld [vmem:[%s8 + $0xc] sm:$0xf]
      %v1301 = vld [vmem:[%s9] sm:$0x1]
      %v1303 = vlaneseq
      %v1304 = vshrl.u32 %v1303, 7
      %v1305 = vsub.s32 0, %v1304
      %v1306 = vrot.slane %v1301, %v1305
      %v1312 = vunpack.c.l.b16 %v1297
      %v1313 = vunpack.c.l.b16 %v1298
      %v1314 = vunpack.c.l.b16 %v1299
      %v1315 = vunpack.c.l.b16 %v1300
      %v1316 = vpack.c.b16 %v1313, %v1312
      %v1317 = vpack.c.b16 %v1315, %v1314
      %v1321 = vsel %vm717, %v1296, 0
      %1323 = vmatprep.subr.bf16.mxu0 0
      %1324 = vmatpush1.bf16.msra.mxu0 %v1316
      %1325 = vmatprep.subr.bf16.mxu0 0
      %1326 = vmatpush1.bf16.msra.mxu0 %v1317
      %1327 = vmatprep.subr.bf16.mxu0 0
      %1328 = vmatpush1.bf16.msra.mxu0 0
      %1329 = vmatprep.subr.bf16.mxu0 0
      %1330 = vmatpush1.bf16.msra.mxu0 0
      %1331 = vmatprep.subr.bf16.mxu0 0
      %1332 = vmatpush1.bf16.msra.mxu0 0
      %1333 = vmatprep.subr.bf16.mxu0 0
      %1334 = vmatpush1.bf16.msra.mxu0 0
      %1335 = vmatprep.subr.bf16.mxu0 0
      %1336 = vmatpush1.bf16.msra.mxu0 0
      %1337 = vmatprep.subr.bf16.mxu0 0
      %1338 = vmatpush1.bf16.msra.mxu0 0
      %1339 = vmatprep.subr.bf16.mxu0 0
      %1340 = vmatpush1.bf16.msra.mxu0 0
      %1341 = vmatprep.subr.bf16.mxu0 0
      %1342 = vmatpush1.bf16.msra.mxu0 0
      %1343 = vmatprep.subr.bf16.mxu0 0
      %1344 = vmatpush1.bf16.msra.mxu0 0
      %1345 = vmatprep.subr.bf16.mxu0 0
      %1346 = vmatpush1.bf16.msra.mxu0 0
      %1347 = vmatprep.subr.bf16.mxu0 0
      %1348 = vmatpush1.bf16.msra.mxu0 0
      %1349 = vmatprep.subr.bf16.mxu0 0
      %1350 = vmatpush1.bf16.msra.mxu0 0
      %1351 = vmatprep.subr.bf16.mxu0 0
      %1352 = vmatpush1.bf16.msra.mxu0 0
      %1353 = vmatprep.subr.bf16.mxu0 0
      %1354 = vmatpush1.bf16.msra.mxu0 0
      %1355 = vmatprep.mubr.bf16.mxu0 0
      %1356 = vmatmul.mubr.bf16.gmra.mrb[0].mxu0 %v1321
      %v1357 = vpop.f32.mrb[0].mxu0
      %v1358 = vadd.f32 %v1306, %v1357
      %v1359 = vpop.f32.mrb[0].mxu0
      %v1360 = vpop.f32.mrb[0].mxu0
      %v1361 = vpop.f32.mrb[0].mxu0
      %1362 = vdwg.mxu0
      %v1363 = vadd.f32 %v1358, %v712
      %v1364 = vsel %vm717, %v1363, 0.0
      %1365 = vadd.xlane.f32.xlu0 %v1364
      %v1366 = vpop.xlane.xlu0 %1365
      %v1367 = vmul.f32 %v1366, %v721
      %v1368 = vsub.f32 %v1363, %v1367
      %v1369 = vmul.f32 %v1368, %v1368
      %v1370 = vsel %vm717, %v1369, 0.0
      %1371 = vadd.xlane.f32.xlu0 %v1370
      %v1372 = vpop.xlane.xlu0 %1371
      %v1373 = vmul.f32 %v1372, %v721
      %v1374 = vadd.f32 %v1373, 1e-06
      %v1375 = vrsqrt.pop %v1374
      %v1376 = vmul.f32 %v1368, %v1375
      %v1377 = vld [vmem:[%s10] sm:$0x1]
      %v1379 = vlaneseq
      %v1380 = vshrl.u32 %v1379, 7
      %v1381 = vsub.s32 0, %v1380
      %v1382 = vrot.slane %v1377, %v1381
      %v1384 = vmul.f32 %v1376, %v1382
      %v1385 = vld [vmem:[%s11] sm:$0x1]
      %v1387 = vlaneseq
      %v1388 = vshrl.u32 %v1387, 7
      %v1389 = vsub.s32 0, %v1388
      %v1390 = vrot.slane %v1385, %v1389
      %v1392 = vadd.f32 %v1384, %v1390
      %v1393 = vpack.c.bf16 %v1392, %v1392
      %v1394 = vld [vmem:[%s12] sm:$0xf]
      %v1395 = vld [vmem:[%s12 + $0x4] sm:$0xf]
      %v1396 = vld [vmem:[%s12 + $0x8] sm:$0xf]
      %v1397 = vld [vmem:[%s12 + $0xc] sm:$0xf]
      %v1398 = vld [vmem:[%s13] sm:$0x1]
      %v1400 = vlaneseq
      %v1401 = vshrl.u32 %v1400, 7
      %v1402 = vsub.s32 0, %v1401
      %v1403 = vrot.slane %v1398, %v1402
      %v1409 = vunpack.c.l.b16 %v1394
      %v1410 = vunpack.c.l.b16 %v1395
      %v1411 = vunpack.c.l.b16 %v1396
      %v1412 = vunpack.c.l.b16 %v1397
      %v1413 = vpack.c.b16 %v1410, %v1409
      %v1414 = vpack.c.b16 %v1412, %v1411
      %v1418 = vsel %vm717, %v1393, 0
      %1420 = vmatprep.subr.bf16.mxu0 0
      %1421 = vmatpush1.bf16.msra.mxu0 %v1413
      %1422 = vmatprep.subr.bf16.mxu0 0
      %1423 = vmatpush1.bf16.msra.mxu0 %v1414
      %1424 = vmatprep.subr.bf16.mxu0 0
      %1425 = vmatpush1.bf16.msra.mxu0 0
      %1426 = vmatprep.subr.bf16.mxu0 0
      %1427 = vmatpush1.bf16.msra.mxu0 0
      %1428 = vmatprep.subr.bf16.mxu0 0
      %1429 = vmatpush1.bf16.msra.mxu0 0
      %1430 = vmatprep.subr.bf16.mxu0 0
      %1431 = vmatpush1.bf16.msra.mxu0 0
      %1432 = vmatprep.subr.bf16.mxu0 0
      %1433 = vmatpush1.bf16.msra.mxu0 0
      %1434 = vmatprep.subr.bf16.mxu0 0
      %1435 = vmatpush1.bf16.msra.mxu0 0
      %1436 = vmatprep.subr.bf16.mxu0 0
      %1437 = vmatpush1.bf16.msra.mxu0 0
      %1438 = vmatprep.subr.bf16.mxu0 0
      %1439 = vmatpush1.bf16.msra.mxu0 0
      %1440 = vmatprep.subr.bf16.mxu0 0
      %1441 = vmatpush1.bf16.msra.mxu0 0
      %1442 = vmatprep.subr.bf16.mxu0 0
      %1443 = vmatpush1.bf16.msra.mxu0 0
      %1444 = vmatprep.subr.bf16.mxu0 0
      %1445 = vmatpush1.bf16.msra.mxu0 0
      %1446 = vmatprep.subr.bf16.mxu0 0
      %1447 = vmatpush1.bf16.msra.mxu0 0
      %1448 = vmatprep.subr.bf16.mxu0 0
      %1449 = vmatpush1.bf16.msra.mxu0 0
      %1450 = vmatprep.subr.bf16.mxu0 0
      %1451 = vmatpush1.bf16.msra.mxu0 0
      %1452 = vmatprep.mubr.bf16.mxu0 0
      %1453 = vmatmul.mubr.bf16.gmra.mrb[0].mxu0 %v1418
      %v1454 = vpop.f32.mrb[0].mxu0
      %v1455 = vadd.f32 %v1403, %v1454
      %v1456 = vpop.f32.mrb[0].mxu0
      %v1457 = vpop.f32.mrb[0].mxu0
      %v1458 = vpop.f32.mrb[0].mxu0
      %1459 = vdwg.mxu0
      %v1460 = vmax.f32 %v1455, 0.0
      %v1461 = vpack.c.bf16 %v1460, %v1460
      %v1462 = vld [vmem:[%s14] sm:$0xf]
      %v1463 = vld [vmem:[%s14 + $0x4] sm:$0xf]
      %v1464 = vld [vmem:[%s14 + $0x8] sm:$0xf]
      %v1465 = vld [vmem:[%s14 + $0xc] sm:$0xf]
      %v1466 = vld [vmem:[%s14 + $0x10] sm:$0xf]
      %v1467 = vld [vmem:[%s14 + $0x14] sm:$0xf]
      %v1468 = vld [vmem:[%s14 + $0x18] sm:$0xf]
      %v1469 = vld [vmem:[%s14 + $0x1c] sm:$0xf]
      %v1470 = vld [vmem:[%s15] sm:$0x1]
      %v1472 = vlaneseq
      %v1473 = vshrl.u32 %v1472, 7
      %v1474 = vsub.s32 0, %v1473
      %v1475 = vrot.slane %v1470, %v1474
      %v1485 = vunpack.c.l.b16 %v1462
      %v1486 = vunpack.c.l.b16 %v1463
      %v1487 = vunpack.c.l.b16 %v1464
      %v1488 = vunpack.c.l.b16 %v1465
      %v1489 = vunpack.c.l.b16 %v1466
      %v1490 = vunpack.c.l.b16 %v1467
      %v1491 = vunpack.c.l.b16 %v1468
      %v1492 = vunpack.c.l.b16 %v1469
      %v1493 = vpack.c.b16 %v1486, %v1485
      %v1494 = vpack.c.b16 %v1488, %v1487
      %v1495 = vpack.c.b16 %v1490, %v1489
      %v1496 = vpack.c.b16 %v1492, %v1491
      %vm1501 = vcmask 523264
      %v1503 = vsel %vm1501, %v1461, 0
      %1505 = vmatprep.subr.bf16.mxu0 0
      %1506 = vmatpush1.bf16.msra.mxu0 %v1493
      %1507 = vmatprep.subr.bf16.mxu0 0
      %1508 = vmatpush1.bf16.msra.mxu0 %v1494
      %1509 = vmatprep.subr.bf16.mxu0 0
      %1510 = vmatpush1.bf16.msra.mxu0 %v1495
      %1511 = vmatprep.subr.bf16.mxu0 0
      %1512 = vmatpush1.bf16.msra.mxu0 %v1496
      %1513 = vmatprep.subr.bf16.mxu0 0
      %1514 = vmatpush1.bf16.msra.mxu0 0
      %1515 = vmatprep.subr.bf16.mxu0 0
      %1516 = vmatpush1.bf16.msra.mxu0 0
      %1517 = vmatprep.subr.bf16.mxu0 0
      %1518 = vmatpush1.bf16.msra.mxu0 0
      %1519 = vmatprep.subr.bf16.mxu0 0
      %1520 = vmatpush1.bf16.msra.mxu0 0
      %1521 = vmatprep.subr.bf16.mxu0 0
      %1522 = vmatpush1.bf16.msra.mxu0 0
      %1523 = vmatprep.subr.bf16.mxu0 0
      %1524 = vmatpush1.bf16.msra.mxu0 0
      %1525 = vmatprep.subr.bf16.mxu0 0
      %1526 = vmatpush1.bf16.msra.mxu0 0
      %1527 = vmatprep.subr.bf16.mxu0 0
      %1528 = vmatpush1.bf16.msra.mxu0 0
      %1529 = vmatprep.subr.bf16.mxu0 0
      %1530 = vmatpush1.bf16.msra.mxu0 0
      %1531 = vmatprep.subr.bf16.mxu0 0
      %1532 = vmatpush1.bf16.msra.mxu0 0
      %1533 = vmatprep.subr.bf16.mxu0 0
      %1534 = vmatpush1.bf16.msra.mxu0 0
      %1535 = vmatprep.subr.bf16.mxu0 0
      %1536 = vmatpush1.bf16.msra.mxu0 0
      %1537 = vmatprep.mubr.bf16.mxu0 0
      %1538 = vmatmul.mubr.bf16.gmra.mrb[0].mxu0 %v1503
      %v1539 = vpop.f32.mrb[0].mxu0
      %v1540 = vadd.f32 %v1475, %v1539
      %v1541 = vpop.f32.mrb[0].mxu0
      %v1542 = vpop.f32.mrb[0].mxu0
      %v1543 = vpop.f32.mrb[0].mxu0
      %1544 = vdwg.mxu0
      %v1545 = vadd.f32 %v1540, %v1363
      %v1546 = vpack.c.bf16 %v1545, %v1545
      %v1547 = vld [vmem:[%s16] sm:$0xf]
      %v1548 = vld [vmem:[%s16 + $0x4] sm:$0xf]
      %v1549 = vld [vmem:[%s16 + $0x8] sm:$0xf]
      %v1550 = vld [vmem:[%s16 + $0xc] sm:$0xf]
      %v1551 = vld [vmem:[%s17] sm:$0x1]
      %v1553 = vlaneseq
      %v1554 = vshrl.u32 %v1553, 7
      %v1555 = vsub.s32 0, %v1554
      %v1556 = vrot.slane %v1551, %v1555
      %v1562 = vunpack.c.l.b16 %v1547
      %v1563 = vunpack.c.l.b16 %v1548
      %v1564 = vunpack.c.l.b16 %v1549
      %v1565 = vunpack.c.l.b16 %v1550
      %v1566 = vpack.c.b16 %v1563, %v1562
      %v1567 = vpack.c.b16 %v1565, %v1564
      %v1571 = vsel %vm717, %v1546, 0
      %1573 = vmatprep.subr.bf16.mxu0 0
      %1574 = vmatpush1.bf16.msra.mxu0 %v1566
      %1575 = vmatprep.subr.bf16.mxu0 0
      %1576 = vmatpush1.bf16.msra.mxu0 %v1567
      %1577 = vmatprep.subr.bf16.mxu0 0
      %1578 = vmatpush1.bf16.msra.mxu0 0
      %1579 = vmatprep.subr.bf16.mxu0 0
      %1580 = vmatpush1.bf16.msra.mxu0 0
      %1581 = vmatprep.subr.bf16.mxu0 0
      %1582 = vmatpush1.bf16.msra.mxu0 0
      %1583 = vmatprep.subr.bf16.mxu0 0
      %1584 = vmatpush1.bf16.msra.mxu0 0
      %1585 = vmatprep.subr.bf16.mxu0 0
      %1586 = vmatpush1.bf16.msra.mxu0 0
      %1587 = vmatprep.subr.bf16.mxu0 0
      %1588 = vmatpush1.bf16.msra.mxu0 0
      %1589 = vmatprep.subr.bf16.mxu0 0
      %1590 = vmatpush1.bf16.msra.mxu0 0
      %1591 = vmatprep.subr.bf16.mxu0 0
      %1592 = vmatpush1.bf16.msra.mxu0 0
      %1593 = vmatprep.subr.bf16.mxu0 0
      %1594 = vmatpush1.bf16.msra.mxu0 0
      %1595 = vmatprep.subr.bf16.mxu0 0
      %1596 = vmatpush1.bf16.msra.mxu0 0
      %1597 = vmatprep.subr.bf16.mxu0 0
      %1598 = vmatpush1.bf16.msra.mxu0 0
      %1599 = vmatprep.subr.bf16.mxu0 0
      %1600 = vmatpush1.bf16.msra.mxu0 0
      %1601 = vmatprep.subr.bf16.mxu0 0
      %1602 = vmatpush1.bf16.msra.mxu0 0
      %1603 = vmatprep.subr.bf16.mxu0 0
      %1604 = vmatpush1.bf16.msra.mxu0 0
      %1605 = vmatprep.mubr.bf16.mxu0 0
      %1606 = vmatmul.mubr.bf16.gmra.mrb[0].mxu0 %v1571
      %v1607 = vpop.f32.mrb[0].mxu0
      %v1608 = vadd.f32 %v1556, %v1607
      %v1609 = vpop.f32.mrb[0].mxu0
      %v1610 = vpop.f32.mrb[0].mxu0
      %v1611 = vpop.f32.mrb[0].mxu0
      %1612 = vdwg.mxu0
      %vm1613 = vcmask 130048
      %v1614 = vsel %vm1613, %v1608, 0.0
      %1615 = vadd.xlane.f32.xlu0 %v1614
      %v1616 = vpop.xlane.xlu0 %1615
      %v1617 = vrcp.pop 16.0
      %v1618 = vmul.f32 %v1616, %v1617
      %v1619 = vsub.f32 %v1608, %v1618
      %v1620 = vmul.f32 %v1619, %v1619
      %v1621 = vsel %vm1613, %v1620, 0.0
      %1622 = vadd.xlane.f32.xlu0 %v1621
      %v1623 = vpop.xlane.xlu0 %1622
      %v1624 = vmul.f32 %v1623, %v1617
      %v1625 = vadd.f32 %v1624, 1e-06
      %v1626 = vrsqrt.pop %v1625
      %v1627 = vmul.f32 %v1619, %v1626
      %v1628 = vld [vmem:[%s18] sm:$0x1]
      %v1630 = vlaneseq
      %v1631 = vshrl.u32 %v1630, 7
      %v1632 = vsub.s32 0, %v1631
      %v1633 = vrot.slane %v1628, %v1632
      %v1635 = vmul.f32 %v1627, %v1633
      %v1636 = vld [vmem:[%s19] sm:$0x1]
      %v1638 = vlaneseq
      %v1639 = vshrl.u32 %v1638, 7
      %v1640 = vsub.s32 0, %v1639
      %v1641 = vrot.slane %v1636, %v1640
      %v1643 = vadd.f32 %v1635, %v1641
      %v1644 = vmax.f32 %v1643, 0.0
      %1645 = vst [vmem:[%s638] sm:$0xff] 0.0
      %1646 = vst.msk [vmem:[%s638] sm:$0xff] %vm1613, %v1644
      %p1647 = scmp.lt.s32.totalorder %s31, 1
      %s1648 = scalar_select %p1647, %s31, 1
      %s1649 = smul.addr %s1648, 8
      %s1650 = scalar_lea.vmem %s20, %s1649
      // Predicated region
      $region101: #{transformer_dense_block_fwd.3} parent=99 // pred_check
        %p1651 = pneg %p479
      $region102: #{transformer_dense_block_fwd.3} parent=99 // pred_check_branch
        %1653 = sbr.rel (%p1651) target = $region104
      $region103: #{transformer_dense_block_fwd.3} parent=99 // pred_region
        _
      $region104: #{transformer_dense_block_fwd.3} parent=99 // pred_fallthru
        _
    $region100: #{transformer_dense_block_fwd.3} parent=5 // pred_fallthru
      _
    %p1654 = scmp.le.s32.totalorder 2, %s26
    // Predicated region
    $region105: #{transformer_dense_block_fwd.3} parent=5 // pred_check
      %p1655 = pneg %p1654
    $region106: #{transformer_dense_block_fwd.3} parent=5 // pred_check_branch
      %1657 = sbr.rel (%p1655) target = $region108
    $region107: #{transformer_dense_block_fwd.3} parent=5 // pred_region
      %s1658 = ssub.s32 %s26, 2
      // Predicated region
      $region109: #{transformer_dense_block_fwd.3} parent=107 // pred_check
        %p1659 = pneg %p485
      $region110: #{transformer_dense_block_fwd.3} parent=107 // pred_check_branch
        %1661 = sbr.rel (%p1659) target = $region112
      $region111: #{transformer_dense_block_fwd.3} parent=107 // pred_region
        %p1662 = scmp.lt.s32.totalorder %s32, 1
        %s1663 = scalar_select %p1662, %s32, 1
        %s1664 = smul.addr %s1663, 8
        %s1665 = scalar_lea.vmem %s20, %s1664
      $region112: #{transformer_dense_block_fwd.3} parent=107 // pred_fallthru
        _
    $region108: #{transformer_dense_block_fwd.3} parent=5 // pred_fallthru
      _
  $region6: #{transformer_dense_block_fwd.3} parent=0 // loop_footer
    %s30 = sadd.s32 1, %s26
  $region7: #{transformer_dense_block_fwd.3} parent=0 // loop_footer_branch
    %25 = sbr.rel target = $region3
  $region8: #{transformer_dense_block_fwd.3} parent=0 // loop_exit
    _

// kernel: transformer_dense_block_fwd.2
$region0: #{transformer_dense_block_fwd.2}
  #allocation0 [shape = 'u32[]', space=smem, size = 0x4, offset = 0x4, fixed_abs, tag = 'smem constant byte address 0x4 - core index']
  #allocation1 [shape = 'u32[144,128]{1,0:T(1,128)}', space=vmem, size = 0x12000, scoped, tag = 'internal scratch']
  #allocation2 [shape = 'bf16[8,32]{1,0:T(8,128)(2,1)}', space=vmem, size = 0x800, scoped, tag = 'scratch operand']
  %s0 = inlined_call_operand.vmem [shape: f32[2,8,32], index: 0, kind: input, shape index: {}]
  %s1 = inlined_call_operand.vmem [shape: s32[2,1,8], index: 1, kind: input, shape index: {}]
  %s2 = inlined_call_operand.vmem [shape: bf16[32,32], index: 2, kind: input, shape index: {}]
  %s3 = inlined_call_operand.vmem [shape: f32[1,32], index: 3, kind: input, shape index: {}]
  %s4 = inlined_call_operand.vmem [shape: f32[1,32], index: 4, kind: input, shape index: {}]
  %s5 = inlined_call_operand.vmem [shape: f32[1,32], index: 5, kind: input, shape index: {}]
  %s6 = inlined_call_operand.vmem [shape: bf16[32,96], index: 6, kind: input, shape index: {}]
  %s7 = inlined_call_operand.vmem [shape: f32[1,96], index: 7, kind: input, shape index: {}]
  %s8 = inlined_call_operand.vmem [shape: bf16[32,32], index: 8, kind: input, shape index: {}]
  %s9 = inlined_call_operand.vmem [shape: f32[1,32], index: 9, kind: input, shape index: {}]
  %s10 = inlined_call_operand.vmem [shape: f32[1,32], index: 10, kind: input, shape index: {}]
  %s11 = inlined_call_operand.vmem [shape: f32[1,32], index: 11, kind: input, shape index: {}]
  %s12 = inlined_call_operand.vmem [shape: bf16[32,64], index: 12, kind: input, shape index: {}]
  %s13 = inlined_call_operand.vmem [shape: f32[1,64], index: 13, kind: input, shape index: {}]
  %s14 = inlined_call_operand.vmem [shape: bf16[64,32], index: 14, kind: input, shape index: {}]
  %s15 = inlined_call_operand.vmem [shape: f32[1,32], index: 15, kind: input, shape index: {}]
  %s16 = inlined_call_operand.vmem [shape: bf16[32,16], index: 16, kind: input, shape index: {}]
  %s17 = inlined_call_operand.vmem [shape: f32[1,16], index: 17, kind: input, shape index: {}]
  %s18 = inlined_call_operand.vmem [shape: f32[1,16], index: 18, kind: input, shape index: {}]
  %s19 = inlined_call_operand.vmem [shape: f32[1,16], index: 19, kind: input, shape index: {}]
  %s20 = inlined_call_operand.vmem [shape: f32[2,8,128], index: 20, kind: output, shape index: {}]
  %s21 = sld [smem:[#allocation0]]
  $region113: #{transformer_dense_block_fwd.2} parent=0
    _
  %s23 = ssub.s32 1, %s21
  %s24 = scalar_select 0, %s23, %s21
  loop: start=0, step=1, limit=4
  $region2: #{transformer_dense_block_fwd.2} parent=0 // loop_pre_header
    _
  $region3: #{transformer_dense_block_fwd.2} parent=0 // loop_header
    %s26 = sphi 0, %s30
    %p27 = scmp.ge.s32.totalorder %s26, 4
    %s36 = sphi 0, %s38
    %s39 = sphi 0, %s36
    %s40 = sphi 0, %s39
    %s56 = sphi 0, %s40
    %s62 = sphi 0, %s64
    %s65 = sphi 0, %s62
    %s66 = sphi 0, %s65
    %s82 = sphi 0, %s66
    %s86 = sphi 0, %s86
    %s88 = sphi 0, %s86
    %s89 = sphi 0, %s88
    %s103 = sphi 0, %s89
    %s107 = sphi 0, %s107
    %s109 = sphi 0, %s107
    %s110 = sphi 0, %s109
    %s124 = sphi 0, %s110
    %s128 = sphi 0, %s128
    %s130 = sphi 0, %s128
    %s131 = sphi 0, %s130
    %s145 = sphi 0, %s131
    %s149 = sphi 0, %s149
    %s151 = sphi 0, %s149
    %s152 = sphi 0, %s151
    %s166 = sphi 0, %s152
    %s170 = sphi 0, %s170
    %s172 = sphi 0, %s170
    %s173 = sphi 0, %s172
    %s187 = sphi 0, %s173
    %s191 = sphi 0, %s191
    %s193 = sphi 0, %s191
    %s194 = sphi 0, %s193
    %s208 = sphi 0, %s194
    %s212 = sphi 0, %s212
    %s214 = sphi 0, %s212
    %s215 = sphi 0, %s214
    %s229 = sphi 0, %s215
    %s233 = sphi 0, %s233
    %s235 = sphi 0, %s233
    %s236 = sphi 0, %s235
    %s250 = sphi 0, %s236
    %s254 = sphi 0, %s254
    %s256 = sphi 0, %s254
    %s257 = sphi 0, %s256
    %s271 = sphi 0, %s257
    %s275 = sphi 0, %s275
    %s277 = sphi 0, %s275
    %s278 = sphi 0, %s277
    %s292 = sphi 0, %s278
    %s296 = sphi 0, %s296
    %s298 = sphi 0, %s296
    %s299 = sphi 0, %s298
    %s313 = sphi 0, %s299
    %s317 = sphi 0, %s317
    %s319 = sphi 0, %s317
    %s320 = sphi 0, %s319
    %s334 = sphi 0, %s320
    %s338 = sphi 0, %s338
    %s340 = sphi 0, %s338
    %s341 = sphi 0, %s340
    %s355 = sphi 0, %s341
    %s359 = sphi 0, %s359
    %s361 = sphi 0, %s359
    %s362 = sphi 0, %s361
    %s376 = sphi 0, %s362
    %s380 = sphi 0, %s380
    %s382 = sphi 0, %s380
    %s383 = sphi 0, %s382
    %s397 = sphi 0, %s383
    %s401 = sphi 0, %s401
    %s403 = sphi 0, %s401
    %s404 = sphi 0, %s403
    %s418 = sphi 0, %s404
    %s422 = sphi 0, %s422
    %s424 = sphi 0, %s422
    %s425 = sphi 0, %s424
    %s439 = sphi 0, %s425
    %s443 = sphi 0, %s443
    %s445 = sphi 0, %s443
    %s446 = sphi 0, %s445
    %s460 = sphi 0, %s446
    %s466 = sphi 0, %s468
    %s469 = sphi 0, %s466
    %s470 = sphi 0, %s469
    %s486 = sphi 0, %s470
  $region4: #{transformer_dense_block_fwd.2} parent=0 // loop_header_branch
    %29 = sbr.rel (%p27) target = $region8
  $region5: #{transformer_dense_block_fwd.2} parent=0 // loop_body
    %s31 = ssub.s32 %s26, 1
    %s32 = ssub.s32 %s26, 2
    %s33 = sadd.s32 %s26, 1
    %s34 = ssub.s32 %s26, %s33
    %p35 = scmp.eq.s32.totalorder %s34, 0
    %s37 = sadd.s32 %s36, 1
    %s38 = scalar_select %p35, %s36, %s37
    %p41 = pneg %p35
    %p42 = scmp.eq.s32.totalorder %s26, 1
    %p43 = por %p41, %p42
    %p44 = scmp.ne.s32.totalorder %s36, %s39
    %p45 = scmp.eq.s32.totalorder %s26, 0
    %p46 = por %p44, %p45
    %p47 = scmp.ne.s32.totalorder %s36, %s39
    %p48 = scmp.eq.s32.totalorder %s31, 1
    %p49 = por %p47, %p48
    %p50 = scmp.ne.s32.totalorder %s39, %s40
    %p51 = scmp.eq.s32.totalorder %s31, 0
    %p52 = por %p50, %p51
    %p53 = scmp.ne.s32.totalorder %s39, %s40
    %p54 = scmp.eq.s32.totalorder %s32, 1
    %p55 = por %p53, %p54
    %p57 = scmp.ne.s32.totalorder %s40, %s56
    %p58 = scmp.eq.s32.totalorder %s32, 0
    %p59 = por %p57, %p58
    %s60 = ssub.s32 %s26, %s33
    %p61 = scmp.eq.s32.totalorder %s60, 0
    %s63 = sadd.s32 %s62, 1
    %s64 = scalar_select %p61, %s62, %s63
    %p67 = pneg %p61
    %p68 = scmp.eq.s32.totalorder %s26, 1
    %p69 = por %p67, %p68
    %p70 = scmp.ne.s32.totalorder %s62, %s65
    %p71 = scmp.eq.s32.totalorder %s26, 0
    %p72 = por %p70, %p71
    %p73 = scmp.ne.s32.totalorder %s62, %s65
    %p74 = scmp.eq.s32.totalorder %s31, 1
    %p75 = por %p73, %p74
    %p76 = scmp.ne.s32.totalorder %s65, %s66
    %p77 = scmp.eq.s32.totalorder %s31, 0
    %p78 = por %p76, %p77
    %p79 = scmp.ne.s32.totalorder %s65, %s66
    %p80 = scmp.eq.s32.totalorder %s32, 1
    %p81 = por %p79, %p80
    %p83 = scmp.ne.s32.totalorder %s66, %s82
    %p84 = scmp.eq.s32.totalorder %s32, 0
    %p85 = por %p83, %p84
    %s87 = sadd.s32 %s86, 1
    %p90 = scmp.eq.s32.totalorder %s26, 1
    %p91 = scmp.ne.s32.totalorder %s86, %s88
    %p92 = scmp.eq.s32.totalorder %s26, 0
    %p93 = por %p91, %p92
    %p94 = scmp.ne.s32.totalorder %s86, %s88
    %p95 = scmp.eq.s32.totalorder %s31, 1
    %p96 = por %p94, %p95
    %p97 = scmp.ne.s32.totalorder %s88, %s89
    %p98 = scmp.eq.s32.totalorder %s31, 0
    %p99 = por %p97, %p98
    %p100 = scmp.ne.s32.totalorder %s88, %s89
    %p101 = scmp.eq.s32.totalorder %s32, 1
    %p102 = por %p100, %p101
    %p104 = scmp.ne.s32.totalorder %s89, %s103
    %p105 = scmp.eq.s32.totalorder %s32, 0
    %p106 = por %p104, %p105
    %s108 = sadd.s32 %s107, 1
    %p111 = scmp.eq.s32.totalorder %s26, 1
    %p112 = scmp.ne.s32.totalorder %s107, %s109
    %p113 = scmp.eq.s32.totalorder %s26, 0
    %p114 = por %p112, %p113
    %p115 = scmp.ne.s32.totalorder %s107, %s109
    %p116 = scmp.eq.s32.totalorder %s31, 1
    %p117 = por %p115, %p116
    %p118 = scmp.ne.s32.totalorder %s109, %s110
    %p119 = scmp.eq.s32.totalorder %s31, 0
    %p120 = por %p118, %p119
    %p121 = scmp.ne.s32.totalorder %s109, %s110
    %p122 = scmp.eq.s32.totalorder %s32, 1
    %p123 = por %p121, %p122
    %p125 = scmp.ne.s32.totalorder %s110, %s124
    %p126 = scmp.eq.s32.totalorder %s32, 0
    %p127 = por %p125, %p126
    %s129 = sadd.s32 %s128, 1
    %p132 = scmp.eq.s32.totalorder %s26, 1
    %p133 = scmp.ne.s32.totalorder %s128, %s130
    %p134 = scmp.eq.s32.totalorder %s26, 0
    %p135 = por %p133, %p134
    %p136 = scmp.ne.s32.totalorder %s128, %s130
    %p137 = scmp.eq.s32.totalorder %s31, 1
    %p138 = por %p136, %p137
    %p139 = scmp.ne.s32.totalorder %s130, %s131
    %p140 = scmp.eq.s32.totalorder %s31, 0
    %p141 = por %p139, %p140
    %p142 = scmp.ne.s32.totalorder %s130, %s131
    %p143 = scmp.eq.s32.totalorder %s32, 1
    %p144 = por %p142, %p143
    %p146 = scmp.ne.s32.totalorder %s131, %s145
    %p147 = scmp.eq.s32.totalorder %s32, 0
    %p148 = por %p146, %p147
    %s150 = sadd.s32 %s149, 1
    %p153 = scmp.eq.s32.totalorder %s26, 1
    %p154 = scmp.ne.s32.totalorder %s149, %s151
    %p155 = scmp.eq.s32.totalorder %s26, 0
    %p156 = por %p154, %p155
    %p157 = scmp.ne.s32.totalorder %s149, %s151
    %p158 = scmp.eq.s32.totalorder %s31, 1
    %p159 = por %p157, %p158
    %p160 = scmp.ne.s32.totalorder %s151, %s152
    %p161 = scmp.eq.s32.totalorder %s31, 0
    %p162 = por %p160, %p161
    %p163 = scmp.ne.s32.totalorder %s151, %s152
    %p164 = scmp.eq.s32.totalorder %s32, 1
    %p165 = por %p163, %p164
    %p167 = scmp.ne.s32.totalorder %s152, %s166
    %p168 = scmp.eq.s32.totalorder %s32, 0
    %p169 = por %p167, %p168
    %s171 = sadd.s32 %s170, 1
    %p174 = scmp.eq.s32.totalorder %s26, 1
    %p175 = scmp.ne.s32.totalorder %s170, %s172
    %p176 = scmp.eq.s32.totalorder %s26, 0
    %p177 = por %p175, %p176
    %p178 = scmp.ne.s32.totalorder %s170, %s172
    %p179 = scmp.eq.s32.totalorder %s31, 1
    %p180 = por %p178, %p179
    %p181 = scmp.ne.s32.totalorder %s172, %s173
    %p182 = scmp.eq.s32.totalorder %s31, 0
    %p183 = por %p181, %p182
    %p184 = scmp.ne.s32.totalorder %s172, %s173
    %p185 = scmp.eq.s32.totalorder %s32, 1
    %p186 = por %p184, %p185
    %p188 = scmp.ne.s32.totalorder %s173, %s187
    %p189 = scmp.eq.s32.totalorder %s32, 0
    %p190 = por %p188, %p189
    %s192 = sadd.s32 %s191, 1
    %p195 = scmp.eq.s32.totalorder %s26, 1
    %p196 = scmp.ne.s32.totalorder %s191, %s193
    %p197 = scmp.eq.s32.totalorder %s26, 0
    %p198 = por %p196, %p197
    %p199 = scmp.ne.s32.totalorder %s191, %s193
    %p200 = scmp.eq.s32.totalorder %s31, 1
    %p201 = por %p199, %p200
    %p202 = scmp.ne.s32.totalorder %s193, %s194
    %p203 = scmp.eq.s32.totalorder %s31, 0
    %p204 = por %p202, %p203
    %p205 = scmp.ne.s32.totalorder %s193, %s194
    %p206 = scmp.eq.s32.totalorder %s32, 1
    %p207 = por %p205, %p206
    %p209 = scmp.ne.s32.totalorder %s194, %s208
    %p210 = scmp.eq.s32.totalorder %s32, 0
    %p211 = por %p209, %p210
    %s213 = sadd.s32 %s212, 1
    %p216 = scmp.eq.s32.totalorder %s26, 1
    %p217 = scmp.ne.s32.totalorder %s212, %s214
    %p218 = scmp.eq.s32.totalorder %s26, 0
    %p219 = por %p217, %p218
    %p220 = scmp.ne.s32.totalorder %s212, %s214
    %p221 = scmp.eq.s32.totalorder %s31, 1
    %p222 = por %p220, %p221
    %p223 = scmp.ne.s32.totalorder %s214, %s215
    %p224 = scmp.eq.s32.totalorder %s31, 0
    %p225 = por %p223, %p224
    %p226 = scmp.ne.s32.totalorder %s214, %s215
    %p227 = scmp.eq.s32.totalorder %s32, 1
    %p228 = por %p226, %p227
    %p230 = scmp.ne.s32.totalorder %s215, %s229
    %p231 = scmp.eq.s32.totalorder %s32, 0
    %p232 = por %p230, %p231
    %s234 = sadd.s32 %s233, 1
    %p237 = scmp.eq.s32.totalorder %s26, 1
    %p238 = scmp.ne.s32.totalorder %s233, %s235
    %p239 = scmp.eq.s32.totalorder %s26, 0
    %p240 = por %p238, %p239
    %p241 = scmp.ne.s32.totalorder %s233, %s235
    %p242 = scmp.eq.s32.totalorder %s31, 1
    %p243 = por %p241, %p242
    %p244 = scmp.ne.s32.totalorder %s235, %s236
    %p245 = scmp.eq.s32.totalorder %s31, 0
    %p246 = por %p244, %p245
    %p247 = scmp.ne.s32.totalorder %s235, %s236
    %p248 = scmp.eq.s32.totalorder %s32, 1
    %p249 = por %p247, %p248
    %p251 = scmp.ne.s32.totalorder %s236, %s250
    %p252 = scmp.eq.s32.totalorder %s32, 0
    %p253 = por %p251, %p252
    %s255 = sadd.s32 %s254, 1
    %p258 = scmp.eq.s32.totalorder %s26, 1
    %p259 = scmp.ne.s32.totalorder %s254, %s256
    %p260 = scmp.eq.s32.totalorder %s26, 0
    %p261 = por %p259, %p260
    %p262 = scmp.ne.s32.totalorder %s254, %s256
    %p263 = scmp.eq.s32.totalorder %s31, 1
    %p264 = por %p262, %p263
    %p265 = scmp.ne.s32.totalorder %s256, %s257
    %p266 = scmp.eq.s32.totalorder %s31, 0
    %p267 = por %p265, %p266
    %p268 = scmp.ne.s32.totalorder %s256, %s257
    %p269 = scmp.eq.s32.totalorder %s32, 1
    %p270 = por %p268, %p269
    %p272 = scmp.ne.s32.totalorder %s257, %s271
    %p273 = scmp.eq.s32.totalorder %s32, 0
    %p274 = por %p272, %p273
    %s276 = sadd.s32 %s275, 1
    %p279 = scmp.eq.s32.totalorder %s26, 1
    %p280 = scmp.ne.s32.totalorder %s275, %s277
    %p281 = scmp.eq.s32.totalorder %s26, 0
    %p282 = por %p280, %p281
    %p283 = scmp.ne.s32.totalorder %s275, %s277
    %p284 = scmp.eq.s32.totalorder %s31, 1
    %p285 = por %p283, %p284
    %p286 = scmp.ne.s32.totalorder %s277, %s278
    %p287 = scmp.eq.s32.totalorder %s31, 0
    %p288 = por %p286, %p287
    %p289 = scmp.ne.s32.totalorder %s277, %s278
    %p290 = scmp.eq.s32.totalorder %s32, 1
    %p291 = por %p289, %p290
    %p293 = scmp.ne.s32.totalorder %s278, %s292
    %p294 = scmp.eq.s32.totalorder %s32, 0
    %p295 = por %p293, %p294
    %s297 = sadd.s32 %s296, 1
    %p300 = scmp.eq.s32.totalorder %s26, 1
    %p301 = scmp.ne.s32.totalorder %s296, %s298
    %p302 = scmp.eq.s32.totalorder %s26, 0
    %p303 = por %p301, %p302
    %p304 = scmp.ne.s32.totalorder %s296, %s298
    %p305 = scmp.eq.s32.totalorder %s31, 1
    %p306 = por %p304, %p305
    %p307 = scmp.ne.s32.totalorder %s298, %s299
    %p308 = scmp.eq.s32.totalorder %s31, 0
    %p309 = por %p307, %p308
    %p310 = scmp.ne.s32.totalorder %s298, %s299
    %p311 = scmp.eq.s32.totalorder %s32, 1
    %p312 = por %p310, %p311
    %p314 = scmp.ne.s32.totalorder %s299, %s313
    %p315 = scmp.eq.s32.totalorder %s32, 0
    %p316 = por %p314, %p315
    %s318 = sadd.s32 %s317, 1
    %p321 = scmp.eq.s32.totalorder %s26, 1
    %p322 = scmp.ne.s32.totalorder %s317, %s319
    %p323 = scmp.eq.s32.totalorder %s26, 0
    %p324 = por %p322, %p323
    %p325 = scmp.ne.s32.totalorder %s317, %s319
    %p326 = scmp.eq.s32.totalorder %s31, 1
    %p327 = por %p325, %p326
    %p328 = scmp.ne.s32.totalorder %s319, %s320
    %p329 = scmp.eq.s32.totalorder %s31, 0
    %p330 = por %p328, %p329
    %p331 = scmp.ne.s32.totalorder %s319, %s320
    %p332 = scmp.eq.s32.totalorder %s32, 1
    %p333 = por %p331, %p332
    %p335 = scmp.ne.s32.totalorder %s320, %s334
    %p336 = scmp.eq.s32.totalorder %s32, 0
    %p337 = por %p335, %p336
    %s339 = sadd.s32 %s338, 1
    %p342 = scmp.eq.s32.totalorder %s26, 1
    %p343 = scmp.ne.s32.totalorder %s338, %s340
    %p344 = scmp.eq.s32.totalorder %s26, 0
    %p345 = por %p343, %p344
    %p346 = scmp.ne.s32.totalorder %s338, %s340
    %p347 = scmp.eq.s32.totalorder %s31, 1
    %p348 = por %p346, %p347
    %p349 = scmp.ne.s32.totalorder %s340, %s341
    %p350 = scmp.eq.s32.totalorder %s31, 0
    %p351 = por %p349, %p350
    %p352 = scmp.ne.s32.totalorder %s340, %s341
    %p353 = scmp.eq.s32.totalorder %s32, 1
    %p354 = por %p352, %p353
    %p356 = scmp.ne.s32.totalorder %s341, %s355
    %p357 = scmp.eq.s32.totalorder %s32, 0
    %p358 = por %p356, %p357
    %s360 = sadd.s32 %s359, 1
    %p363 = scmp.eq.s32.totalorder %s26, 1
    %p364 = scmp.ne.s32.totalorder %s359, %s361
    %p365 = scmp.eq.s32.totalorder %s26, 0
    %p366 = por %p364, %p365
    %p367 = scmp.ne.s32.totalorder %s359, %s361
    %p368 = scmp.eq.s32.totalorder %s31, 1
    %p369 = por %p367, %p368
    %p370 = scmp.ne.s32.totalorder %s361, %s362
    %p371 = scmp.eq.s32.totalorder %s31, 0
    %p372 = por %p370, %p371
    %p373 = scmp.ne.s32.totalorder %s361, %s362
    %p374 = scmp.eq.s32.totalorder %s32, 1
    %p375 = por %p373, %p374
    %p377 = scmp.ne.s32.totalorder %s362, %s376
    %p378 = scmp.eq.s32.totalorder %s32, 0
    %p379 = por %p377, %p378
    %s381 = sadd.s32 %s380, 1
    %p384 = scmp.eq.s32.totalorder %s26, 1
    %p385 = scmp.ne.s32.totalorder %s380, %s382
    %p386 = scmp.eq.s32.totalorder %s26, 0
    %p387 = por %p385, %p386
    %p388 = scmp.ne.s32.totalorder %s380, %s382
    %p389 = scmp.eq.s32.totalorder %s31, 1
    %p390 = por %p388, %p389
    %p391 = scmp.ne.s32.totalorder %s382, %s383
    %p392 = scmp.eq.s32.totalorder %s31, 0
    %p393 = por %p391, %p392
    %p394 = scmp.ne.s32.totalorder %s382, %s383
    %p395 = scmp.eq.s32.totalorder %s32, 1
    %p396 = por %p394, %p395
    %p398 = scmp.ne.s32.totalorder %s383, %s397
    %p399 = scmp.eq.s32.totalorder %s32, 0
    %p400 = por %p398, %p399
    %s402 = sadd.s32 %s401, 1
    %p405 = scmp.eq.s32.totalorder %s26, 1
    %p406 = scmp.ne.s32.totalorder %s401, %s403
    %p407 = scmp.eq.s32.totalorder %s26, 0
    %p408 = por %p406, %p407
    %p409 = scmp.ne.s32.totalorder %s401, %s403
    %p410 = scmp.eq.s32.totalorder %s31, 1
    %p411 = por %p409, %p410
    %p412 = scmp.ne.s32.totalorder %s403, %s404
    %p413 = scmp.eq.s32.totalorder %s31, 0
    %p414 = por %p412, %p413
    %p415 = scmp.ne.s32.totalorder %s403, %s404
    %p416 = scmp.eq.s32.totalorder %s32, 1
    %p417 = por %p415, %p416
    %p419 = scmp.ne.s32.totalorder %s404, %s418
    %p420 = scmp.eq.s32.totalorder %s32, 0
    %p421 = por %p419, %p420
    %s423 = sadd.s32 %s422, 1
    %p426 = scmp.eq.s32.totalorder %s26, 1
    %p427 = scmp.ne.s32.totalorder %s422, %s424
    %p428 = scmp.eq.s32.totalorder %s26, 0
    %p429 = por %p427, %p428
    %p430 = scmp.ne.s32.totalorder %s422, %s424
    %p431 = scmp.eq.s32.totalorder %s31, 1
    %p432 = por %p430, %p431
    %p433 = scmp.ne.s32.totalorder %s424, %s425
    %p434 = scmp.eq.s32.totalorder %s31, 0
    %p435 = por %p433, %p434
    %p436 = scmp.ne.s32.totalorder %s424, %s425
    %p437 = scmp.eq.s32.totalorder %s32, 1
    %p438 = por %p436, %p437
    %p440 = scmp.ne.s32.totalorder %s425, %s439
    %p441 = scmp.eq.s32.totalorder %s32, 0
    %p442 = por %p440, %p441
    %s444 = sadd.s32 %s443, 1
    %p447 = scmp.eq.s32.totalorder %s26, 1
    %p448 = scmp.ne.s32.totalorder %s443, %s445
    %p449 = scmp.eq.s32.totalorder %s26, 0
    %p450 = por %p448, %p449
    %p451 = scmp.ne.s32.totalorder %s443, %s445
    %p452 = scmp.eq.s32.totalorder %s31, 1
    %p453 = por %p451, %p452
    %p454 = scmp.ne.s32.totalorder %s445, %s446
    %p455 = scmp.eq.s32.totalorder %s31, 0
    %p456 = por %p454, %p455
    %p457 = scmp.ne.s32.totalorder %s445, %s446
    %p458 = scmp.eq.s32.totalorder %s32, 1
    %p459 = por %p457, %p458
    %p461 = scmp.ne.s32.totalorder %s446, %s460
    %p462 = scmp.eq.s32.totalorder %s32, 0
    %p463 = por %p461, %p462
    %s464 = ssub.s32 %s26, %s33
    %p465 = scmp.eq.s32.totalorder %s464, 0
    %s467 = sadd.s32 %s466, 1
    %s468 = scalar_select %p465, %s466, %s467
    %p471 = pneg %p465
    %p472 = scmp.eq.s32.totalorder %s26, 1
    %p473 = por %p471, %p472
    %p474 = scmp.ne.s32.totalorder %s466, %s469
    %p475 = scmp.eq.s32.totalorder %s26, 0
    %p476 = por %p474, %p475
    %p477 = scmp.ne.s32.totalorder %s466, %s469
    %p478 = scmp.eq.s32.totalorder %s31, 1
    %p479 = por %p477, %p478
    %p480 = scmp.ne.s32.totalorder %s469, %s470
    %p481 = scmp.eq.s32.totalorder %s31, 0
    %p482 = por %p480, %p481
    %p483 = scmp.ne.s32.totalorder %s469, %s470
    %p484 = scmp.eq.s32.totalorder %s32, 1
    %p485 = por %p483, %p484
    %p487 = scmp.ne.s32.totalorder %s470, %s486
    %p488 = scmp.eq.s32.totalorder %s32, 0
    %p489 = por %p487, %p488
    %p490 = scmp.le.s32.totalorder 1, %s26
    %p491 = scmp.lt.s32.totalorder %s26, 3
    %p492 = pnand %p490, %p491
    %p493 = pneg %p492
    // Predicated region
    $region9: #{transformer_dense_block_fwd.2} parent=5 // pred_check
      _
    $region10: #{transformer_dense_block_fwd.2} parent=5 // pred_check_branch
      %495 = sbr.rel (%p492) target = $region12
    $region11: #{transformer_dense_block_fwd.2} parent=5 // pred_region
      %s496 = ssub.s32 %s26, 1
      // Predicated region
      $region13: #{transformer_dense_block_fwd.2} parent=11 // pred_check
        %p497 = pneg %p99
      $region14: #{transformer_dense_block_fwd.2} parent=11 // pred_check_branch
        %499 = sbr.rel (%p497) target = $region16
      $region15: #{transformer_dense_block_fwd.2} parent=11 // pred_region
        _
      $region16: #{transformer_dense_block_fwd.2} parent=11 // pred_fallthru
        _
      // Predicated region
      $region17: #{transformer_dense_block_fwd.2} parent=11 // pred_check
        %p500 = pneg %p120
      $region18: #{transformer_dense_block_fwd.2} parent=11 // pred_check_branch
        %502 = sbr.rel (%p500) target = $region20
      $region19: #{transformer_dense_block_fwd.2} parent=11 // pred_region
        _
      $region20: #{transformer_dense_block_fwd.2} parent=11 // pred_fallthru
        _
      // Predicated region
      $region21: #{transformer_dense_block_fwd.2} parent=11 // pred_check
        %p503 = pneg %p141
      $region22: #{transformer_dense_block_fwd.2} parent=11 // pred_check_branch
        %505 = sbr.rel (%p503) target = $region24
      $region23: #{transformer_dense_block_fwd.2} parent=11 // pred_region
        _
      $region24: #{transformer_dense_block_fwd.2} parent=11 // pred_fallthru
        _
      // Predicated region
      $region25: #{transformer_dense_block_fwd.2} parent=11 // pred_check
        %p506 = pneg %p162
      $region26: #{transformer_dense_block_fwd.2} parent=11 // pred_check_branch
        %508 = sbr.rel (%p506) target = $region28
      $region27: #{transformer_dense_block_fwd.2} parent=11 // pred_region
        _
      $region28: #{transformer_dense_block_fwd.2} parent=11 // pred_fallthru
        _
      // Predicated region
      $region29: #{transformer_dense_block_fwd.2} parent=11 // pred_check
        %p509 = pneg %p183
      $region30: #{transformer_dense_block_fwd.2} parent=11 // pred_check_branch
        %511 = sbr.rel (%p509) target = $region32
      $region31: #{transformer_dense_block_fwd.2} parent=11 // pred_region
        _
      $region32: #{transformer_dense_block_fwd.2} parent=11 // pred_fallthru
        _
      // Predicated region
      $region33: #{transformer_dense_block_fwd.2} parent=11 // pred_check
        %p512 = pneg %p204
      $region34: #{transformer_dense_block_fwd.2} parent=11 // pred_check_branch
        %514 = sbr.rel (%p512) target = $region36
      $region35: #{transformer_dense_block_fwd.2} parent=11 // pred_region
        _
      $region36: #{transformer_dense_block_fwd.2} parent=11 // pred_fallthru
        _
      // Predicated region
      $region37: #{transformer_dense_block_fwd.2} parent=11 // pred_check
        %p515 = pneg %p225
      $region38: #{transformer_dense_block_fwd.2} parent=11 // pred_check_branch
        %517 = sbr.rel (%p515) target = $region40
      $region39: #{transformer_dense_block_fwd.2} parent=11 // pred_region
        _
      $region40: #{transformer_dense_block_fwd.2} parent=11 // pred_fallthru
        _
      // Predicated region
      $region41: #{transformer_dense_block_fwd.2} parent=11 // pred_check
        %p518 = pneg %p246
      $region42: #{transformer_dense_block_fwd.2} parent=11 // pred_check_branch
        %520 = sbr.rel (%p518) target = $region44
      $region43: #{transformer_dense_block_fwd.2} parent=11 // pred_region
        _
      $region44: #{transformer_dense_block_fwd.2} parent=11 // pred_fallthru
        _
      // Predicated region
      $region45: #{transformer_dense_block_fwd.2} parent=11 // pred_check
        %p521 = pneg %p267
      $region46: #{transformer_dense_block_fwd.2} parent=11 // pred_check_branch
        %523 = sbr.rel (%p521) target = $region48
      $region47: #{transformer_dense_block_fwd.2} parent=11 // pred_region
        _
      $region48: #{transformer_dense_block_fwd.2} parent=11 // pred_fallthru
        _
      // Predicated region
      $region49: #{transformer_dense_block_fwd.2} parent=11 // pred_check
        %p524 = pneg %p288
      $region50: #{transformer_dense_block_fwd.2} parent=11 // pred_check_branch
        %526 = sbr.rel (%p524) target = $region52
      $region51: #{transformer_dense_block_fwd.2} parent=11 // pred_region
        _
      $region52: #{transformer_dense_block_fwd.2} parent=11 // pred_fallthru
        _
      // Predicated region
      $region53: #{transformer_dense_block_fwd.2} parent=11 // pred_check
        %p527 = pneg %p309
      $region54: #{transformer_dense_block_fwd.2} parent=11 // pred_check_branch
        %529 = sbr.rel (%p527) target = $region56
      $region55: #{transformer_dense_block_fwd.2} parent=11 // pred_region
        _
      $region56: #{transformer_dense_block_fwd.2} parent=11 // pred_fallthru
        _
      // Predicated region
      $region57: #{transformer_dense_block_fwd.2} parent=11 // pred_check
        %p530 = pneg %p330
      $region58: #{transformer_dense_block_fwd.2} parent=11 // pred_check_branch
        %532 = sbr.rel (%p530) target = $region60
      $region59: #{transformer_dense_block_fwd.2} parent=11 // pred_region
        _
      $region60: #{transformer_dense_block_fwd.2} parent=11 // pred_fallthru
        _
      // Predicated region
      $region61: #{transformer_dense_block_fwd.2} parent=11 // pred_check
        %p533 = pneg %p351
      $region62: #{transformer_dense_block_fwd.2} parent=11 // pred_check_branch
        %535 = sbr.rel (%p533) target = $region64
      $region63: #{transformer_dense_block_fwd.2} parent=11 // pred_region
        _
      $region64: #{transformer_dense_block_fwd.2} parent=11 // pred_fallthru
        _
      // Predicated region
      $region65: #{transformer_dense_block_fwd.2} parent=11 // pred_check
        %p536 = pneg %p372
      $region66: #{transformer_dense_block_fwd.2} parent=11 // pred_check_branch
        %538 = sbr.rel (%p536) target = $region68
      $region67: #{transformer_dense_block_fwd.2} parent=11 // pred_region
        _
      $region68: #{transformer_dense_block_fwd.2} parent=11 // pred_fallthru
        _
      // Predicated region
      $region69: #{transformer_dense_block_fwd.2} parent=11 // pred_check
        %p539 = pneg %p393
      $region70: #{transformer_dense_block_fwd.2} parent=11 // pred_check_branch
        %541 = sbr.rel (%p539) target = $region72
      $region71: #{transformer_dense_block_fwd.2} parent=11 // pred_region
        _
      $region72: #{transformer_dense_block_fwd.2} parent=11 // pred_fallthru
        _
      // Predicated region
      $region73: #{transformer_dense_block_fwd.2} parent=11 // pred_check
        %p542 = pneg %p414
      $region74: #{transformer_dense_block_fwd.2} parent=11 // pred_check_branch
        %544 = sbr.rel (%p542) target = $region76
      $region75: #{transformer_dense_block_fwd.2} parent=11 // pred_region
        _
      $region76: #{transformer_dense_block_fwd.2} parent=11 // pred_fallthru
        _
      // Predicated region
      $region77: #{transformer_dense_block_fwd.2} parent=11 // pred_check
        %p545 = pneg %p435
      $region78: #{transformer_dense_block_fwd.2} parent=11 // pred_check_branch
        %547 = sbr.rel (%p545) target = $region80
      $region79: #{transformer_dense_block_fwd.2} parent=11 // pred_region
        _
      $region80: #{transformer_dense_block_fwd.2} parent=11 // pred_fallthru
        _
      // Predicated region
      $region81: #{transformer_dense_block_fwd.2} parent=11 // pred_check
        %p548 = pneg %p456
      $region82: #{transformer_dense_block_fwd.2} parent=11 // pred_check_branch
        %550 = sbr.rel (%p548) target = $region84
      $region83: #{transformer_dense_block_fwd.2} parent=11 // pred_region
        _
      $region84: #{transformer_dense_block_fwd.2} parent=11 // pred_fallthru
        _
    $region12: #{transformer_dense_block_fwd.2} parent=5 // pred_fallthru
      _
    %p551 = scmp.lt.s32.totalorder %s26, 2
    // Predicated region
    $region85: #{transformer_dense_block_fwd.2} parent=5 // pred_check
      %p552 = pneg %p551
    $region86: #{transformer_dense_block_fwd.2} parent=5 // pred_check_branch
      %554 = sbr.rel (%p552) target = $region88
    $region87: #{transformer_dense_block_fwd.2} parent=5 // pred_region
      // Predicated region
      $region89: #{transformer_dense_block_fwd.2} parent=87 // pred_check
        %p555 = pneg %p46
      $region90: #{transformer_dense_block_fwd.2} parent=87 // pred_check_branch
        %557 = sbr.rel (%p555) target = $region92
      $region91: #{transformer_dense_block_fwd.2} parent=87 // pred_region
        %p558 = scmp.lt.s32.totalorder %s26, 1
        %s559 = scalar_select %p558, %s26, 1
        %s560 = smul.addr %s559, 8
        %s561 = scalar_lea.vmem %s0, %s560
      $region92: #{transformer_dense_block_fwd.2} parent=87 // pred_fallthru
        _
      // Predicated region
      $region93: #{transformer_dense_block_fwd.2} parent=87 // pred_check
        %p562 = pneg %p72
      $region94: #{transformer_dense_block_fwd.2} parent=87 // pred_check_branch
        %564 = sbr.rel (%p562) target = $region96
      $region95: #{transformer_dense_block_fwd.2} parent=87 // pred_region
        %p565 = scmp.lt.s32.totalorder %s26, 1
        %s566 = scalar_select %p565, %s26, 1
        %s567 = scalar_lea.vmem %s1, %s566
      $region96: #{transformer_dense_block_fwd.2} parent=87 // pred_fallthru
        _
    $region88: #{transformer_dense_block_fwd.2} parent=5 // pred_fallthru
      _
    %p568 = scmp.le.s32.totalorder 1, %s26
    %p569 = scmp.lt.s32.totalorder %s26, 3
    %p570 = pnand %p568, %p569
    %p571 = pneg %p570
    // Predicated region
    $region97: #{transformer_dense_block_fwd.2} parent=5 // pred_check
      _
    $region98: #{transformer_dense_block_fwd.2} parent=5 // pred_check_branch
      %573 = sbr.rel (%p570) target = $region100
    $region99: #{transformer_dense_block_fwd.2} parent=5 // pred_region
      %s574 = ssub.s32 %s26, 1
      %p575 = scmp.lt.s32.totalorder %s31, 1
      %s576 = scalar_select %p575, %s31, 1
      %s577 = smul.addr %s576, 8
      %s578 = scalar_lea.vmem %s0, %s577
      %p579 = pneg %p52
      %p580 = pneg %p49
      %p581 = scmp.lt.s32.totalorder %s31, 1
      %s582 = scalar_select %p581, %s31, 1
      %s583 = scalar_lea.vmem %s1, %s582
      %p584 = pneg %p78
      %p585 = pneg %p75
      %p586 = pneg %p99
      %p587 = pneg %p96
      %p588 = pneg %p120
      %p589 = pneg %p117
      %p590 = pneg %p141
      %p591 = pneg %p138
      %p592 = pneg %p162
      %p593 = pneg %p159
      %p594 = pneg %p183
      %p595 = pneg %p180
      %p596 = pneg %p204
      %p597 = pneg %p201
      %p598 = pneg %p225
      %p599 = pneg %p222
      %p600 = pneg %p246
      %p601 = pneg %p243
      %p602 = pneg %p267
      %p603 = pneg %p264
      %p604 = pneg %p288
      %p605 = pneg %p285
      %p606 = pneg %p309
      %p607 = pneg %p306
      %p608 = pneg %p330
      %p609 = pneg %p327
      %p610 = pneg %p351
      %p611 = pneg %p348
      %p612 = pneg %p372
      %p613 = pneg %p369
      %p614 = pneg %p393
      %p615 = pneg %p390
      %p616 = pneg %p414
      %p617 = pneg %p411
      %p618 = pneg %p435
      %p619 = pneg %p432
      %p620 = pneg %p456
      %p621 = pneg %p453
      %p622 = pneg %p482
      %p623 = pneg %p479
      %p624 = scmp.lt.s32.totalorder %s31, 1
      %s625 = scalar_select %p624, %s31, 1
      %s626 = smul.addr %s625, 8
      %s627 = scalar_lea.vmem %s20, %s626
      %p628 = scmp.lt.s32.totalorder %s31, 1
      %s629 = scalar_select %p628, %s31, 1
      %s630 = smul.addr %s629, 8
      %s631 = scalar_lea.vmem %s0, %s630
      %p632 = scmp.lt.s32.totalorder %s31, 1
      %s633 = scalar_select %p632, %s31, 1
      %s634 = scalar_lea.vmem %s1, %s633
      %p635 = scmp.lt.s32.totalorder %s31, 1
      %s636 = scalar_select %p635, %s31, 1
      %s637 = smul.addr %s636, 8
      %s638 = scalar_lea.vmem %s20, %s637
      %v640 = vld [vmem:[%s631] sm:$0xff]
      %v641 = vpack.c.bf16 %v640, %v640
      %v642 = vld [vmem:[%s2] sm:$0xf]
      %v643 = vld [vmem:[%s2 + $0x4] sm:$0xf]
      %v644 = vld [vmem:[%s2 + $0x8] sm:$0xf]
      %v645 = vld [vmem:[%s2 + $0xc] sm:$0xf]
      %v646 = vld [vmem:[%s3] sm:$0x1]
      %v648 = vlaneseq
      %v649 = vshrl.u32 %v648, 7
      %v650 = vsub.s32 0, %v649
      %v651 = vrot.slane %v646, %v650
      %v657 = vunpack.c.l.b16 %v642
      %v658 = vunpack.c.l.b16 %v643
      %v659 = vunpack.c.l.b16 %v644
      %v660 = vunpack.c.l.b16 %v645
      %v661 = vpack.c.b16 %v658, %v657
      %v662 = vpack.c.b16 %v660, %v659
      %vm665 = vcmask 261120
      %v667 = vsel %vm665, %v641, 0
      %669 = vmatprep.subr.bf16.mxu0 0
      %670 = vmatpush1.bf16.msra.mxu0 %v661
      %671 = vmatprep.subr.bf16.mxu0 0
      %672 = vmatpush1.bf16.msra.mxu0 %v662
      %673 = vmatprep.subr.bf16.mxu0 0
      %674 = vmatpush1.bf16.msra.mxu0 0
      %675 = vmatprep.subr.bf16.mxu0 0
      %676 = vmatpush1.bf16.msra.mxu0 0
      %677 = vmatprep.subr.bf16.mxu0 0
      %678 = vmatpush1.bf16.msra.mxu0 0
      %679 = vmatprep.subr.bf16.mxu0 0
      %680 = vmatpush1.bf16.msra.mxu0 0
      %681 = vmatprep.subr.bf16.mxu0 0
      %682 = vmatpush1.bf16.msra.mxu0 0
      %683 = vmatprep.subr.bf16.mxu0 0
      %684 = vmatpush1.bf16.msra.mxu0 0
      %685 = vmatprep.subr.bf16.mxu0 0
      %686 = vmatpush1.bf16.msra.mxu0 0
      %687 = vmatprep.subr.bf16.mxu0 0
      %688 = vmatpush1.bf16.msra.mxu0 0
      %689 = vmatprep.subr.bf16.mxu0 0
      %690 = vmatpush1.bf16.msra.mxu0 0
      %691 = vmatprep.subr.bf16.mxu0 0
      %692 = vmatpush1.bf16.msra.mxu0 0
      %693 = vmatprep.subr.bf16.mxu0 0
      %694 = vmatpush1.bf16.msra.mxu0 0
      %695 = vmatprep.subr.bf16.mxu0 0
      %696 = vmatpush1.bf16.msra.mxu0 0
      %697 = vmatprep.subr.bf16.mxu0 0
      %698 = vmatpush1.bf16.msra.mxu0 0
      %699 = vmatprep.subr.bf16.mxu0 0
      %700 = vmatpush1.bf16.msra.mxu0 0
      %701 = vmatprep.mubr.bf16.mxu0 0
      %702 = vmatmul.mubr.bf16.gmra.mrb[0].mxu0 %v667
      %v703 = vpop.f32.mrb[0].mxu0
      %v704 = vadd.f32 %v651, %v703
      %v705 = vpop.f32.mrb[0].mxu0
      %v706 = vpop.f32.mrb[0].mxu0
      %v707 = vpop.f32.mrb[0].mxu0
      %708 = vdwg.mxu0
      %v709 = vsel %vm665, %v704, 0.0
      %710 = vadd.xlane.f32.xlu0 %v709
      %v711 = vpop.xlane.xlu0 %710
      %v712 = vrcp.pop 32.0
      %v713 = vmul.f32 %v711, %v712
      %v714 = vsub.f32 %v704, %v713
      %v715 = vmul.f32 %v714, %v714
      %v716 = vsel %vm665, %v715, 0.0
      %717 = vadd.xlane.f32.xlu0 %v716
      %v718 = vpop.xlane.xlu0 %717
      %v719 = vmul.f32 %v718, %v712
      %v720 = vadd.f32 %v719, 1e-06
      %v721 = vrsqrt.pop %v720
      %v722 = vmul.f32 %v714, %v721
      %v723 = vld [vmem:[%s4] sm:$0x1]
      %v725 = vlaneseq
      %v726 = vshrl.u32 %v725, 7
      %v727 = vsub.s32 0, %v726
      %v728 = vrot.slane %v723, %v727
      %v730 = vmul.f32 %v722, %v728
      %v731 = vld [vmem:[%s5] sm:$0x1]
      %v733 = vlaneseq
      %v734 = vshrl.u32 %v733, 7
      %v735 = vsub.s32 0, %v734
      %v736 = vrot.slane %v731, %v735
      %v738 = vadd.f32 %v730, %v736
      %v739 = vpack.c.bf16 %v738, %v738
      %v740 = vld [vmem:[%s6] sm:$0xf]
      %v741 = vld [vmem:[%s6 + $0x4] sm:$0xf]
      %v742 = vld [vmem:[%s6 + $0x8] sm:$0xf]
      %v743 = vld [vmem:[%s6 + $0xc] sm:$0xf]
      %v744 = vld [vmem:[%s7] sm:$0x1]
      %v746 = vlaneseq
      %v747 = vshrl.u32 %v746, 7
      %v748 = vsub.s32 0, %v747
      %v749 = vrot.slane %v744, %v748
      %v755 = vunpack.c.l.b16 %v740
      %v756 = vunpack.c.l.b16 %v741
      %v757 = vunpack.c.l.b16 %v742
      %v758 = vunpack.c.l.b16 %v743
      %v759 = vpack.c.b16 %v756, %v755
      %v760 = vpack.c.b16 %v758, %v757
      %v764 = vsel %vm665, %v739, 0
      %766 = vmatprep.subr.bf16.mxu0 0
      %767 = vmatpush1.bf16.msra.mxu0 %v759
      %768 = vmatprep.subr.bf16.mxu0 0
      %769 = vmatpush1.bf16.msra.mxu0 %v760
      %770 = vmatprep.subr.bf16.mxu0 0
      %771 = vmatpush1.bf16.msra.mxu0 0
      %772 = vmatprep.subr.bf16.mxu0 0
      %773 = vmatpush1.bf16.msra.mxu0 0
      %774 = vmatprep.subr.bf16.mxu0 0
      %775 = vmatpush1.bf16.msra.mxu0 0
      %776 = vmatprep.subr.bf16.mxu0 0
      %777 = vmatpush1.bf16.msra.mxu0 0
      %778 = vmatprep.subr.bf16.mxu0 0
      %779 = vmatpush1.bf16.msra.mxu0 0
      %780 = vmatprep.subr.bf16.mxu0 0
      %781 = vmatpush1.bf16.msra.mxu0 0
      %782 = vmatprep.subr.bf16.mxu0 0
      %783 = vmatpush1.bf16.msra.mxu0 0
      %784 = vmatprep.subr.bf16.mxu0 0
      %785 = vmatpush1.bf16.msra.mxu0 0
      %786 = vmatprep.subr.bf16.mxu0 0
      %787 = vmatpush1.bf16.msra.mxu0 0
      %788 = vmatprep.subr.bf16.mxu0 0
      %789 = vmatpush1.bf16.msra.mxu0 0
      %790 = vmatprep.subr.bf16.mxu0 0
      %791 = vmatpush1.bf16.msra.mxu0 0
      %792 = vmatprep.subr.bf16.mxu0 0
      %793 = vmatpush1.bf16.msra.mxu0 0
      %794 = vmatprep.subr.bf16.mxu0 0
      %795 = vmatpush1.bf16.msra.mxu0 0
      %796 = vmatprep.subr.bf16.mxu0 0
      %797 = vmatpush1.bf16.msra.mxu0 0
      %798 = vmatprep.mubr.bf16.mxu0 0
      %799 = vmatmul.mubr.bf16.gmra.mrb[0].mxu0 %v764
      %v800 = vpop.f32.mrb[0].mxu0
      %v801 = vadd.f32 %v749, %v800
      %v802 = vpop.f32.mrb[0].mxu0
      %v803 = vpop.f32.mrb[0].mxu0
      %v804 = vpop.f32.mrb[0].mxu0
      %805 = vdwg.mxu0
      %v806 = vpack.c.bf16 %v801, %v801
      %v807 = vld [vmem:[%s634] sm:$0x1]
      %vm808 = vcmp.ne.s32.totalorder %v807, 0
      %v809 = vsel %vm808, -1e+18, 0.0
      %v811 = vlaneseq
      %v812 = vshrl.u32 %v811, 7
      %v813 = vsub.s32 0, %v812
      %v814 = vrot.slane %v809, %v813
      %817 = vrot.lane.b32.xlu0 %v806, 96
      %v818 = vpop.permute.xlu0 %817
      %vm819 = vcmask 64512
      %v821 = vsel %vm819, %v806, 0
      %v824 = vsel %vm819, %v818, 0
      %826 = vmatprep.subr.bf16.mxu0 0
      %827 = vmatpush1.bf16.xpose.msra.mxu0 %v824
      %828 = vmatprep.subr.bf16.mxu0 0
      %829 = vmatpush1.bf16.xpose.msra.mxu0 0
      %830 = vmatprep.subr.bf16.mxu0 0
      %831 = vmatpush1.bf16.xpose.msra.mxu0 0
      %832 = vmatprep.subr.bf16.mxu0 0
      %833 = vmatpush1.bf16.xpose.msra.mxu0 0
      %834 = vmatprep.subr.bf16.mxu0 0
      %835 = vmatpush1.bf16.xpose.msra.mxu0 0
      %836 = vmatprep.subr.bf16.mxu0 0
      %837 = vmatpush1.bf16.xpose.msra.mxu0 0
      %838 = vmatprep.subr.bf16.mxu0 0
      %839 = vmatpush1.bf16.xpose.msra.mxu0 0
      %840 = vmatprep.subr.bf16.mxu0 0
      %841 = vmatpush1.bf16.xpose.msra.mxu0 0
      %842 = vmatprep.subr.bf16.mxu0 0
      %843 = vmatpush1.bf16.xpose.msra.mxu0 0
      %844 = vmatprep.subr.bf16.mxu0 0
      %845 = vmatpush1.bf16.xpose.msra.mxu0 0
      %846 = vmatprep.subr.bf16.mxu0 0
      %847 = vmatpush1.bf16.xpose.msra.mxu0 0
      %848 = vmatprep.subr.bf16.mxu0 0
      %849 = vmatpush1.bf16.xpose.msra.mxu0 0
      %850 = vmatprep.subr.bf16.mxu0 0
      %851 = vmatpush1.bf16.xpose.msra.mxu0 0
      %852 = vmatprep.subr.bf16.mxu0 0
      %853 = vmatpush1.bf16.xpose.msra.mxu0 0
      %854 = vmatprep.subr.bf16.mxu0 0
      %855 = vmatpush1.bf16.xpose.msra.mxu0 0
      %856 = vmatprep.subr.bf16.mxu0 0
      %857 = vmatpush1.bf16.xpose.msra.mxu0 0
      %858 = vmatprep.mubr.bf16.mxu0 0
      %859 = vmatmul.mubr.bf16.gmra.mrb[0].mxu0 %v821
      %v860 = vpop.f32.mrb[0].mxu0
      %v861 = vadd.f32 %v814, %v860
      %v862 = vpop.f32.mrb[0].mxu0
      %v863 = vpop.f32.mrb[0].mxu0
      %v864 = vpop.f32.mrb[0].mxu0
      %865 = vdwg.mxu0
      %v866 = vsel %vm819, %v861, -inf
      %867 = vmax.xlane.f32.xlu0 %v866
      %v868 = vpop.xlane.xlu0 %867
      %v869 = vsub.f32 %v861, %v868
      %v870 = vmul.f32 %v869, 1.442695
      %v871 = vpow.pop %v870
      %v872 = vsel %vm819, %v871, 0.0
      %873 = vadd.xlane.f32.xlu0 %v872
      %v874 = vpop.xlane.xlu0 %873
      %v875 = vpack.c.bf16 %v871, %v871
      %876 = vrot.lane.b32.xlu0 %v806, 64
      %v877 = vpop.permute.xlu0 %876
      %v879 = vsel %vm819, %v875, 0
      %vm881 = vcmask 1043456
      %v883 = vsel %vm881, %v877, 0
      %885 = vmatprep.subr.bf16.mxu0 0
      %886 = vmatpush1.bf16.msra.mxu0 %v883
      %887 = vmatprep.subr.bf16.mxu0 0
      %888 = vmatpush1.bf16.msra.mxu0 0
      %889 = vmatprep.subr.bf16.mxu0 0
      %890 = vmatpush1.bf16.msra.mxu0 0
      %891 = vmatprep.subr.bf16.mxu0 0
      %892 = vmatpush1.bf16.msra.mxu0 0
      %893 = vmatprep.subr.bf16.mxu0 0
      %894 = vmatpush1.bf16.msra.mxu0 0
      %895 = vmatprep.subr.bf16.mxu0 0
      %896 = vmatpush1.bf16.msra.mxu0 0
      %897 = vmatprep.subr.bf16.mxu0 0
      %898 = vmatpush1.bf16.msra.mxu0 0
      %899 = vmatprep.subr.bf16.mxu0 0
      %900 = vmatpush1.bf16.msra.mxu0 0
      %901 = vmatprep.subr.bf16.mxu0 0
      %902 = vmatpush1.bf16.msra.mxu0 0
      %903 = vmatprep.subr.bf16.mxu0 0
      %904 = vmatpush1.bf16.msra.mxu0 0
      %905 = vmatprep.subr.bf16.mxu0 0
      %906 = vmatpush1.bf16.msra.mxu0 0
      %907 = vmatprep.subr.bf16.mxu0 0
      %908 = vmatpush1.bf16.msra.mxu0 0
      %909 = vmatprep.subr.bf16.mxu0 0
      %910 = vmatpush1.bf16.msra.mxu0 0
      %911 = vmatprep.subr.bf16.mxu0 0
      %912 = vmatpush1.bf16.msra.mxu0 0
      %913 = vmatprep.subr.bf16.mxu0 0
      %914 = vmatpush1.bf16.msra.mxu0 0
      %915 = vmatprep.subr.bf16.mxu0 0
      %916 = vmatpush1.bf16.msra.mxu0 0
      %917 = vmatprep.mubr.bf16.mxu0 0
      %918 = vmatmul.mubr.bf16.gmra.mrb[0].mxu0 %v879
      %v919 = vpop.f32.mrb[0].mxu0
      %v920 = vadd.f32 0.0, %v919
      %v921 = vpop.f32.mrb[0].mxu0
      %v922 = vpop.f32.mrb[0].mxu0
      %v923 = vpop.f32.mrb[0].mxu0
      %924 = vdwg.mxu0
      %v925 = vrcp.pop %v874
      %v926 = vmul.f32 %v920, %v925
      %v927 = vpack.c.bf16 %v926, %v926
      %vm928 = vcmask 60416
      %929 = vst.msk [vmem:[#allocation2] sm:$0xf] %vm928, %v927
      %930 = vrot.lane.b32.xlu0 %v806, 120
      %v931 = vpop.permute.xlu0 %930
      %932 = vrot.lane.b32.xlu0 %v806, 88
      %v933 = vpop.permute.xlu0 %932
      %v935 = vsel %vm819, %v931, 0
      %v938 = vsel %vm819, %v933, 0
      %940 = vmatprep.subr.bf16.mxu0 0
      %941 = vmatpush1.bf16.xpose.msra.mxu0 %v938
      %942 = vmatprep.subr.bf16.mxu0 0
      %943 = vmatpush1.bf16.xpose.msra.mxu0 0
      %944 = vmatprep.subr.bf16.mxu0 0
      %945 = vmatpush1.bf16.xpose.msra.mxu0 0
      %946 = vmatprep.subr.bf16.mxu0 0
      %947 = vmatpush1.bf16.xpose.msra.mxu0 0
      %948 = vmatprep.subr.bf16.mxu0 0
      %949 = vmatpush1.bf16.xpose.msra.mxu0 0
      %950 = vmatprep.subr.bf16.mxu0 0
      %951 = vmatpush1.bf16.xpose.msra.mxu0 0
      %952 = vmatprep.subr.bf16.mxu0 0
      %953 = vmatpush1.bf16.xpose.msra.mxu0 0
      %954 = vmatprep.subr.bf16.mxu0 0
      %955 = vmatpush1.bf16.xpose.msra.mxu0 0
      %956 = vmatprep.subr.bf16.mxu0 0
      %957 = vmatpush1.bf16.xpose.msra.mxu0 0
      %958 = vmatprep.subr.bf16.mxu0 0
      %959 = vmatpush1.bf16.xpose.msra.mxu0 0
      %960 = vmatprep.subr.bf16.mxu0 0
      %961 = vmatpush1.bf16.xpose.msra.mxu0 0
      %962 = vmatprep.subr.bf16.mxu0 0
      %963 = vmatpush1.bf16.xpose.msra.mxu0 0
      %964 = vmatprep.subr.bf16.mxu0 0
      %965 = vmatpush1.bf16.xpose.msra.mxu0 0
      %966 = vmatprep.subr.bf16.mxu0 0
      %967 = vmatpush1.bf16.xpose.msra.mxu0 0
      %968 = vmatprep.subr.bf16.mxu0 0
      %969 = vmatpush1.bf16.xpose.msra.mxu0 0
      %970 = vmatprep.subr.bf16.mxu0 0
      %971 = vmatpush1.bf16.xpose.msra.mxu0 0
      %972 = vmatprep.mubr.bf16.mxu0 0
      %973 = vmatmul.mubr.bf16.gmra.mrb[0].mxu0 %v935
      %v974 = vpop.f32.mrb[0].mxu0
      %v975 = vadd.f32 %v814, %v974
      %v976 = vpop.f32.mrb[0].mxu0
      %v977 = vpop.f32.mrb[0].mxu0
      %v978 = vpop.f32.mrb[0].mxu0
      %979 = vdwg.mxu0
      %v980 = vsel %vm819, %v975, -inf
      %981 = vmax.xlane.f32.xlu0 %v980
      %v982 = vpop.xlane.xlu0 %981
      %v983 = vsub.f32 %v975, %v982
      %v984 = vmul.f32 %v983, 1.442695
      %v985 = vpow.pop %v984
      %v986 = vsel %vm819, %v985, 0.0
      %987 = vadd.xlane.f32.xlu0 %v986
      %v988 = vpop.xlane.xlu0 %987
      %v989 = vpack.c.bf16 %v985, %v985
      %990 = vrot.lane.b32.xlu0 %v806, 56
      %v991 = vpop.permute.xlu0 %990
      %v993 = vsel %vm819, %v989, 0
      %v996 = vsel %vm881, %v991, 0
      %998 = vmatprep.subr.bf16.mxu0 0
      %999 = vmatpush1.bf16.msra.mxu0 %v996
      %1000 = vmatprep.subr.bf16.mxu0 0
      %1001 = vmatpush1.bf16.msra.mxu0 0
      %1002 = vmatprep.subr.bf16.mxu0 0
      %1003 = vmatpush1.bf16.msra.mxu0 0
      %1004 = vmatprep.subr.bf16.mxu0 0
      %1005 = vmatpush1.bf16.msra.mxu0 0
      %1006 = vmatprep.subr.bf16.mxu0 0
      %1007 = vmatpush1.bf16.msra.mxu0 0
      %1008 = vmatprep.subr.bf16.mxu0 0
      %1009 = vmatpush1.bf16.msra.mxu0 0
      %1010 = vmatprep.subr.bf16.mxu0 0
      %1011 = vmatpush1.bf16.msra.mxu0 0
      %1012 = vmatprep.subr.bf16.mxu0 0
      %1013 = vmatpush1.bf16.msra.mxu0 0
      %1014 = vmatprep.subr.bf16.mxu0 0
      %1015 = vmatpush1.bf16.msra.mxu0 0
      %1016 = vmatprep.subr.bf16.mxu0 0
      %1017 = vmatpush1.bf16.msra.mxu0 0
      %1018 = vmatprep.subr.bf16.mxu0 0
      %1019 = vmatpush1.bf16.msra.mxu0 0
      %1020 = vmatprep.subr.bf16.mxu0 0
      %1021 = vmatpush1.bf16.msra.mxu0 0
      %1022 = vmatprep.subr.bf16.mxu0 0
      %1023 = vmatpush1.bf16.msra.mxu0 0
      %1024 = vmatprep.subr.bf16.mxu0 0
      %1025 = vmatpush1.bf16.msra.mxu0 0
      %1026 = vmatprep.subr.bf16.mxu0 0
      %1027 = vmatpush1.bf16.msra.mxu0 0
      %1028 = vmatprep.subr.bf16.mxu0 0
      %1029 = vmatpush1.bf16.msra.mxu0 0
      %1030 = vmatprep.mubr.bf16.mxu0 0
      %1031 = vmatmul.mubr.bf16.gmra.mrb[0].mxu0 %v993
      %v1032 = vpop.f32.mrb[0].mxu0
      %v1033 = vadd.f32 0.0, %v1032
      %v1034 = vpop.f32.mrb[0].mxu0
      %v1035 = vpop.f32.mrb[0].mxu0
      %v1036 = vpop.f32.mrb[0].mxu0
      %1037 = vdwg.mxu0
      %v1038 = vrcp.pop %v988
      %v1039 = vmul.f32 %v1033, %v1038
      %v1040 = vpack.c.bf16 %v1039, %v1039
      %v1042 = vunpack.c.l.b16 %v1040
      %v1043 = vpack.c.b16 %v1042, %v1042
      %1044 = vrot.lane.b32.xlu0 %v1043, 8
      %v1045 = vpop.permute.xlu0 %1044
      %vm1047 = vcmask 126016
      %1048 = vst.msk [vmem:[#allocation2] sm:$0xf] %vm1047, %v1045
      %1049 = vrot.lane.b32.xlu0 %v806, 112
      %v1050 = vpop.permute.xlu0 %1049
      %1051 = vrot.lane.b32.xlu0 %v806, 80
      %v1052 = vpop.permute.xlu0 %1051
      %v1054 = vsel %vm819, %v1050, 0
      %v1057 = vsel %vm819, %v1052, 0
      %1059 = vmatprep.subr.bf16.mxu0 0
      %1060 = vmatpush1.bf16.xpose.msra.mxu0 %v1057
      %1061 = vmatprep.subr.bf16.mxu0 0
      %1062 = vmatpush1.bf16.xpose.msra.mxu0 0
      %1063 = vmatprep.subr.bf16.mxu0 0
      %1064 = vmatpush1.bf16.xpose.msra.mxu0 0
      %1065 = vmatprep.subr.bf16.mxu0 0
      %1066 = vmatpush1.bf16.xpose.msra.mxu0 0
      %1067 = vmatprep.subr.bf16.mxu0 0
      %1068 = vmatpush1.bf16.xpose.msra.mxu0 0
      %1069 = vmatprep.subr.bf16.mxu0 0
      %1070 = vmatpush1.bf16.xpose.msra.mxu0 0
      %1071 = vmatprep.subr.bf16.mxu0 0
      %1072 = vmatpush1.bf16.xpose.msra.mxu0 0
      %1073 = vmatprep.subr.bf16.mxu0 0
      %1074 = vmatpush1.bf16.xpose.msra.mxu0 0
      %1075 = vmatprep.subr.bf16.mxu0 0
      %1076 = vmatpush1.bf16.xpose.msra.mxu0 0
      %1077 = vmatprep.subr.bf16.mxu0 0
      %1078 = vmatpush1.bf16.xpose.msra.mxu0 0
      %1079 = vmatprep.subr.bf16.mxu0 0
      %1080 = vmatpush1.bf16.xpose.msra.mxu0 0
      %1081 = vmatprep.subr.bf16.mxu0 0
      %1082 = vmatpush1.bf16.xpose.msra.mxu0 0
      %1083 = vmatprep.subr.bf16.mxu0 0
      %1084 = vmatpush1.bf16.xpose.msra.mxu0 0
      %1085 = vmatprep.subr.bf16.mxu0 0
      %1086 = vmatpush1.bf16.xpose.msra.mxu0 0
      %1087 = vmatprep.subr.bf16.mxu0 0
      %1088 = vmatpush1.bf16.xpose.msra.mxu0 0
      %1089 = vmatprep.subr.bf16.mxu0 0
      %1090 = vmatpush1.bf16.xpose.msra.mxu0 0
      %1091 = vmatprep.mubr.bf16.mxu0 0
      %1092 = vmatmul.mubr.bf16.gmra.mrb[0].mxu0 %v1054
      %v1093 = vpop.f32.mrb[0].mxu0
      %v1094 = vadd.f32 %v814, %v1093
      %v1095 = vpop.f32.mrb[0].mxu0
      %v1096 = vpop.f32.mrb[0].mxu0
      %v1097 = vpop.f32.mrb[0].mxu0
      %1098 = vdwg.mxu0
      %v1099 = vsel %vm819, %v1094, -inf
      %1100 = vmax.xlane.f32.xlu0 %v1099
      %v1101 = vpop.xlane.xlu0 %1100
      %v1102 = vsub.f32 %v1094, %v1101
      %v1103 = vmul.f32 %v1102, 1.442695
      %v1104 = vpow.pop %v1103
      %v1105 = vsel %vm819, %v1104, 0.0
      %1106 = vadd.xlane.f32.xlu0 %v1105
      %v1107 = vpop.xlane.xlu0 %1106
      %v1108 = vpack.c.bf16 %v1104, %v1104
      %1109 = vrot.lane.b32.xlu0 %v806, 48
      %v1110 = vpop.permute.xlu0 %1109
      %v1112 = vsel %vm819, %v1108, 0
      %v1115 = vsel %vm881, %v1110, 0
      %1117 = vmatprep.subr.bf16.mxu0 0
      %1118 = vmatpush1.bf16.msra.mxu0 %v1115
      %1119 = vmatprep.subr.bf16.mxu0 0
      %1120 = vmatpush1.bf16.msra.mxu0 0
      %1121 = vmatprep.subr.bf16.mxu0 0
      %1122 = vmatpush1.bf16.msra.mxu0 0
      %1123 = vmatprep.subr.bf16.mxu0 0
      %1124 = vmatpush1.bf16.msra.mxu0 0
      %1125 = vmatprep.subr.bf16.mxu0 0
      %1126 = vmatpush1.bf16.msra.mxu0 0
      %1127 = vmatprep.subr.bf16.mxu0 0
      %1128 = vmatpush1.bf16.msra.mxu0 0
      %1129 = vmatprep.subr.bf16.mxu0 0
      %1130 = vmatpush1.bf16.msra.mxu0 0
      %1131 = vmatprep.subr.bf16.mxu0 0
      %1132 = vmatpush1.bf16.msra.mxu0 0
      %1133 = vmatprep.subr.bf16.mxu0 0
      %1134 = vmatpush1.bf16.msra.mxu0 0
      %1135 = vmatprep.subr.bf16.mxu0 0
      %1136 = vmatpush1.bf16.msra.mxu0 0
      %1137 = vmatprep.subr.bf16.mxu0 0
      %1138 = vmatpush1.bf16.msra.mxu0 0
      %1139 = vmatprep.subr.bf16.mxu0 0
      %1140 = vmatpush1.bf16.msra.mxu0 0
      %1141 = vmatprep.subr.bf16.mxu0 0
      %1142 = vmatpush1.bf16.msra.mxu0 0
      %1143 = vmatprep.subr.bf16.mxu0 0
      %1144 = vmatpush1.bf16.msra.mxu0 0
      %1145 = vmatprep.subr.bf16.mxu0 0
      %1146 = vmatpush1.bf16.msra.mxu0 0
      %1147 = vmatprep.subr.bf16.mxu0 0
      %1148 = vmatpush1.bf16.msra.mxu0 0
      %1149 = vmatprep.mubr.bf16.mxu0 0
      %1150 = vmatmul.mubr.bf16.gmra.mrb[0].mxu0 %v1112
      %v1151 = vpop.f32.mrb[0].mxu0
      %v1152 = vadd.f32 0.0, %v1151
      %v1153 = vpop.f32.mrb[0].mxu0
      %v1154 = vpop.f32.mrb[0].mxu0
      %v1155 = vpop.f32.mrb[0].mxu0
      %1156 = vdwg.mxu0
      %v1157 = vrcp.pop %v1107
      %v1158 = vmul.f32 %v1152, %v1157
      %v1159 = vpack.c.bf16 %v1158, %v1158
      %v1161 = vunpack.c.l.b16 %v1159
      %v1162 = vpack.c.b16 %v1161, %v1161
      %1163 = vrot.lane.b32.xlu0 %v1162, 16
      %v1164 = vpop.permute.xlu0 %1163
      %vm1166 = vcmask 191616
      %1167 = vst.msk [vmem:[#allocation2] sm:$0xf] %vm1166, %v1164
      %1168 = vrot.lane.b32.xlu0 %v806, 104
      %v1169 = vpop.permute.xlu0 %1168
      %1170 = vrot.lane.b32.xlu0 %v806, 72
      %v1171 = vpop.permute.xlu0 %1170
      %v1173 = vsel %vm819, %v1169, 0
      %v1176 = vsel %vm819, %v1171, 0
      %1178 = vmatprep.subr.bf16.mxu0 0
      %1179 = vmatpush1.bf16.xpose.msra.mxu0 %v1176
      %1180 = vmatprep.subr.bf16.mxu0 0
      %1181 = vmatpush1.bf16.xpose.msra.mxu0 0
      %1182 = vmatprep.subr.bf16.mxu0 0
      %1183 = vmatpush1.bf16.xpose.msra.mxu0 0
      %1184 = vmatprep.subr.bf16.mxu0 0
      %1185 = vmatpush1.bf16.xpose.msra.mxu0 0
      %1186 = vmatprep.subr.bf16.mxu0 0
      %1187 = vmatpush1.bf16.xpose.msra.mxu0 0
      %1188 = vmatprep.subr.bf16.mxu0 0
      %1189 = vmatpush1.bf16.xpose.msra.mxu0 0
      %1190 = vmatprep.subr.bf16.mxu0 0
      %1191 = vmatpush1.bf16.xpose.msra.mxu0 0
      %1192 = vmatprep.subr.bf16.mxu0 0
      %1193 = vmatpush1.bf16.xpose.msra.mxu0 0
      %1194 = vmatprep.subr.bf16.mxu0 0
      %1195 = vmatpush1.bf16.xpose.msra.mxu0 0
      %1196 = vmatprep.subr.bf16.mxu0 0
      %1197 = vmatpush1.bf16.xpose.msra.mxu0 0
      %1198 = vmatprep.subr.bf16.mxu0 0
      %1199 = vmatpush1.bf16.xpose.msra.mxu0 0
      %1200 = vmatprep.subr.bf16.mxu0 0
      %1201 = vmatpush1.bf16.xpose.msra.mxu0 0
      %1202 = vmatprep.subr.bf16.mxu0 0
      %1203 = vmatpush1.bf16.xpose.msra.mxu0 0
      %1204 = vmatprep.subr.bf16.mxu0 0
      %1205 = vmatpush1.bf16.xpose.msra.mxu0 0
      %1206 = vmatprep.subr.bf16.mxu0 0
      %1207 = vmatpush1.bf16.xpose.msra.mxu0 0
      %1208 = vmatprep.subr.bf16.mxu0 0
      %1209 = vmatpush1.bf16.xpose.msra.mxu0 0
      %1210 = vmatprep.mubr.bf16.mxu0 0
      %1211 = vmatmul.mubr.bf16.gmra.mrb[0].mxu0 %v1173
      %v1212 = vpop.f32.mrb[0].mxu0
      %v1213 = vadd.f32 %v814, %v1212
      %v1214 = vpop.f32.mrb[0].mxu0
      %v1215 = vpop.f32.mrb[0].mxu0
      %v1216 = vpop.f32.mrb[0].mxu0
      %1217 = vdwg.mxu0
      %v1218 = vsel %vm819, %v1213, -inf
      %1219 = vmax.xlane.f32.xlu0 %v1218
      %v1220 = vpop.xlane.xlu0 %1219
      %v1221 = vsub.f32 %v1213, %v1220
      %v1222 = vmul.f32 %v1221, 1.442695
      %v1223 = vpow.pop %v1222
      %v1224 = vsel %vm819, %v1223, 0.0
      %1225 = vadd.xlane.f32.xlu0 %v1224
      %v1226 = vpop.xlane.xlu0 %1225
      %v1227 = vpack.c.bf16 %v1223, %v1223
      %1228 = vrot.lane.b32.xlu0 %v806, 40
      %v1229 = vpop.permute.xlu0 %1228
      %v1231 = vsel %vm819, %v1227, 0
      %v1234 = vsel %vm881, %v1229, 0
      %1236 = vmatprep.subr.bf16.mxu0 0
      %1237 = vmatpush1.bf16.msra.mxu0 %v1234
      %1238 = vmatprep.subr.bf16.mxu0 0
      %1239 = vmatpush1.bf16.msra.mxu0 0
      %1240 = vmatprep.subr.bf16.mxu0 0
      %1241 = vmatpush1.bf16.msra.mxu0 0
      %1242 = vmatprep.subr.bf16.mxu0 0
      %1243 = vmatpush1.bf16.msra.mxu0 0
      %1244 = vmatprep.subr.bf16.mxu0 0
      %1245 = vmatpush1.bf16.msra.mxu0 0
      %1246 = vmatprep.subr.bf16.mxu0 0
      %1247 = vmatpush1.bf16.msra.mxu0 0
      %1248 = vmatprep.subr.bf16.mxu0 0
      %1249 = vmatpush1.bf16.msra.mxu0 0
      %1250 = vmatprep.subr.bf16.mxu0 0
      %1251 = vmatpush1.bf16.msra.mxu0 0
      %1252 = vmatprep.subr.bf16.mxu0 0
      %1253 = vmatpush1.bf16.msra.mxu0 0
      %1254 = vmatprep.subr.bf16.mxu0 0
      %1255 = vmatpush1.bf16.msra.mxu0 0
      %1256 = vmatprep.subr.bf16.mxu0 0
      %1257 = vmatpush1.bf16.msra.mxu0 0
      %1258 = vmatprep.subr.bf16.mxu0 0
      %1259 = vmatpush1.bf16.msra.mxu0 0
      %1260 = vmatprep.subr.bf16.mxu0 0
      %1261 = vmatpush1.bf16.msra.mxu0 0
      %1262 = vmatprep.subr.bf16.mxu0 0
      %1263 = vmatpush1.bf16.msra.mxu0 0
      %1264 = vmatprep.subr.bf16.mxu0 0
      %1265 = vmatpush1.bf16.msra.mxu0 0
      %1266 = vmatprep.subr.bf16.mxu0 0
      %1267 = vmatpush1.bf16.msra.mxu0 0
      %1268 = vmatprep.mubr.bf16.mxu0 0
      %1269 = vmatmul.mubr.bf16.gmra.mrb[0].mxu0 %v1231
      %v1270 = vpop.f32.mrb[0].mxu0
      %v1271 = vadd.f32 0.0, %v1270
      %v1272 = vpop.f32.mrb[0].mxu0
      %v1273 = vpop.f32.mrb[0].mxu0
      %v1274 = vpop.f32.mrb[0].mxu0
      %1275 = vdwg.mxu0
      %v1276 = vrcp.pop %v1226
      %v1277 = vmul.f32 %v1271, %v1276
      %v1278 = vpack.c.bf16 %v1277, %v1277
      %v1280 = vunpack.c.l.b16 %v1278
      %v1281 = vpack.c.b16 %v1280, %v1280
      %1282 = vrot.lane.b32.xlu0 %v1281, 24
      %v1283 = vpop.permute.xlu0 %1282
      %vm1285 = vcmask 257216
      %1286 = vst.msk [vmem:[#allocation2] sm:$0xf] %vm1285, %v1283
      %v1287 = vld [vmem:[#allocation2] sm:$0xf]
      %v1288 = vld [vmem:[%s8] sm:$0xf]
      %v1289 = vld [vmem:[%s8 + $0x4] sm:$0xf]
      %v1290 = vld [vmem:[%s8 + $0x8] sm:$0xf]
      %v1291 = vld [vmem:[%s8 + $0xc] sm:$0xf]
      %v1292 = vld [vmem:[%s9] sm:$0x1]
      %v1294 = vlaneseq
      %v1295 = vshrl.u32 %v1294, 7
      %v1296 = vsub.s32 0, %v1295
      %v1297 = vrot.slane %v1292, %v1296
      %v1303 = vunpack.c.l.b16 %v1288
      %v1304 = vunpack.c.l.b16 %v1289
      %v1305 = vunpack.c.l.b16 %v1290
      %v1306 = vunpack.c.l.b16 %v1291
      %v1307 = vpack.c.b16 %v1304, %v1303
      %v1308 = vpack.c.b16 %v1306, %v1305
      %v1312 = vsel %vm665, %v1287, 0
      %1314 = vmatprep.subr.bf16.mxu0 0
      %1315 = vmatpush1.bf16.msra.mxu0 %v1307
      %1316 = vmatprep.subr.bf16.mxu0 0
      %1317 = vmatpush1.bf16.msra.mxu0 %v1308
      %1318 = vmatprep.subr.bf16.mxu0 0
      %1319 = vmatpush1.bf16.msra.mxu0 0
      %1320 = vmatprep.subr.bf16.mxu0 0
      %1321 = vmatpush1.bf16.msra.mxu0 0
      %1322 = vmatprep.subr.bf16.mxu0 0
      %1323 = vmatpush1.bf16.msra.mxu0 0
      %1324 = vmatprep.subr.bf16.mxu0 0
      %1325 = vmatpush1.bf16.msra.mxu0 0
      %1326 = vmatprep.subr.bf16.mxu0 0
      %1327 = vmatpush1.bf16.msra.mxu0 0
      %1328 = vmatprep.subr.bf16.mxu0 0
      %1329 = vmatpush1.bf16.msra.mxu0 0
      %1330 = vmatprep.subr.bf16.mxu0 0
      %1331 = vmatpush1.bf16.msra.mxu0 0
      %1332 = vmatprep.subr.bf16.mxu0 0
      %1333 = vmatpush1.bf16.msra.mxu0 0
      %1334 = vmatprep.subr.bf16.mxu0 0
      %1335 = vmatpush1.bf16.msra.mxu0 0
      %1336 = vmatprep.subr.bf16.mxu0 0
      %1337 = vmatpush1.bf16.msra.mxu0 0
      %1338 = vmatprep.subr.bf16.mxu0 0
      %1339 = vmatpush1.bf16.msra.mxu0 0
      %1340 = vmatprep.subr.bf16.mxu0 0
      %1341 = vmatpush1.bf16.msra.mxu0 0
      %1342 = vmatprep.subr.bf16.mxu0 0
      %1343 = vmatpush1.bf16.msra.mxu0 0
      %1344 = vmatprep.subr.bf16.mxu0 0
      %1345 = vmatpush1.bf16.msra.mxu0 0
      %1346 = vmatprep.mubr.bf16.mxu0 0
      %1347 = vmatmul.mubr.bf16.gmra.mrb[0].mxu0 %v1312
      %v1348 = vpop.f32.mrb[0].mxu0
      %v1349 = vadd.f32 %v1297, %v1348
      %v1350 = vpop.f32.mrb[0].mxu0
      %v1351 = vpop.f32.mrb[0].mxu0
      %v1352 = vpop.f32.mrb[0].mxu0
      %1353 = vdwg.mxu0
      %v1354 = vadd.f32 %v1349, %v704
      %v1355 = vsel %vm665, %v1354, 0.0
      %1356 = vadd.xlane.f32.xlu0 %v1355
      %v1357 = vpop.xlane.xlu0 %1356
      %v1358 = vmul.f32 %v1357, %v712
      %v1359 = vsub.f32 %v1354, %v1358
      %v1360 = vmul.f32 %v1359, %v1359
      %v1361 = vsel %vm665, %v1360, 0.0
      %1362 = vadd.xlane.f32.xlu0 %v1361
      %v1363 = vpop.xlane.xlu0 %1362
      %v1364 = vmul.f32 %v1363, %v712
      %v1365 = vadd.f32 %v1364, 1e-06
      %v1366 = vrsqrt.pop %v1365
      %v1367 = vmul.f32 %v1359, %v1366
      %v1368 = vld [vmem:[%s10] sm:$0x1]
      %v1370 = vlaneseq
      %v1371 = vshrl.u32 %v1370, 7
      %v1372 = vsub.s32 0, %v1371
      %v1373 = vrot.slane %v1368, %v1372
      %v1375 = vmul.f32 %v1367, %v1373
      %v1376 = vld [vmem:[%s11] sm:$0x1]
      %v1378 = vlaneseq
      %v1379 = vshrl.u32 %v1378, 7
      %v1380 = vsub.s32 0, %v1379
      %v1381 = vrot.slane %v1376, %v1380
      %v1383 = vadd.f32 %v1375, %v1381
      %v1384 = vpack.c.bf16 %v1383, %v1383
      %v1385 = vld [vmem:[%s12] sm:$0xf]
      %v1386 = vld [vmem:[%s12 + $0x4] sm:$0xf]
      %v1387 = vld [vmem:[%s12 + $0x8] sm:$0xf]
      %v1388 = vld [vmem:[%s12 + $0xc] sm:$0xf]
      %v1389 = vld [vmem:[%s13] sm:$0x1]
      %v1391 = vlaneseq
      %v1392 = vshrl.u32 %v1391, 7
      %v1393 = vsub.s32 0, %v1392
      %v1394 = vrot.slane %v1389, %v1393
      %v1400 = vunpack.c.l.b16 %v1385
      %v1401 = vunpack.c.l.b16 %v1386
      %v1402 = vunpack.c.l.b16 %v1387
      %v1403 = vunpack.c.l.b16 %v1388
      %v1404 = vpack.c.b16 %v1401, %v1400
      %v1405 = vpack.c.b16 %v1403, %v1402
      %v1409 = vsel %vm665, %v1384, 0
      %1411 = vmatprep.subr.bf16.mxu0 0
      %1412 = vmatpush1.bf16.msra.mxu0 %v1404
      %1413 = vmatprep.subr.bf16.mxu0 0
      %1414 = vmatpush1.bf16.msra.mxu0 %v1405
      %1415 = vmatprep.subr.bf16.mxu0 0
      %1416 = vmatpush1.bf16.msra.mxu0 0
      %1417 = vmatprep.subr.bf16.mxu0 0
      %1418 = vmatpush1.bf16.msra.mxu0 0
      %1419 = vmatprep.subr.bf16.mxu0 0
      %1420 = vmatpush1.bf16.msra.mxu0 0
      %1421 = vmatprep.subr.bf16.mxu0 0
      %1422 = vmatpush1.bf16.msra.mxu0 0
      %1423 = vmatprep.subr.bf16.mxu0 0
      %1424 = vmatpush1.bf16.msra.mxu0 0
      %1425 = vmatprep.subr.bf16.mxu0 0
      %1426 = vmatpush1.bf16.msra.mxu0 0
      %1427 = vmatprep.subr.bf16.mxu0 0
      %1428 = vmatpush1.bf16.msra.mxu0 0
      %1429 = vmatprep.subr.bf16.mxu0 0
      %1430 = vmatpush1.bf16.msra.mxu0 0
      %1431 = vmatprep.subr.bf16.mxu0 0
      %1432 = vmatpush1.bf16.msra.mxu0 0
      %1433 = vmatprep.subr.bf16.mxu0 0
      %1434 = vmatpush1.bf16.msra.mxu0 0
      %1435 = vmatprep.subr.bf16.mxu0 0
      %1436 = vmatpush1.bf16.msra.mxu0 0
      %1437 = vmatprep.subr.bf16.mxu0 0
      %1438 = vmatpush1.bf16.msra.mxu0 0
      %1439 = vmatprep.subr.bf16.mxu0 0
      %1440 = vmatpush1.bf16.msra.mxu0 0
      %1441 = vmatprep.subr.bf16.mxu0 0
      %1442 = vmatpush1.bf16.msra.mxu0 0
      %1443 = vmatprep.mubr.bf16.mxu0 0
      %1444 = vmatmul.mubr.bf16.gmra.mrb[0].mxu0 %v1409
      %v1445 = vpop.f32.mrb[0].mxu0
      %v1446 = vadd.f32 %v1394, %v1445
      %v1447 = vpop.f32.mrb[0].mxu0
      %v1448 = vpop.f32.mrb[0].mxu0
      %v1449 = vpop.f32.mrb[0].mxu0
      %1450 = vdwg.mxu0
      %v1451 = vmax.f32 %v1446, 0.0
      %v1452 = vpack.c.bf16 %v1451, %v1451
      %v1453 = vld [vmem:[%s14] sm:$0xf]
      %v1454 = vld [vmem:[%s14 + $0x4] sm:$0xf]
      %v1455 = vld [vmem:[%s14 + $0x8] sm:$0xf]
      %v1456 = vld [vmem:[%s14 + $0xc] sm:$0xf]
      %v1457 = vld [vmem:[%s14 + $0x10] sm:$0xf]
      %v1458 = vld [vmem:[%s14 + $0x14] sm:$0xf]
      %v1459 = vld [vmem:[%s14 + $0x18] sm:$0xf]
      %v1460 = vld [vmem:[%s14 + $0x1c] sm:$0xf]
      %v1461 = vld [vmem:[%s15] sm:$0x1]
      %v1463 = vlaneseq
      %v1464 = vshrl.u32 %v1463, 7
      %v1465 = vsub.s32 0, %v1464
      %v1466 = vrot.slane %v1461, %v1465
      %v1476 = vunpack.c.l.b16 %v1453
      %v1477 = vunpack.c.l.b16 %v1454
      %v1478 = vunpack.c.l.b16 %v1455
      %v1479 = vunpack.c.l.b16 %v1456
      %v1480 = vunpack.c.l.b16 %v1457
      %v1481 = vunpack.c.l.b16 %v1458
      %v1482 = vunpack.c.l.b16 %v1459
      %v1483 = vunpack.c.l.b16 %v1460
      %v1484 = vpack.c.b16 %v1477, %v1476
      %v1485 = vpack.c.b16 %v1479, %v1478
      %v1486 = vpack.c.b16 %v1481, %v1480
      %v1487 = vpack.c.b16 %v1483, %v1482
      %vm1492 = vcmask 523264
      %v1494 = vsel %vm1492, %v1452, 0
      %1496 = vmatprep.subr.bf16.mxu0 0
      %1497 = vmatpush1.bf16.msra.mxu0 %v1484
      %1498 = vmatprep.subr.bf16.mxu0 0
      %1499 = vmatpush1.bf16.msra.mxu0 %v1485
      %1500 = vmatprep.subr.bf16.mxu0 0
      %1501 = vmatpush1.bf16.msra.mxu0 %v1486
      %1502 = vmatprep.subr.bf16.mxu0 0
      %1503 = vmatpush1.bf16.msra.mxu0 %v1487
      %1504 = vmatprep.subr.bf16.mxu0 0
      %1505 = vmatpush1.bf16.msra.mxu0 0
      %1506 = vmatprep.subr.bf16.mxu0 0
      %1507 = vmatpush1.bf16.msra.mxu0 0
      %1508 = vmatprep.subr.bf16.mxu0 0
      %1509 = vmatpush1.bf16.msra.mxu0 0
      %1510 = vmatprep.subr.bf16.mxu0 0
      %1511 = vmatpush1.bf16.msra.mxu0 0
      %1512 = vmatprep.subr.bf16.mxu0 0
      %1513 = vmatpush1.bf16.msra.mxu0 0
      %1514 = vmatprep.subr.bf16.mxu0 0
      %1515 = vmatpush1.bf16.msra.mxu0 0
      %1516 = vmatprep.subr.bf16.mxu0 0
      %1517 = vmatpush1.bf16.msra.mxu0 0
      %1518 = vmatprep.subr.bf16.mxu0 0
      %1519 = vmatpush1.bf16.msra.mxu0 0
      %1520 = vmatprep.subr.bf16.mxu0 0
      %1521 = vmatpush1.bf16.msra.mxu0 0
      %1522 = vmatprep.subr.bf16.mxu0 0
      %1523 = vmatpush1.bf16.msra.mxu0 0
      %1524 = vmatprep.subr.bf16.mxu0 0
      %1525 = vmatpush1.bf16.msra.mxu0 0
      %1526 = vmatprep.subr.bf16.mxu0 0
      %1527 = vmatpush1.bf16.msra.mxu0 0
      %1528 = vmatprep.mubr.bf16.mxu0 0
      %1529 = vmatmul.mubr.bf16.gmra.mrb[0].mxu0 %v1494
      %v1530 = vpop.f32.mrb[0].mxu0
      %v1531 = vadd.f32 %v1466, %v1530
      %v1532 = vpop.f32.mrb[0].mxu0
      %v1533 = vpop.f32.mrb[0].mxu0
      %v1534 = vpop.f32.mrb[0].mxu0
      %1535 = vdwg.mxu0
      %v1536 = vadd.f32 %v1531, %v1354
      %v1537 = vpack.c.bf16 %v1536, %v1536
      %v1538 = vld [vmem:[%s16] sm:$0xf]
      %v1539 = vld [vmem:[%s16 + $0x4] sm:$0xf]
      %v1540 = vld [vmem:[%s16 + $0x8] sm:$0xf]
      %v1541 = vld [vmem:[%s16 + $0xc] sm:$0xf]
      %v1542 = vld [vmem:[%s17] sm:$0x1]
      %v1544 = vlaneseq
      %v1545 = vshrl.u32 %v1544, 7
      %v1546 = vsub.s32 0, %v1545
      %v1547 = vrot.slane %v1542, %v1546
      %v1553 = vunpack.c.l.b16 %v1538
      %v1554 = vunpack.c.l.b16 %v1539
      %v1555 = vunpack.c.l.b16 %v1540
      %v1556 = vunpack.c.l.b16 %v1541
      %v1557 = vpack.c.b16 %v1554, %v1553
      %v1558 = vpack.c.b16 %v1556, %v1555
      %v1562 = vsel %vm665, %v1537, 0
      %1564 = vmatprep.subr.bf16.mxu0 0
      %1565 = vmatpush1.bf16.msra.mxu0 %v1557
      %1566 = vmatprep.subr.bf16.mxu0 0
      %1567 = vmatpush1.bf16.msra.mxu0 %v1558
      %1568 = vmatprep.subr.bf16.mxu0 0
      %1569 = vmatpush1.bf16.msra.mxu0 0
      %1570 = vmatprep.subr.bf16.mxu0 0
      %1571 = vmatpush1.bf16.msra.mxu0 0
      %1572 = vmatprep.subr.bf16.mxu0 0
      %1573 = vmatpush1.bf16.msra.mxu0 0
      %1574 = vmatprep.subr.bf16.mxu0 0
      %1575 = vmatpush1.bf16.msra.mxu0 0
      %1576 = vmatprep.subr.bf16.mxu0 0
      %1577 = vmatpush1.bf16.msra.mxu0 0
      %1578 = vmatprep.subr.bf16.mxu0 0
      %1579 = vmatpush1.bf16.msra.mxu0 0
      %1580 = vmatprep.subr.bf16.mxu0 0
      %1581 = vmatpush1.bf16.msra.mxu0 0
      %1582 = vmatprep.subr.bf16.mxu0 0
      %1583 = vmatpush1.bf16.msra.mxu0 0
      %1584 = vmatprep.subr.bf16.mxu0 0
      %1585 = vmatpush1.bf16.msra.mxu0 0
      %1586 = vmatprep.subr.bf16.mxu0 0
      %1587 = vmatpush1.bf16.msra.mxu0 0
      %1588 = vmatprep.subr.bf16.mxu0 0
      %1589 = vmatpush1.bf16.msra.mxu0 0
      %1590 = vmatprep.subr.bf16.mxu0 0
      %1591 = vmatpush1.bf16.msra.mxu0 0
      %1592 = vmatprep.subr.bf16.mxu0 0
      %1593 = vmatpush1.bf16.msra.mxu0 0
      %1594 = vmatprep.subr.bf16.mxu0 0
      %1595 = vmatpush1.bf16.msra.mxu0 0
      %1596 = vmatprep.mubr.bf16.mxu0 0
      %1597 = vmatmul.mubr.bf16.gmra.mrb[0].mxu0 %v1562
      %v1598 = vpop.f32.mrb[0].mxu0
      %v1599 = vadd.f32 %v1547, %v1598
      %v1600 = vpop.f32.mrb[0].mxu0
      %v1601 = vpop.f32.mrb[0].mxu0
      %v1602 = vpop.f32.mrb[0].mxu0
      %1603 = vdwg.mxu0
      %vm1604 = vcmask 130048
      %v1605 = vsel %vm1604, %v1599, 0.0
      %1606 = vadd.xlane.f32.xlu0 %v1605
      %v1607 = vpop.xlane.xlu0 %1606
      %v1608 = vrcp.pop 16.0
      %v1609 = vmul.f32 %v1607, %v1608
      %v1610 = vsub.f32 %v1599, %v1609
      %v1611 = vmul.f32 %v1610, %v1610
      %v1612 = vsel %vm1604, %v1611, 0.0
      %1613 = vadd.xlane.f32.xlu0 %v1612
      %v1614 = vpop.xlane.xlu0 %1613
      %v1615 = vmul.f32 %v1614, %v1608
      %v1616 = vadd.f32 %v1615, 1e-06
      %v1617 = vrsqrt.pop %v1616
      %v1618 = vmul.f32 %v1610, %v1617
      %v1619 = vld [vmem:[%s18] sm:$0x1]
      %v1621 = vlaneseq
      %v1622 = vshrl.u32 %v1621, 7
      %v1623 = vsub.s32 0, %v1622
      %v1624 = vrot.slane %v1619, %v1623
      %v1626 = vmul.f32 %v1618, %v1624
      %v1627 = vld [vmem:[%s19] sm:$0x1]
      %v1629 = vlaneseq
      %v1630 = vshrl.u32 %v1629, 7
      %v1631 = vsub.s32 0, %v1630
      %v1632 = vrot.slane %v1627, %v1631
      %v1634 = vadd.f32 %v1626, %v1632
      %v1635 = vmax.f32 %v1634, 0.0
      %1636 = vst [vmem:[%s638] sm:$0xff] 0.0
      %1637 = vst.msk [vmem:[%s638] sm:$0xff] %vm1604, %v1635
      %p1638 = scmp.lt.s32.totalorder %s31, 1
      %s1639 = scalar_select %p1638, %s31, 1
      %s1640 = smul.addr %s1639, 8
      %s1641 = scalar_lea.vmem %s20, %s1640
      // Predicated region
      $region101: #{transformer_dense_block_fwd.2} parent=99 // pred_check
        %p1642 = pneg %p479
      $region102: #{transformer_dense_block_fwd.2} parent=99 // pred_check_branch
        %1644 = sbr.rel (%p1642) target = $region104
      $region103: #{transformer_dense_block_fwd.2} parent=99 // pred_region
        _
      $region104: #{transformer_dense_block_fwd.2} parent=99 // pred_fallthru
        _
    $region100: #{transformer_dense_block_fwd.2} parent=5 // pred_fallthru
      _
    %p1645 = scmp.le.s32.totalorder 2, %s26
    // Predicated region
    $region105: #{transformer_dense_block_fwd.2} parent=5 // pred_check
      %p1646 = pneg %p1645
    $region106: #{transformer_dense_block_fwd.2} parent=5 // pred_check_branch
      %1648 = sbr.rel (%p1646) target = $region108
    $region107: #{transformer_dense_block_fwd.2} parent=5 // pred_region
      %s1649 = ssub.s32 %s26, 2
      // Predicated region
      $region109: #{transformer_dense_block_fwd.2} parent=107 // pred_check
        %p1650 = pneg %p485
      $region110: #{transformer_dense_block_fwd.2} parent=107 // pred_check_branch
        %1652 = sbr.rel (%p1650) target = $region112
      $region111: #{transformer_dense_block_fwd.2} parent=107 // pred_region
        %p1653 = scmp.lt.s32.totalorder %s32, 1
        %s1654 = scalar_select %p1653, %s32, 1
        %s1655 = smul.addr %s1654, 8
        %s1656 = scalar_lea.vmem %s20, %s1655
      $region112: #{transformer_dense_block_fwd.2} parent=107 // pred_fallthru
        _
    $region108: #{transformer_dense_block_fwd.2} parent=5 // pred_fallthru
      _
  $region6: #{transformer_dense_block_fwd.2} parent=0 // loop_footer
    %s30 = sadd.s32 1, %s26
  $region7: #{transformer_dense_block_fwd.2} parent=0 // loop_footer_branch
    %25 = sbr.rel target = $region3
  $region8: #{transformer_dense_block_fwd.2} parent=0 // loop_exit
    _

</llo_original>
